<compile_context>
chip_gen: v5e
topology: v5e:2x2
jax: 0.10.0
libtpu: 0.0.40
codegen_flags: <defaults>
</compile_context>

<pallas_src>
import math

import numpy as np
import jax
import jax.numpy as jnp
from jax.experimental import pallas as pl
from jax.experimental.pallas import tpu as pltpu


# ----------------------------------------------------------------------------
# Kernel factory: full positional MLP (encoding fused) on a (3, TILE_N) tile.
# ----------------------------------------------------------------------------
def make_mlp_kernel(num_layers, skip_layers):
    skip_layers = tuple(skip_layers)

    def kernel(uvw_ref, ft_ref, *refs):
        out_ref = refs[-1]
        w_refs = refs[:-1]

        uvw = uvw_ref[...].astype(jnp.float32)            # (3, TN)
        ft = ft_ref[...]                                  # (3K, 3) f32
        # proj[c*K + k, n] = freqs[k] * uvw[c, n]
        proj = jnp.dot(ft, uvw, preferred_element_type=jnp.float32)  # (3K, TN)
        es = jnp.sin(proj).astype(jnp.bfloat16)           # EUP, then bf16 cast
        ec = jnp.cos(proj).astype(jnp.bfloat16)

        h = None
        idx = 0
        for i in range(num_layers):
            if i == 0:
                ws = w_refs[idx][...]
                wc = w_refs[idx + 1][...]
                b = w_refs[idx + 2][...]
                idx += 3
                h = (jnp.dot(ws, es, preferred_element_type=jnp.float32)
                     + jnp.dot(wc, ec, preferred_element_type=jnp.float32)
                     + b)
            elif i in skip_layers:
                h = jnp.maximum(h, 0.0)                   # ReLU before skip
                hb = h.astype(jnp.bfloat16)
                wx = w_refs[idx][...]
                ws = w_refs[idx + 1][...]
                wc = w_refs[idx + 2][...]
                b = w_refs[idx + 3][...]
                idx += 4
                h = (jnp.dot(wx, hb, preferred_element_type=jnp.float32)
                     + jnp.dot(ws, es, preferred_element_type=jnp.float32)
                     + jnp.dot(wc, ec, preferred_element_type=jnp.float32)
                     + b)
            else:
                h = jnp.maximum(h, 0.0)
                hb = h.astype(jnp.bfloat16)
                w = w_refs[idx][...]
                b = w_refs[idx + 1][...]
                idx += 2
                h = jnp.dot(w, hb, preferred_element_type=jnp.float32) + b

        # tanh head of PositionalModel, then RGBMapping's (x + 1) * 0.5.
        out_ref[...] = ((jnp.tanh(h) + 1.0) * 0.5).astype(out_ref.dtype)

    return kernel


# ----------------------------------------------------------------------------
# Helpers
# ----------------------------------------------------------------------------
def _round_up(x, m):
    return (x + m - 1) // m * m


def _frequency_matrix(positional_dim):
    """(3K, 3) matrix F with F[c*K + k, c] = 2^k * pi  ->  proj = F @ uvw^T."""
    K = positional_dim
    freqs = (2.0 ** np.arange(K, dtype=np.float64)) * math.pi
    ft = np.zeros((3 * K, 3), dtype=np.float32)
    for c in range(3):
        ft[c * K:(c + 1) * K, c] = freqs
    return ft


# ----------------------------------------------------------------------------
# Deterministic parameter init (PyTorch nn.Linear-style uniform(+-1/sqrt(fan))).
# Weights are stored transposed (out_d, in_d) for the feature-major kernel.
# Skip layers store the split (W_x, W_sin, W_cos, b); layer 0 stores
# (W_sin, W_cos, b).
# TODO(synk): if importing real PyTorch weights, permute encoding rows from
# torch's per-frequency interleaved order into the (channel-major sin | cos)
# order used here.
# ----------------------------------------------------------------------------
def init_positional_model_params(key, input_dim, output_dim, hidden_dim,
                                 positional_dim, num_layers, skip_layers):
    skip_layers = tuple(skip_layers)
    E_half = input_dim * positional_dim          # 3K
    E = 2 * E_half
    params = []
    for i in range(num_layers):
        out_d = output_dim if i == num_layers - 1 else hidden_dim
        key, k1, k2, k3, k4 = jax.random.split(key, 5)
        if i == 0:
            bound = 1.0 / math.sqrt(E)
            ws = jax.random.uniform(k1, (out_d, E_half), jnp.float32, -bound, bound)
            wc = jax.random.uniform(k2, (out_d, E_half), jnp.float32, -bound, bound)
            b = jax.random.uniform(k3, (out_d, 1), jnp.float32, -bound, bound)
            params += [ws, wc, b]
        elif i in skip_layers:
            bound = 1.0 / math.sqrt(hidden_dim + E)
            wx = jax.random.uniform(k1, (out_d, hidden_dim), jnp.float32, -bound, bound)
            ws = jax.random.uniform(k2, (out_d, E_half), jnp.float32, -bound, bound)
            wc = jax.random.uniform(k3, (out_d, E_half), jnp.float32, -bound, bound)
            b = jax.random.uniform(k4, (out_d, 1), jnp.float32, -bound, bound)
            params += [wx, ws, wc, b]
        else:
            bound = 1.0 / math.sqrt(hidden_dim)
            w = jax.random.uniform(k1, (out_d, hidden_dim), jnp.float32, -bound, bound)
            b = jax.random.uniform(k3, (out_d, 1), jnp.float32, -bound, bound)
            params += [w, b]
    return params


# ----------------------------------------------------------------------------
# RGBMapping.forward equivalent: both atlases in a single pallas_call.
# ----------------------------------------------------------------------------
def rgb_mapping_forward(mapped_uvw_f, mapped_uvw_b, params_f, params_b,
                        positional_dim, num_layers, skip_layers, tile_n=2048):
    N = mapped_uvw_f.shape[0]
    assert mapped_uvw_f.shape == (N, 3) and mapped_uvw_b.shape == (N, 3)

    tile_n = _round_up(max(int(tile_n), 128), 128)
    n_pad = _round_up(N, 128)
    tile = min(tile_n, n_pad)
    n_pad = _round_up(n_pad, tile)

    # Stack the two atlases and go feature-major: (2, 3, N_pad).
    uvw = jnp.stack([mapped_uvw_f, mapped_uvw_b]).astype(jnp.float32)
    uvw_t = jnp.transpose(uvw, (0, 2, 1))
    if n_pad != N:
        uvw_t = jnp.pad(uvw_t, ((0, 0), (0, 0), (0, n_pad - N)))

    # Pack per-atlas params along a leading atlas axis; weights -> bf16,
    # biases (last dim == 1) stay f32 for an f32 bias add.
    packed = []
    for pf, pb in zip(params_f, params_b):
        st = jnp.stack([pf, pb])
        packed.append(st.astype(jnp.float32 if pf.shape[-1] == 1
                                else jnp.bfloat16))

    ft = jnp.asarray(_frequency_matrix(positional_dim))          # (3K, 3) f32

    kernel = make_mlp_kernel(num_layers, skip_layers)

    in_specs = [pl.BlockSpec((None, 3, tile), lambda a, i: (a, 0, i)),
                pl.BlockSpec(ft.shape, lambda a, i: (0, 0))]
    # Weights are tiny; pass each as a full (atlas-selected) VMEM block.  The
    # block index only changes when the atlas grid axis changes, so they are
    # not re-DMA'd across row tiles.
    in_specs += [pl.BlockSpec((None,) + tuple(p.shape[1:]),
                              lambda a, i: (a, 0, 0)) for p in packed]
    out_spec = pl.BlockSpec((None, 3, tile), lambda a, i: (a, 0, i))

    out = pl.pallas_call(
        kernel,
        out_shape=jax.ShapeDtypeStruct((2, 3, n_pad), jnp.float32),
        grid_spec=pltpu.PrefetchScalarGridSpec(
            num_scalar_prefetch=0,
            grid=(2, n_pad // tile),
            in_specs=in_specs,
            out_specs=out_spec,
        ),
        compiler_params=pltpu.CompilerParams(
            dimension_semantics=("parallel", "parallel")),
    )(uvw_t, ft, *packed)

    rgb = jnp.transpose(out[:, :, :N], (0, 2, 1))                # (2, N, 3)
    return {'mapped_rgb_f': rgb[0], 'mapped_rgb_b': rgb[1]}


# ----------------------------------------------------------------------------
# Pure-JAX reference (same math, points-major) for correctness checking.
# ----------------------------------------------------------------------------
def rgb_mlp_reference(uvw, params, positional_dim, num_layers, skip_layers):
    K = positional_dim
    freqs = jnp.asarray((2.0 ** np.arange(K, dtype=np.float64)) * math.pi,
                        dtype=jnp.float32)
    proj = (uvw[:, :, None] * freqs[None, None, :]).reshape(uvw.shape[0], 3 * K)
    s, c = jnp.sin(proj), jnp.cos(proj)

    def q(w):  # mimic the kernel's bf16 weight storage
        return w.astype(jnp.bfloat16).astype(jnp.float32)

    skip_layers = tuple(skip_layers)
    idx = 0
    h = None
    for i in range(num_layers):
        if i == 0:
            ws, wc, b = params[idx:idx + 3]; idx += 3
            h = s @ q(ws).T + c @ q(wc).T + b[:, 0]
        elif i in skip_layers:
            h = jnp.maximum(h, 0.0)
            wx, ws, wc, b = params[idx:idx + 4]; idx += 4
            h = h @ q(wx).T + s @ q(ws).T + c @ q(wc).T + b[:, 0]
        else:
            h = jnp.maximum(h, 0.0)
            w, b = params[idx:idx + 2]; idx += 2
            h = h @ q(w).T + b[:, 0]
    return (jnp.tanh(h) + 1.0) * 0.5


if __name__ == "__main__":
    # Small, module-consistent config.
    N = 256                      # number of flattened uvw sample points
    n_positional_atlas = 4       # positional_dim
    n_channels_atlas = 32        # hidden_dim
    n_layers_atlas = 8           # num_layers
    skip_layers = (4, 7)

    key = jax.random.PRNGKey(0)
    k_uf, k_ub, k_pf, k_pb = jax.random.split(key, 4)

    mapped_uvw_f = jax.random.uniform(k_uf, (N, 3), jnp.float32, -1.0, 1.0)
    mapped_uvw_b = jax.random.uniform(k_ub, (N, 3), jnp.float32, -1.0, 1.0)

    params_f = init_positional_model_params(
        k_pf, 3, 3, n_channels_atlas, n_positional_atlas,
        n_layers_atlas, skip_layers)
    params_b = init_positional_model_params(
        k_pb, 3, 3, n_channels_atlas, n_positional_atlas,
        n_layers_atlas, skip_layers)

    out = rgb_mapping_forward(mapped_uvw_f, mapped_uvw_b, params_f, params_b,
                              n_positional_atlas, n_layers_atlas, skip_layers)
    out = jax.block_until_ready(out)

    # Sanity: shapes and [0, 1] range implied by (tanh(x) + 1) * 0.5.
    assert out['mapped_rgb_f'].shape == (N, 3)
    assert out['mapped_rgb_b'].shape == (N, 3)
    assert bool(jnp.all((out['mapped_rgb_f'] >= 0.0) &
                        (out['mapped_rgb_f'] <= 1.0)))
    assert bool(jnp.all((out['mapped_rgb_b'] >= 0.0) &
                        (out['mapped_rgb_b'] <= 1.0)))

    # Correctness vs. pure-JAX reference (bf16-matmul tolerance).
    ref_f = rgb_mlp_reference(mapped_uvw_f, params_f, n_positional_atlas,
                              n_layers_atlas, skip_layers)
    ref_b = rgb_mlp_reference(mapped_uvw_b, params_b, n_positional_atlas,
                              n_layers_atlas, skip_layers)
    assert bool(jnp.allclose(out['mapped_rgb_f'], ref_f, atol=5e-2))
    assert bool(jnp.allclose(out['mapped_rgb_b'], ref_b, atol=5e-2))

    print("KERNEL_OK")
</pallas_src>

<mosaic_0001>
module attributes {stable_mosaic.version = 11 : i64} {
  func.func @kernel(%arg0: i32, %arg1: i32, %arg2: memref<1x3x256xf32, #tpu.memory_space<vmem>>, %arg3: memref<12x3xf32, #tpu.memory_space<vmem>>, %arg4: memref<1x32x12xbf16, #tpu.memory_space<vmem>>, %arg5: memref<1x32x12xbf16, #tpu.memory_space<vmem>>, %arg6: memref<1x32x1xf32, #tpu.memory_space<vmem>>, %arg7: memref<1x32x32xbf16, #tpu.memory_space<vmem>>, %arg8: memref<1x32x1xf32, #tpu.memory_space<vmem>>, %arg9: memref<1x32x32xbf16, #tpu.memory_space<vmem>>, %arg10: memref<1x32x1xf32, #tpu.memory_space<vmem>>, %arg11: memref<1x32x32xbf16, #tpu.memory_space<vmem>>, %arg12: memref<1x32x1xf32, #tpu.memory_space<vmem>>, %arg13: memref<1x32x32xbf16, #tpu.memory_space<vmem>>, %arg14: memref<1x32x12xbf16, #tpu.memory_space<vmem>>, %arg15: memref<1x32x12xbf16, #tpu.memory_space<vmem>>, %arg16: memref<1x32x1xf32, #tpu.memory_space<vmem>>, %arg17: memref<1x32x32xbf16, #tpu.memory_space<vmem>>, %arg18: memref<1x32x1xf32, #tpu.memory_space<vmem>>, %arg19: memref<1x32x32xbf16, #tpu.memory_space<vmem>>, %arg20: memref<1x32x1xf32, #tpu.memory_space<vmem>>, %arg21: memref<1x3x32xbf16, #tpu.memory_space<vmem>>, %arg22: memref<1x3x12xbf16, #tpu.memory_space<vmem>>, %arg23: memref<1x3x12xbf16, #tpu.memory_space<vmem>>, %arg24: memref<1x3x1xf32, #tpu.memory_space<vmem>>, %arg25: memref<1x3x256xf32, #tpu.memory_space<vmem>>) attributes {dimension_semantics = [#tpu.dimension_semantics<parallel>, #tpu.dimension_semantics<parallel>], iteration_bounds = array<i64: 2, 1>, scalar_prefetch = 0 : i64, scratch_operands = 0 : i64, tpu.core_type = #tpu.core_type<tc>, window_params = [{transform_indices = @transform_0, window_bounds = array<i64: 1, 3, 256>}, {pipeline_mode = #tpu.pipeline_mode<synchronous>, transform_indices = @transform_1, window_bounds = array<i64: 12, 3>}, {transform_indices = @transform_2, window_bounds = array<i64: 1, 32, 12>}, {transform_indices = @transform_3, window_bounds = array<i64: 1, 32, 12>}, {transform_indices = @transform_4, window_bounds = array<i64: 1, 32, 1>}, {transform_indices = @transform_5, window_bounds = array<i64: 1, 32, 32>}, {transform_indices = @transform_6, window_bounds = array<i64: 1, 32, 1>}, {transform_indices = @transform_7, window_bounds = array<i64: 1, 32, 32>}, {transform_indices = @transform_8, window_bounds = array<i64: 1, 32, 1>}, {transform_indices = @transform_9, window_bounds = array<i64: 1, 32, 32>}, {transform_indices = @transform_10, window_bounds = array<i64: 1, 32, 1>}, {transform_indices = @transform_11, window_bounds = array<i64: 1, 32, 32>}, {transform_indices = @transform_12, window_bounds = array<i64: 1, 32, 12>}, {transform_indices = @transform_13, window_bounds = array<i64: 1, 32, 12>}, {transform_indices = @transform_14, window_bounds = array<i64: 1, 32, 1>}, {transform_indices = @transform_15, window_bounds = array<i64: 1, 32, 32>}, {transform_indices = @transform_16, window_bounds = array<i64: 1, 32, 1>}, {transform_indices = @transform_17, window_bounds = array<i64: 1, 32, 32>}, {transform_indices = @transform_18, window_bounds = array<i64: 1, 32, 1>}, {transform_indices = @transform_19, window_bounds = array<i64: 1, 3, 32>}, {transform_indices = @transform_20, window_bounds = array<i64: 1, 3, 12>}, {transform_indices = @transform_21, window_bounds = array<i64: 1, 3, 12>}, {transform_indices = @transform_22, window_bounds = array<i64: 1, 3, 1>}, {transform_indices = @transform_23, window_bounds = array<i64: 1, 3, 256>}]} {
    %c0 = arith.constant 0 : index
    %c0_0 = arith.constant 0 : index
    %c0_1 = arith.constant 0 : index
    %0 = vector.load %arg2[%c0, %c0_0, %c0_1] : memref<1x3x256xf32, #tpu.memory_space<vmem>>, vector<1x3x256xf32>
    %1 = vector.shape_cast %0 : vector<1x3x256xf32> to vector<3x256xf32>
    %c0_2 = arith.constant 0 : index
    %c0_3 = arith.constant 0 : index
    %2 = vector.load %arg3[%c0_2, %c0_3] : memref<12x3xf32, #tpu.memory_space<vmem>>, vector<12x3xf32>
    %cst = arith.constant dense<0.000000e+00> : vector<12x256xf32>
    %3 = tpu.matmul %2, %1, %cst {dimension_numbers = #tpu.dot_dimension_numbers<[1], [0], [0], [1], [0, 0, 1, 1], [], []>} : vector<12x3xf32>, vector<3x256xf32>, vector<12x256xf32> -> vector<12x256xf32>
    %4 = math.sin %3 : vector<12x256xf32>
    %5 = arith.truncf %4 : vector<12x256xf32> to vector<12x256xbf16>
    %6 = math.cos %3 : vector<12x256xf32>
    %7 = arith.truncf %6 : vector<12x256xf32> to vector<12x256xbf16>
    %c0_4 = arith.constant 0 : index
    %c0_5 = arith.constant 0 : index
    %c0_6 = arith.constant 0 : index
    %8 = vector.load %arg4[%c0_4, %c0_5, %c0_6] : memref<1x32x12xbf16, #tpu.memory_space<vmem>>, vector<1x32x12xbf16>
    %9 = vector.shape_cast %8 : vector<1x32x12xbf16> to vector<32x12xbf16>
    %c0_7 = arith.constant 0 : index
    %c0_8 = arith.constant 0 : index
    %c0_9 = arith.constant 0 : index
    %10 = vector.load %arg5[%c0_7, %c0_8, %c0_9] : memref<1x32x12xbf16, #tpu.memory_space<vmem>>, vector<1x32x12xbf16>
    %11 = vector.shape_cast %10 : vector<1x32x12xbf16> to vector<32x12xbf16>
    %c0_10 = arith.constant 0 : index
    %c0_11 = arith.constant 0 : index
    %c0_12 = arith.constant 0 : index
    %12 = vector.load %arg6[%c0_10, %c0_11, %c0_12] : memref<1x32x1xf32, #tpu.memory_space<vmem>>, vector<1x32x1xf32>
    %13 = vector.shape_cast %12 : vector<1x32x1xf32> to vector<32x1xf32>
    %cst_13 = arith.constant dense<0.000000e+00> : vector<32x256xf32>
    %14 = tpu.matmul %9, %5, %cst_13 {dimension_numbers = #tpu.dot_dimension_numbers<[1], [0], [0], [1], [0, 0, 1, 1], [], []>} : vector<32x12xbf16>, vector<12x256xbf16>, vector<32x256xf32> -> vector<32x256xf32>
    %cst_14 = arith.constant dense<0.000000e+00> : vector<32x256xf32>
    %15 = tpu.matmul %11, %7, %cst_14 {dimension_numbers = #tpu.dot_dimension_numbers<[1], [0], [0], [1], [0, 0, 1, 1], [], []>} : vector<32x12xbf16>, vector<12x256xbf16>, vector<32x256xf32> -> vector<32x256xf32>
    %16 = arith.addf %14, %15 : vector<32x256xf32>
    %17 = vector.broadcast %13 : vector<32x1xf32> to vector<32x256xf32>
    %18 = arith.addf %16, %17 : vector<32x256xf32>
    %cst_15 = arith.constant 0.000000e+00 : f32
    %19 = vector.broadcast %cst_15 : f32 to vector<32x256xf32>
    %20 = arith.maximumf %18, %19 : vector<32x256xf32>
    %21 = arith.truncf %20 : vector<32x256xf32> to vector<32x256xbf16>
    %c0_16 = arith.constant 0 : index
    %c0_17 = arith.constant 0 : index
    %c0_18 = arith.constant 0 : index
    %22 = vector.load %arg7[%c0_16, %c0_17, %c0_18] : memref<1x32x32xbf16, #tpu.memory_space<vmem>>, vector<1x32x32xbf16>
    %23 = vector.shape_cast %22 : vector<1x32x32xbf16> to vector<32x32xbf16>
    %c0_19 = arith.constant 0 : index
    %c0_20 = arith.constant 0 : index
    %c0_21 = arith.constant 0 : index
    %24 = vector.load %arg8[%c0_19, %c0_20, %c0_21] : memref<1x32x1xf32, #tpu.memory_space<vmem>>, vector<1x32x1xf32>
    %25 = vector.shape_cast %24 : vector<1x32x1xf32> to vector<32x1xf32>
    %cst_22 = arith.constant dense<0.000000e+00> : vector<32x256xf32>
    %26 = tpu.matmul %23, %21, %cst_22 {dimension_numbers = #tpu.dot_dimension_numbers<[1], [0], [0], [1], [0, 0, 1, 1], [], []>} : vector<32x32xbf16>, vector<32x256xbf16>, vector<32x256xf32> -> vector<32x256xf32>
    %27 = vector.broadcast %25 : vector<32x1xf32> to vector<32x256xf32>
    %28 = arith.addf %26, %27 : vector<32x256xf32>
    %cst_23 = arith.constant 0.000000e+00 : f32
    %29 = vector.broadcast %cst_23 : f32 to vector<32x256xf32>
    %30 = arith.maximumf %28, %29 : vector<32x256xf32>
    %31 = arith.truncf %30 : vector<32x256xf32> to vector<32x256xbf16>
    %c0_24 = arith.constant 0 : index
    %c0_25 = arith.constant 0 : index
    %c0_26 = arith.constant 0 : index
    %32 = vector.load %arg9[%c0_24, %c0_25, %c0_26] : memref<1x32x32xbf16, #tpu.memory_space<vmem>>, vector<1x32x32xbf16>
    %33 = vector.shape_cast %32 : vector<1x32x32xbf16> to vector<32x32xbf16>
    %c0_27 = arith.constant 0 : index
    %c0_28 = arith.constant 0 : index
    %c0_29 = arith.constant 0 : index
    %34 = vector.load %arg10[%c0_27, %c0_28, %c0_29] : memref<1x32x1xf32, #tpu.memory_space<vmem>>, vector<1x32x1xf32>
    %35 = vector.shape_cast %34 : vector<1x32x1xf32> to vector<32x1xf32>
    %cst_30 = arith.constant dense<0.000000e+00> : vector<32x256xf32>
    %36 = tpu.matmul %33, %31, %cst_30 {dimension_numbers = #tpu.dot_dimension_numbers<[1], [0], [0], [1], [0, 0, 1, 1], [], []>} : vector<32x32xbf16>, vector<32x256xbf16>, vector<32x256xf32> -> vector<32x256xf32>
    %37 = vector.broadcast %35 : vector<32x1xf32> to vector<32x256xf32>
    %38 = arith.addf %36, %37 : vector<32x256xf32>
    %cst_31 = arith.constant 0.000000e+00 : f32
    %39 = vector.broadcast %cst_31 : f32 to vector<32x256xf32>
    %40 = arith.maximumf %38, %39 : vector<32x256xf32>
    %41 = arith.truncf %40 : vector<32x256xf32> to vector<32x256xbf16>
    %c0_32 = arith.constant 0 : index
    %c0_33 = arith.constant 0 : index
    %c0_34 = arith.constant 0 : index
    %42 = vector.load %arg11[%c0_32, %c0_33, %c0_34] : memref<1x32x32xbf16, #tpu.memory_space<vmem>>, vector<1x32x32xbf16>
    %43 = vector.shape_cast %42 : vector<1x32x32xbf16> to vector<32x32xbf16>
    %c0_35 = arith.constant 0 : index
    %c0_36 = arith.constant 0 : index
    %c0_37 = arith.constant 0 : index
    %44 = vector.load %arg12[%c0_35, %c0_36, %c0_37] : memref<1x32x1xf32, #tpu.memory_space<vmem>>, vector<1x32x1xf32>
    %45 = vector.shape_cast %44 : vector<1x32x1xf32> to vector<32x1xf32>
    %cst_38 = arith.constant dense<0.000000e+00> : vector<32x256xf32>
    %46 = tpu.matmul %43, %41, %cst_38 {dimension_numbers = #tpu.dot_dimension_numbers<[1], [0], [0], [1], [0, 0, 1, 1], [], []>} : vector<32x32xbf16>, vector<32x256xbf16>, vector<32x256xf32> -> vector<32x256xf32>
    %47 = vector.broadcast %45 : vector<32x1xf32> to vector<32x256xf32>
    %48 = arith.addf %46, %47 : vector<32x256xf32>
    %cst_39 = arith.constant 0.000000e+00 : f32
    %49 = vector.broadcast %cst_39 : f32 to vector<32x256xf32>
    %50 = arith.maximumf %48, %49 : vector<32x256xf32>
    %51 = arith.truncf %50 : vector<32x256xf32> to vector<32x256xbf16>
    %c0_40 = arith.constant 0 : index
    %c0_41 = arith.constant 0 : index
    %c0_42 = arith.constant 0 : index
    %52 = vector.load %arg13[%c0_40, %c0_41, %c0_42] : memref<1x32x32xbf16, #tpu.memory_space<vmem>>, vector<1x32x32xbf16>
    %53 = vector.shape_cast %52 : vector<1x32x32xbf16> to vector<32x32xbf16>
    %c0_43 = arith.constant 0 : index
    %c0_44 = arith.constant 0 : index
    %c0_45 = arith.constant 0 : index
    %54 = vector.load %arg14[%c0_43, %c0_44, %c0_45] : memref<1x32x12xbf16, #tpu.memory_space<vmem>>, vector<1x32x12xbf16>
    %55 = vector.shape_cast %54 : vector<1x32x12xbf16> to vector<32x12xbf16>
    %c0_46 = arith.constant 0 : index
    %c0_47 = arith.constant 0 : index
    %c0_48 = arith.constant 0 : index
    %56 = vector.load %arg15[%c0_46, %c0_47, %c0_48] : memref<1x32x12xbf16, #tpu.memory_space<vmem>>, vector<1x32x12xbf16>
    %57 = vector.shape_cast %56 : vector<1x32x12xbf16> to vector<32x12xbf16>
    %c0_49 = arith.constant 0 : index
    %c0_50 = arith.constant 0 : index
    %c0_51 = arith.constant 0 : index
    %58 = vector.load %arg16[%c0_49, %c0_50, %c0_51] : memref<1x32x1xf32, #tpu.memory_space<vmem>>, vector<1x32x1xf32>
    %59 = vector.shape_cast %58 : vector<1x32x1xf32> to vector<32x1xf32>
    %cst_52 = arith.constant dense<0.000000e+00> : vector<32x256xf32>
    %60 = tpu.matmul %53, %51, %cst_52 {dimension_numbers = #tpu.dot_dimension_numbers<[1], [0], [0], [1], [0, 0, 1, 1], [], []>} : vector<32x32xbf16>, vector<32x256xbf16>, vector<32x256xf32> -> vector<32x256xf32>
    %cst_53 = arith.constant dense<0.000000e+00> : vector<32x256xf32>
    %61 = tpu.matmul %55, %5, %cst_53 {dimension_numbers = #tpu.dot_dimension_numbers<[1], [0], [0], [1], [0, 0, 1, 1], [], []>} : vector<32x12xbf16>, vector<12x256xbf16>, vector<32x256xf32> -> vector<32x256xf32>
    %62 = arith.addf %60, %61 : vector<32x256xf32>
    %cst_54 = arith.constant dense<0.000000e+00> : vector<32x256xf32>
    %63 = tpu.matmul %57, %7, %cst_54 {dimension_numbers = #tpu.dot_dimension_numbers<[1], [0], [0], [1], [0, 0, 1, 1], [], []>} : vector<32x12xbf16>, vector<12x256xbf16>, vector<32x256xf32> -> vector<32x256xf32>
    %64 = arith.addf %62, %63 : vector<32x256xf32>
    %65 = vector.broadcast %59 : vector<32x1xf32> to vector<32x256xf32>
    %66 = arith.addf %64, %65 : vector<32x256xf32>
    %cst_55 = arith.constant 0.000000e+00 : f32
    %67 = vector.broadcast %cst_55 : f32 to vector<32x256xf32>
    %68 = arith.maximumf %66, %67 : vector<32x256xf32>
    %69 = arith.truncf %68 : vector<32x256xf32> to vector<32x256xbf16>
    %c0_56 = arith.constant 0 : index
    %c0_57 = arith.constant 0 : index
    %c0_58 = arith.constant 0 : index
    %70 = vector.load %arg17[%c0_56, %c0_57, %c0_58] : memref<1x32x32xbf16, #tpu.memory_space<vmem>>, vector<1x32x32xbf16>
    %71 = vector.shape_cast %70 : vector<1x32x32xbf16> to vector<32x32xbf16>
    %c0_59 = arith.constant 0 : index
    %c0_60 = arith.constant 0 : index
    %c0_61 = arith.constant 0 : index
    %72 = vector.load %arg18[%c0_59, %c0_60, %c0_61] : memref<1x32x1xf32, #tpu.memory_space<vmem>>, vector<1x32x1xf32>
    %73 = vector.shape_cast %72 : vector<1x32x1xf32> to vector<32x1xf32>
    %cst_62 = arith.constant dense<0.000000e+00> : vector<32x256xf32>
    %74 = tpu.matmul %71, %69, %cst_62 {dimension_numbers = #tpu.dot_dimension_numbers<[1], [0], [0], [1], [0, 0, 1, 1], [], []>} : vector<32x32xbf16>, vector<32x256xbf16>, vector<32x256xf32> -> vector<32x256xf32>
    %75 = vector.broadcast %73 : vector<32x1xf32> to vector<32x256xf32>
    %76 = arith.addf %74, %75 : vector<32x256xf32>
    %cst_63 = arith.constant 0.000000e+00 : f32
    %77 = vector.broadcast %cst_63 : f32 to vector<32x256xf32>
    %78 = arith.maximumf %76, %77 : vector<32x256xf32>
    %79 = arith.truncf %78 : vector<32x256xf32> to vector<32x256xbf16>
    %c0_64 = arith.constant 0 : index
    %c0_65 = arith.constant 0 : index
    %c0_66 = arith.constant 0 : index
    %80 = vector.load %arg19[%c0_64, %c0_65, %c0_66] : memref<1x32x32xbf16, #tpu.memory_space<vmem>>, vector<1x32x32xbf16>
    %81 = vector.shape_cast %80 : vector<1x32x32xbf16> to vector<32x32xbf16>
    %c0_67 = arith.constant 0 : index
    %c0_68 = arith.constant 0 : index
    %c0_69 = arith.constant 0 : index
    %82 = vector.load %arg20[%c0_67, %c0_68, %c0_69] : memref<1x32x1xf32, #tpu.memory_space<vmem>>, vector<1x32x1xf32>
    %83 = vector.shape_cast %82 : vector<1x32x1xf32> to vector<32x1xf32>
    %cst_70 = arith.constant dense<0.000000e+00> : vector<32x256xf32>
    %84 = tpu.matmul %81, %79, %cst_70 {dimension_numbers = #tpu.dot_dimension_numbers<[1], [0], [0], [1], [0, 0, 1, 1], [], []>} : vector<32x32xbf16>, vector<32x256xbf16>, vector<32x256xf32> -> vector<32x256xf32>
    %85 = vector.broadcast %83 : vector<32x1xf32> to vector<32x256xf32>
    %86 = arith.addf %84, %85 : vector<32x256xf32>
    %cst_71 = arith.constant 0.000000e+00 : f32
    %87 = vector.broadcast %cst_71 : f32 to vector<32x256xf32>
    %88 = arith.maximumf %86, %87 : vector<32x256xf32>
    %89 = arith.truncf %88 : vector<32x256xf32> to vector<32x256xbf16>
    %c0_72 = arith.constant 0 : index
    %c0_73 = arith.constant 0 : index
    %c0_74 = arith.constant 0 : index
    %90 = vector.load %arg21[%c0_72, %c0_73, %c0_74] : memref<1x3x32xbf16, #tpu.memory_space<vmem>>, vector<1x3x32xbf16>
    %91 = vector.shape_cast %90 : vector<1x3x32xbf16> to vector<3x32xbf16>
    %c0_75 = arith.constant 0 : index
    %c0_76 = arith.constant 0 : index
    %c0_77 = arith.constant 0 : index
    %92 = vector.load %arg22[%c0_75, %c0_76, %c0_77] : memref<1x3x12xbf16, #tpu.memory_space<vmem>>, vector<1x3x12xbf16>
    %93 = vector.shape_cast %92 : vector<1x3x12xbf16> to vector<3x12xbf16>
    %c0_78 = arith.constant 0 : index
    %c0_79 = arith.constant 0 : index
    %c0_80 = arith.constant 0 : index
    %94 = vector.load %arg23[%c0_78, %c0_79, %c0_80] : memref<1x3x12xbf16, #tpu.memory_space<vmem>>, vector<1x3x12xbf16>
    %95 = vector.shape_cast %94 : vector<1x3x12xbf16> to vector<3x12xbf16>
    %c0_81 = arith.constant 0 : index
    %c0_82 = arith.constant 0 : index
    %c0_83 = arith.constant 0 : index
    %96 = vector.load %arg24[%c0_81, %c0_82, %c0_83] : memref<1x3x1xf32, #tpu.memory_space<vmem>>, vector<1x3x1xf32>
    %97 = vector.shape_cast %96 : vector<1x3x1xf32> to vector<3x1xf32>
    %cst_84 = arith.constant dense<0.000000e+00> : vector<3x256xf32>
    %98 = tpu.matmul %91, %89, %cst_84 {dimension_numbers = #tpu.dot_dimension_numbers<[1], [0], [0], [1], [0, 0, 1, 1], [], []>} : vector<3x32xbf16>, vector<32x256xbf16>, vector<3x256xf32> -> vector<3x256xf32>
    %cst_85 = arith.constant dense<0.000000e+00> : vector<3x256xf32>
    %99 = tpu.matmul %93, %5, %cst_85 {dimension_numbers = #tpu.dot_dimension_numbers<[1], [0], [0], [1], [0, 0, 1, 1], [], []>} : vector<3x12xbf16>, vector<12x256xbf16>, vector<3x256xf32> -> vector<3x256xf32>
    %100 = arith.addf %98, %99 : vector<3x256xf32>
    %cst_86 = arith.constant dense<0.000000e+00> : vector<3x256xf32>
    %101 = tpu.matmul %95, %7, %cst_86 {dimension_numbers = #tpu.dot_dimension_numbers<[1], [0], [0], [1], [0, 0, 1, 1], [], []>} : vector<3x12xbf16>, vector<12x256xbf16>, vector<3x256xf32> -> vector<3x256xf32>
    %102 = arith.addf %100, %101 : vector<3x256xf32>
    %103 = vector.broadcast %97 : vector<3x1xf32> to vector<3x256xf32>
    %104 = arith.addf %102, %103 : vector<3x256xf32>
    %105 = math.tanh %104 : vector<3x256xf32>
    %cst_87 = arith.constant 1.000000e+00 : f32
    %106 = vector.broadcast %cst_87 : f32 to vector<3x256xf32>
    %107 = arith.addf %105, %106 : vector<3x256xf32>
    %cst_88 = arith.constant 5.000000e-01 : f32
    %108 = vector.broadcast %cst_88 : f32 to vector<3x256xf32>
    %109 = arith.mulf %107, %108 : vector<3x256xf32>
    %c0_89 = arith.constant 0 : index
    %c0_90 = arith.constant 0 : index
    %c0_91 = arith.constant 0 : index
    %110 = vector.load %arg25[%c0_89, %c0_90, %c0_91] : memref<1x3x256xf32, #tpu.memory_space<vmem>>, vector<1x3x256xf32>
    %111 = vector.shape_cast %110 : vector<1x3x256xf32> to vector<3x256xf32>
    %112 = vector.shape_cast %109 : vector<3x256xf32> to vector<1x3x256xf32>
    tpu.vector_store %arg25[%c0_89, %c0_90, %c0_91], %112 {strides = array<i32>} : memref<1x3x256xf32, #tpu.memory_space<vmem>>, vector<1x3x256xf32>,
    return
  }
  func.func @transform_0(%arg0: i32, %arg1: i32) -> (i32, i32, i32) {
    %c0_i32 = arith.constant 0 : i32
    %c0_i32_0 = arith.constant 0 : i32
    return %arg0, %c0_i32, %arg1 : i32, i32, i32
  }
  func.func @transform_1(%arg0: i32, %arg1: i32) -> (i32, i32) {
    %c0_i32 = arith.constant 0 : i32
    %c0_i32_0 = arith.constant 0 : i32
    %c0_i32_1 = arith.constant 0 : i32
    return %c0_i32, %c0_i32_0 : i32, i32
  }
  func.func @transform_2(%arg0: i32, %arg1: i32) -> (i32, i32, i32) {
    %c0_i32 = arith.constant 0 : i32
    %c0_i32_0 = arith.constant 0 : i32
    %c0_i32_1 = arith.constant 0 : i32
    return %arg0, %c0_i32, %c0_i32_0 : i32, i32, i32
  }
  func.func @transform_3(%arg0: i32, %arg1: i32) -> (i32, i32, i32) {
    %c0_i32 = arith.constant 0 : i32
    %c0_i32_0 = arith.constant 0 : i32
    %c0_i32_1 = arith.constant 0 : i32
    return %arg0, %c0_i32, %c0_i32_0 : i32, i32, i32
  }
  func.func @transform_4(%arg0: i32, %arg1: i32) -> (i32, i32, i32) {
    %c0_i32 = arith.constant 0 : i32
    %c0_i32_0 = arith.constant 0 : i32
    %c0_i32_1 = arith.constant 0 : i32
    return %arg0, %c0_i32, %c0_i32_0 : i32, i32, i32
  }
  func.func @transform_5(%arg0: i32, %arg1: i32) -> (i32, i32, i32) {
    %c0_i32 = arith.constant 0 : i32
    %c0_i32_0 = arith.constant 0 : i32
    %c0_i32_1 = arith.constant 0 : i32
    return %arg0, %c0_i32, %c0_i32_0 : i32, i32, i32
  }
  func.func @transform_6(%arg0: i32, %arg1: i32) -> (i32, i32, i32) {
    %c0_i32 = arith.constant 0 : i32
    %c0_i32_0 = arith.constant 0 : i32
    %c0_i32_1 = arith.constant 0 : i32
    return %arg0, %c0_i32, %c0_i32_0 : i32, i32, i32
  }
  func.func @transform_7(%arg0: i32, %arg1: i32) -> (i32, i32, i32) {
    %c0_i32 = arith.constant 0 : i32
    %c0_i32_0 = arith.constant 0 : i32
    %c0_i32_1 = arith.constant 0 : i32
    return %arg0, %c0_i32, %c0_i32_0 : i32, i32, i32
  }
  func.func @transform_8(%arg0: i32, %arg1: i32) -> (i32, i32, i32) {
    %c0_i32 = arith.constant 0 : i32
    %c0_i32_0 = arith.constant 0 : i32
    %c0_i32_1 = arith.constant 0 : i32
    return %arg0, %c0_i32, %c0_i32_0 : i32, i32, i32
  }
  func.func @transform_9(%arg0: i32, %arg1: i32) -> (i32, i32, i32) {
    %c0_i32 = arith.constant 0 : i32
    %c0_i32_0 = arith.constant 0 : i32
    %c0_i32_1 = arith.constant 0 : i32
    return %arg0, %c0_i32, %c0_i32_0 : i32, i32, i32
  }
  func.func @transform_10(%arg0: i32, %arg1: i32) -> (i32, i32, i32) {
    %c0_i32 = arith.constant 0 : i32
    %c0_i32_0 = arith.constant 0 : i32
    %c0_i32_1 = arith.constant 0 : i32
    return %arg0, %c0_i32, %c0_i32_0 : i32, i32, i32
  }
  func.func @transform_11(%arg0: i32, %arg1: i32) -> (i32, i32, i32) {
    %c0_i32 = arith.constant 0 : i32
    %c0_i32_0 = arith.constant 0 : i32
    %c0_i32_1 = arith.constant 0 : i32
    return %arg0, %c0_i32, %c0_i32_0 : i32, i32, i32
  }
  func.func @transform_12(%arg0: i32, %arg1: i32) -> (i32, i32, i32) {
    %c0_i32 = arith.constant 0 : i32
    %c0_i32_0 = arith.constant 0 : i32
    %c0_i32_1 = arith.constant 0 : i32
    return %arg0, %c0_i32, %c0_i32_0 : i32, i32, i32
  }
  func.func @transform_13(%arg0: i32, %arg1: i32) -> (i32, i32, i32) {
    %c0_i32 = arith.constant 0 : i32
    %c0_i32_0 = arith.constant 0 : i32
    %c0_i32_1 = arith.constant 0 : i32
    return %arg0, %c0_i32, %c0_i32_0 : i32, i32, i32
  }
  func.func @transform_14(%arg0: i32, %arg1: i32) -> (i32, i32, i32) {
    %c0_i32 = arith.constant 0 : i32
    %c0_i32_0 = arith.constant 0 : i32
    %c0_i32_1 = arith.constant 0 : i32
    return %arg0, %c0_i32, %c0_i32_0 : i32, i32, i32
  }
  func.func @transform_15(%arg0: i32, %arg1: i32) -> (i32, i32, i32) {
    %c0_i32 = arith.constant 0 : i32
    %c0_i32_0 = arith.constant 0 : i32
    %c0_i32_1 = arith.constant 0 : i32
    return %arg0, %c0_i32, %c0_i32_0 : i32, i32, i32
  }
  func.func @transform_16(%arg0: i32, %arg1: i32) -> (i32, i32, i32) {
    %c0_i32 = arith.constant 0 : i32
    %c0_i32_0 = arith.constant 0 : i32
    %c0_i32_1 = arith.constant 0 : i32
    return %arg0, %c0_i32, %c0_i32_0 : i32, i32, i32
  }
  func.func @transform_17(%arg0: i32, %arg1: i32) -> (i32, i32, i32) {
    %c0_i32 = arith.constant 0 : i32
    %c0_i32_0 = arith.constant 0 : i32
    %c0_i32_1 = arith.constant 0 : i32
    return %arg0, %c0_i32, %c0_i32_0 : i32, i32, i32
  }
  func.func @transform_18(%arg0: i32, %arg1: i32) -> (i32, i32, i32) {
    %c0_i32 = arith.constant 0 : i32
    %c0_i32_0 = arith.constant 0 : i32
    %c0_i32_1 = arith.constant 0 : i32
    return %arg0, %c0_i32, %c0_i32_0 : i32, i32, i32
  }
  func.func @transform_19(%arg0: i32, %arg1: i32) -> (i32, i32, i32) {
    %c0_i32 = arith.constant 0 : i32
    %c0_i32_0 = arith.constant 0 : i32
    %c0_i32_1 = arith.constant 0 : i32
    return %arg0, %c0_i32, %c0_i32_0 : i32, i32, i32
  }
  func.func @transform_20(%arg0: i32, %arg1: i32) -> (i32, i32, i32) {
    %c0_i32 = arith.constant 0 : i32
    %c0_i32_0 = arith.constant 0 : i32
    %c0_i32_1 = arith.constant 0 : i32
    return %arg0, %c0_i32, %c0_i32_0 : i32, i32, i32
  }
  func.func @transform_21(%arg0: i32, %arg1: i32) -> (i32, i32, i32) {
    %c0_i32 = arith.constant 0 : i32
    %c0_i32_0 = arith.constant 0 : i32
    %c0_i32_1 = arith.constant 0 : i32
    return %arg0, %c0_i32, %c0_i32_0 : i32, i32, i32
  }
  func.func @transform_22(%arg0: i32, %arg1: i32) -> (i32, i32, i32) {
    %c0_i32 = arith.constant 0 : i32
    %c0_i32_0 = arith.constant 0 : i32
    %c0_i32_1 = arith.constant 0 : i32
    return %arg0, %c0_i32, %c0_i32_0 : i32, i32, i32
  }
  func.func @transform_23(%arg0: i32, %arg1: i32) -> (i32, i32, i32) {
    %c0_i32 = arith.constant 0 : i32
    %c0_i32_0 = arith.constant 0 : i32
    return %arg0, %c0_i32, %arg1 : i32, i32, i32
  }
}

</mosaic_0001>

<llo_original>
// kernel: tpu_custom_call.1
$region0: #{tpu_custom_call.1}
  #allocation0 [shape = 'u32[]', space=smem, size = 0x4, offset = 0x4, fixed_abs, tag = 'smem constant byte address 0x4 - core index']
  #allocation1 [shape = 'u32[72,128]{1,0:T(1,128)}', space=vmem, size = 0x9000, scoped, tag = 'internal scratch']
  %s0 = inlined_call_operand.vmem [shape: f32[2,3,256], index: 0, kind: input, shape index: {}]
  %s1 = inlined_call_operand.vmem [shape: f32[12,3], index: 1, kind: input, shape index: {}]
  %s2 = inlined_call_operand.vmem [shape: bf16[2,32,12], index: 2, kind: input, shape index: {}]
  %s3 = inlined_call_operand.vmem [shape: bf16[2,32,12], index: 3, kind: input, shape index: {}]
  %s4 = inlined_call_operand.vmem [shape: f32[2,32,1], index: 4, kind: input, shape index: {}]
  %s5 = inlined_call_operand.vmem [shape: bf16[2,32,32], index: 5, kind: input, shape index: {}]
  %s6 = inlined_call_operand.vmem [shape: f32[2,32,1], index: 6, kind: input, shape index: {}]
  %s7 = inlined_call_operand.vmem [shape: bf16[2,32,32], index: 7, kind: input, shape index: {}]
  %s8 = inlined_call_operand.vmem [shape: f32[2,32,1], index: 8, kind: input, shape index: {}]
  %s9 = inlined_call_operand.vmem [shape: bf16[2,32,32], index: 9, kind: input, shape index: {}]
  %s10 = inlined_call_operand.vmem [shape: f32[2,32,1], index: 10, kind: input, shape index: {}]
  %s11 = inlined_call_operand.vmem [shape: bf16[2,32,32], index: 11, kind: input, shape index: {}]
  %s12 = inlined_call_operand.vmem [shape: bf16[2,32,12], index: 12, kind: input, shape index: {}]
  %s13 = inlined_call_operand.vmem [shape: bf16[2,32,12], index: 13, kind: input, shape index: {}]
  %s14 = inlined_call_operand.vmem [shape: f32[2,32,1], index: 14, kind: input, shape index: {}]
  %s15 = inlined_call_operand.vmem [shape: bf16[2,32,32], index: 15, kind: input, shape index: {}]
  %s16 = inlined_call_operand.vmem [shape: f32[2,32,1], index: 16, kind: input, shape index: {}]
  %s17 = inlined_call_operand.vmem [shape: bf16[2,32,32], index: 17, kind: input, shape index: {}]
  %s18 = inlined_call_operand.vmem [shape: f32[2,32,1], index: 18, kind: input, shape index: {}]
  %s19 = inlined_call_operand.vmem [shape: bf16[2,3,32], index: 19, kind: input, shape index: {}]
  %s20 = inlined_call_operand.vmem [shape: bf16[2,3,12], index: 20, kind: input, shape index: {}]
  %s21 = inlined_call_operand.vmem [shape: bf16[2,3,12], index: 21, kind: input, shape index: {}]
  %s22 = inlined_call_operand.vmem [shape: f32[2,3,1], index: 22, kind: input, shape index: {}]
  %s23 = inlined_call_operand.vmem [shape: f32[2,3,256], index: 23, kind: output, shape index: {}]
  %s24 = sld [smem:[#allocation0]]
  $region125: #{tpu_custom_call.1} parent=0
    _
  %s26 = ssub.s32 1, %s24
  %s27 = scalar_select 0, %s26, %s24
  loop: start=0, step=1, limit=4
  $region2: #{tpu_custom_call.1} parent=0 // loop_pre_header
    _
  $region3: #{tpu_custom_call.1} parent=0 // loop_header
    %s29 = sphi 0, %s33
    %p30 = scmp.ge.s32.totalorder %s29, 4
    %s36 = sphi 0, %s48
    %s37 = sphi 0, %s44
    %s38 = sphi 0, %s36
    %s39 = sphi 0, %s37
    %s40 = sphi 0, %s38
    %s41 = sphi 0, %s39
    %s53 = sphi 0, %s55
    %s56 = sphi 0, %s53
    %s57 = sphi 0, %s56
    %s73 = sphi 0, %s57
    %s77 = sphi 0, %s77
    %s79 = sphi 0, %s77
    %s80 = sphi 0, %s79
    %s94 = sphi 0, %s80
    %s100 = sphi 0, %s102
    %s103 = sphi 0, %s100
    %s104 = sphi 0, %s103
    %s120 = sphi 0, %s104
    %s126 = sphi 0, %s128
    %s129 = sphi 0, %s126
    %s130 = sphi 0, %s129
    %s146 = sphi 0, %s130
    %s152 = sphi 0, %s154
    %s155 = sphi 0, %s152
    %s156 = sphi 0, %s155
    %s172 = sphi 0, %s156
    %s178 = sphi 0, %s180
    %s181 = sphi 0, %s178
    %s182 = sphi 0, %s181
    %s198 = sphi 0, %s182
    %s204 = sphi 0, %s206
    %s207 = sphi 0, %s204
    %s208 = sphi 0, %s207
    %s224 = sphi 0, %s208
    %s230 = sphi 0, %s232
    %s233 = sphi 0, %s230
    %s234 = sphi 0, %s233
    %s250 = sphi 0, %s234
    %s256 = sphi 0, %s258
    %s259 = sphi 0, %s256
    %s260 = sphi 0, %s259
    %s276 = sphi 0, %s260
    %s282 = sphi 0, %s284
    %s285 = sphi 0, %s282
    %s286 = sphi 0, %s285
    %s302 = sphi 0, %s286
    %s308 = sphi 0, %s310
    %s311 = sphi 0, %s308
    %s312 = sphi 0, %s311
    %s328 = sphi 0, %s312
    %s334 = sphi 0, %s336
    %s337 = sphi 0, %s334
    %s338 = sphi 0, %s337
    %s354 = sphi 0, %s338
    %s360 = sphi 0, %s362
    %s363 = sphi 0, %s360
    %s364 = sphi 0, %s363
    %s380 = sphi 0, %s364
    %s386 = sphi 0, %s388
    %s389 = sphi 0, %s386
    %s390 = sphi 0, %s389
    %s406 = sphi 0, %s390
    %s412 = sphi 0, %s414
    %s415 = sphi 0, %s412
    %s416 = sphi 0, %s415
    %s432 = sphi 0, %s416
    %s438 = sphi 0, %s440
    %s441 = sphi 0, %s438
    %s442 = sphi 0, %s441
    %s458 = sphi 0, %s442
    %s464 = sphi 0, %s466
    %s467 = sphi 0, %s464
    %s468 = sphi 0, %s467
    %s484 = sphi 0, %s468
    %s490 = sphi 0, %s492
    %s493 = sphi 0, %s490
    %s494 = sphi 0, %s493
    %s510 = sphi 0, %s494
    %s516 = sphi 0, %s518
    %s519 = sphi 0, %s516
    %s520 = sphi 0, %s519
    %s536 = sphi 0, %s520
    %s542 = sphi 0, %s544
    %s545 = sphi 0, %s542
    %s546 = sphi 0, %s545
    %s562 = sphi 0, %s546
    %s568 = sphi 0, %s570
    %s571 = sphi 0, %s568
    %s572 = sphi 0, %s571
    %s588 = sphi 0, %s572
    %s594 = sphi 0, %s596
    %s597 = sphi 0, %s594
    %s598 = sphi 0, %s597
    %s614 = sphi 0, %s598
    %s620 = sphi 0, %s622
    %s623 = sphi 0, %s620
    %s624 = sphi 0, %s623
    %s640 = sphi 0, %s624
    %s648 = sphi 0, %s650
    %s651 = sphi 0, %s648
    %s652 = sphi 0, %s651
    %s668 = sphi 0, %s652
  $region4: #{tpu_custom_call.1} parent=0 // loop_header_branch
    %32 = sbr.rel (%p30) target = $region8
  $region5: #{tpu_custom_call.1} parent=0 // loop_body
    %s34 = ssub.s32 %s29, 1
    %s35 = ssub.s32 %s29, 2
    %s42 = sadd.s32 1, %s37
    %p43 = scmp.ge.s32.totalorder %s42, 1
    %s44 = scalar_select %p43, 0, %s42
    %s45 = sadd.s32 1, %s36
    %s46 = scalar_select %p43, %s45, %s36
    %p47 = scmp.ge.s32.totalorder %s46, 2
    %s48 = scalar_select %p47, 0, %s46
    %s49 = ssub.s32 %s36, %s48
    %s50 = ssub.s32 %s37, %s44
    %s51 = sor.u32 %s49, %s50
    %p52 = scmp.eq.s32.totalorder %s51, 0
    %s54 = sadd.s32 %s53, 1
    %s55 = scalar_select %p52, %s53, %s54
    %p58 = pneg %p52
    %p59 = scmp.eq.s32.totalorder %s29, 1
    %p60 = por %p58, %p59
    %p61 = scmp.ne.s32.totalorder %s53, %s56
    %p62 = scmp.eq.s32.totalorder %s29, 0
    %p63 = por %p61, %p62
    %p64 = scmp.ne.s32.totalorder %s53, %s56
    %p65 = scmp.eq.s32.totalorder %s34, 1
    %p66 = por %p64, %p65
    %p67 = scmp.ne.s32.totalorder %s56, %s57
    %p68 = scmp.eq.s32.totalorder %s34, 0
    %p69 = por %p67, %p68
    %p70 = scmp.ne.s32.totalorder %s56, %s57
    %p71 = scmp.eq.s32.totalorder %s35, 1
    %p72 = por %p70, %p71
    %p74 = scmp.ne.s32.totalorder %s57, %s73
    %p75 = scmp.eq.s32.totalorder %s35, 0
    %p76 = por %p74, %p75
    %s78 = sadd.s32 %s77, 1
    %p81 = scmp.eq.s32.totalorder %s29, 1
    %p82 = scmp.ne.s32.totalorder %s77, %s79
    %p83 = scmp.eq.s32.totalorder %s29, 0
    %p84 = por %p82, %p83
    %p85 = scmp.ne.s32.totalorder %s77, %s79
    %p86 = scmp.eq.s32.totalorder %s34, 1
    %p87 = por %p85, %p86
    %p88 = scmp.ne.s32.totalorder %s79, %s80
    %p89 = scmp.eq.s32.totalorder %s34, 0
    %p90 = por %p88, %p89
    %p91 = scmp.ne.s32.totalorder %s79, %s80
    %p92 = scmp.eq.s32.totalorder %s35, 1
    %p93 = por %p91, %p92
    %p95 = scmp.ne.s32.totalorder %s80, %s94
    %p96 = scmp.eq.s32.totalorder %s35, 0
    %p97 = por %p95, %p96
    %s98 = ssub.s32 %s36, %s48
    %p99 = scmp.eq.s32.totalorder %s98, 0
    %s101 = sadd.s32 %s100, 1
    %s102 = scalar_select %p99, %s100, %s101
    %p105 = pneg %p99
    %p106 = scmp.eq.s32.totalorder %s29, 1
    %p107 = por %p105, %p106
    %p108 = scmp.ne.s32.totalorder %s100, %s103
    %p109 = scmp.eq.s32.totalorder %s29, 0
    %p110 = por %p108, %p109
    %p111 = scmp.ne.s32.totalorder %s100, %s103
    %p112 = scmp.eq.s32.totalorder %s34, 1
    %p113 = por %p111, %p112
    %p114 = scmp.ne.s32.totalorder %s103, %s104
    %p115 = scmp.eq.s32.totalorder %s34, 0
    %p116 = por %p114, %p115
    %p117 = scmp.ne.s32.totalorder %s103, %s104
    %p118 = scmp.eq.s32.totalorder %s35, 1
    %p119 = por %p117, %p118
    %p121 = scmp.ne.s32.totalorder %s104, %s120
    %p122 = scmp.eq.s32.totalorder %s35, 0
    %p123 = por %p121, %p122
    %s124 = ssub.s32 %s36, %s48
    %p125 = scmp.eq.s32.totalorder %s124, 0
    %s127 = sadd.s32 %s126, 1
    %s128 = scalar_select %p125, %s126, %s127
    %p131 = pneg %p125
    %p132 = scmp.eq.s32.totalorder %s29, 1
    %p133 = por %p131, %p132
    %p134 = scmp.ne.s32.totalorder %s126, %s129
    %p135 = scmp.eq.s32.totalorder %s29, 0
    %p136 = por %p134, %p135
    %p137 = scmp.ne.s32.totalorder %s126, %s129
    %p138 = scmp.eq.s32.totalorder %s34, 1
    %p139 = por %p137, %p138
    %p140 = scmp.ne.s32.totalorder %s129, %s130
    %p141 = scmp.eq.s32.totalorder %s34, 0
    %p142 = por %p140, %p141
    %p143 = scmp.ne.s32.totalorder %s129, %s130
    %p144 = scmp.eq.s32.totalorder %s35, 1
    %p145 = por %p143, %p144
    %p147 = scmp.ne.s32.totalorder %s130, %s146
    %p148 = scmp.eq.s32.totalorder %s35, 0
    %p149 = por %p147, %p148
    %s150 = ssub.s32 %s36, %s48
    %p151 = scmp.eq.s32.totalorder %s150, 0
    %s153 = sadd.s32 %s152, 1
    %s154 = scalar_select %p151, %s152, %s153
    %p157 = pneg %p151
    %p158 = scmp.eq.s32.totalorder %s29, 1
    %p159 = por %p157, %p158
    %p160 = scmp.ne.s32.totalorder %s152, %s155
    %p161 = scmp.eq.s32.totalorder %s29, 0
    %p162 = por %p160, %p161
    %p163 = scmp.ne.s32.totalorder %s152, %s155
    %p164 = scmp.eq.s32.totalorder %s34, 1
    %p165 = por %p163, %p164
    %p166 = scmp.ne.s32.totalorder %s155, %s156
    %p167 = scmp.eq.s32.totalorder %s34, 0
    %p168 = por %p166, %p167
    %p169 = scmp.ne.s32.totalorder %s155, %s156
    %p170 = scmp.eq.s32.totalorder %s35, 1
    %p171 = por %p169, %p170
    %p173 = scmp.ne.s32.totalorder %s156, %s172
    %p174 = scmp.eq.s32.totalorder %s35, 0
    %p175 = por %p173, %p174
    %s176 = ssub.s32 %s36, %s48
    %p177 = scmp.eq.s32.totalorder %s176, 0
    %s179 = sadd.s32 %s178, 1
    %s180 = scalar_select %p177, %s178, %s179
    %p183 = pneg %p177
    %p184 = scmp.eq.s32.totalorder %s29, 1
    %p185 = por %p183, %p184
    %p186 = scmp.ne.s32.totalorder %s178, %s181
    %p187 = scmp.eq.s32.totalorder %s29, 0
    %p188 = por %p186, %p187
    %p189 = scmp.ne.s32.totalorder %s178, %s181
    %p190 = scmp.eq.s32.totalorder %s34, 1
    %p191 = por %p189, %p190
    %p192 = scmp.ne.s32.totalorder %s181, %s182
    %p193 = scmp.eq.s32.totalorder %s34, 0
    %p194 = por %p192, %p193
    %p195 = scmp.ne.s32.totalorder %s181, %s182
    %p196 = scmp.eq.s32.totalorder %s35, 1
    %p197 = por %p195, %p196
    %p199 = scmp.ne.s32.totalorder %s182, %s198
    %p200 = scmp.eq.s32.totalorder %s35, 0
    %p201 = por %p199, %p200
    %s202 = ssub.s32 %s36, %s48
    %p203 = scmp.eq.s32.totalorder %s202, 0
    %s205 = sadd.s32 %s204, 1
    %s206 = scalar_select %p203, %s204, %s205
    %p209 = pneg %p203
    %p210 = scmp.eq.s32.totalorder %s29, 1
    %p211 = por %p209, %p210
    %p212 = scmp.ne.s32.totalorder %s204, %s207
    %p213 = scmp.eq.s32.totalorder %s29, 0
    %p214 = por %p212, %p213
    %p215 = scmp.ne.s32.totalorder %s204, %s207
    %p216 = scmp.eq.s32.totalorder %s34, 1
    %p217 = por %p215, %p216
    %p218 = scmp.ne.s32.totalorder %s207, %s208
    %p219 = scmp.eq.s32.totalorder %s34, 0
    %p220 = por %p218, %p219
    %p221 = scmp.ne.s32.totalorder %s207, %s208
    %p222 = scmp.eq.s32.totalorder %s35, 1
    %p223 = por %p221, %p222
    %p225 = scmp.ne.s32.totalorder %s208, %s224
    %p226 = scmp.eq.s32.totalorder %s35, 0
    %p227 = por %p225, %p226
    %s228 = ssub.s32 %s36, %s48
    %p229 = scmp.eq.s32.totalorder %s228, 0
    %s231 = sadd.s32 %s230, 1
    %s232 = scalar_select %p229, %s230, %s231
    %p235 = pneg %p229
    %p236 = scmp.eq.s32.totalorder %s29, 1
    %p237 = por %p235, %p236
    %p238 = scmp.ne.s32.totalorder %s230, %s233
    %p239 = scmp.eq.s32.totalorder %s29, 0
    %p240 = por %p238, %p239
    %p241 = scmp.ne.s32.totalorder %s230, %s233
    %p242 = scmp.eq.s32.totalorder %s34, 1
    %p243 = por %p241, %p242
    %p244 = scmp.ne.s32.totalorder %s233, %s234
    %p245 = scmp.eq.s32.totalorder %s34, 0
    %p246 = por %p244, %p245
    %p247 = scmp.ne.s32.totalorder %s233, %s234
    %p248 = scmp.eq.s32.totalorder %s35, 1
    %p249 = por %p247, %p248
    %p251 = scmp.ne.s32.totalorder %s234, %s250
    %p252 = scmp.eq.s32.totalorder %s35, 0
    %p253 = por %p251, %p252
    %s254 = ssub.s32 %s36, %s48
    %p255 = scmp.eq.s32.totalorder %s254, 0
    %s257 = sadd.s32 %s256, 1
    %s258 = scalar_select %p255, %s256, %s257
    %p261 = pneg %p255
    %p262 = scmp.eq.s32.totalorder %s29, 1
    %p263 = por %p261, %p262
    %p264 = scmp.ne.s32.totalorder %s256, %s259
    %p265 = scmp.eq.s32.totalorder %s29, 0
    %p266 = por %p264, %p265
    %p267 = scmp.ne.s32.totalorder %s256, %s259
    %p268 = scmp.eq.s32.totalorder %s34, 1
    %p269 = por %p267, %p268
    %p270 = scmp.ne.s32.totalorder %s259, %s260
    %p271 = scmp.eq.s32.totalorder %s34, 0
    %p272 = por %p270, %p271
    %p273 = scmp.ne.s32.totalorder %s259, %s260
    %p274 = scmp.eq.s32.totalorder %s35, 1
    %p275 = por %p273, %p274
    %p277 = scmp.ne.s32.totalorder %s260, %s276
    %p278 = scmp.eq.s32.totalorder %s35, 0
    %p279 = por %p277, %p278
    %s280 = ssub.s32 %s36, %s48
    %p281 = scmp.eq.s32.totalorder %s280, 0
    %s283 = sadd.s32 %s282, 1
    %s284 = scalar_select %p281, %s282, %s283
    %p287 = pneg %p281
    %p288 = scmp.eq.s32.totalorder %s29, 1
    %p289 = por %p287, %p288
    %p290 = scmp.ne.s32.totalorder %s282, %s285
    %p291 = scmp.eq.s32.totalorder %s29, 0
    %p292 = por %p290, %p291
    %p293 = scmp.ne.s32.totalorder %s282, %s285
    %p294 = scmp.eq.s32.totalorder %s34, 1
    %p295 = por %p293, %p294
    %p296 = scmp.ne.s32.totalorder %s285, %s286
    %p297 = scmp.eq.s32.totalorder %s34, 0
    %p298 = por %p296, %p297
    %p299 = scmp.ne.s32.totalorder %s285, %s286
    %p300 = scmp.eq.s32.totalorder %s35, 1
    %p301 = por %p299, %p300
    %p303 = scmp.ne.s32.totalorder %s286, %s302
    %p304 = scmp.eq.s32.totalorder %s35, 0
    %p305 = por %p303, %p304
    %s306 = ssub.s32 %s36, %s48
    %p307 = scmp.eq.s32.totalorder %s306, 0
    %s309 = sadd.s32 %s308, 1
    %s310 = scalar_select %p307, %s308, %s309
    %p313 = pneg %p307
    %p314 = scmp.eq.s32.totalorder %s29, 1
    %p315 = por %p313, %p314
    %p316 = scmp.ne.s32.totalorder %s308, %s311
    %p317 = scmp.eq.s32.totalorder %s29, 0
    %p318 = por %p316, %p317
    %p319 = scmp.ne.s32.totalorder %s308, %s311
    %p320 = scmp.eq.s32.totalorder %s34, 1
    %p321 = por %p319, %p320
    %p322 = scmp.ne.s32.totalorder %s311, %s312
    %p323 = scmp.eq.s32.totalorder %s34, 0
    %p324 = por %p322, %p323
    %p325 = scmp.ne.s32.totalorder %s311, %s312
    %p326 = scmp.eq.s32.totalorder %s35, 1
    %p327 = por %p325, %p326
    %p329 = scmp.ne.s32.totalorder %s312, %s328
    %p330 = scmp.eq.s32.totalorder %s35, 0
    %p331 = por %p329, %p330
    %s332 = ssub.s32 %s36, %s48
    %p333 = scmp.eq.s32.totalorder %s332, 0
    %s335 = sadd.s32 %s334, 1
    %s336 = scalar_select %p333, %s334, %s335
    %p339 = pneg %p333
    %p340 = scmp.eq.s32.totalorder %s29, 1
    %p341 = por %p339, %p340
    %p342 = scmp.ne.s32.totalorder %s334, %s337
    %p343 = scmp.eq.s32.totalorder %s29, 0
    %p344 = por %p342, %p343
    %p345 = scmp.ne.s32.totalorder %s334, %s337
    %p346 = scmp.eq.s32.totalorder %s34, 1
    %p347 = por %p345, %p346
    %p348 = scmp.ne.s32.totalorder %s337, %s338
    %p349 = scmp.eq.s32.totalorder %s34, 0
    %p350 = por %p348, %p349
    %p351 = scmp.ne.s32.totalorder %s337, %s338
    %p352 = scmp.eq.s32.totalorder %s35, 1
    %p353 = por %p351, %p352
    %p355 = scmp.ne.s32.totalorder %s338, %s354
    %p356 = scmp.eq.s32.totalorder %s35, 0
    %p357 = por %p355, %p356
    %s358 = ssub.s32 %s36, %s48
    %p359 = scmp.eq.s32.totalorder %s358, 0
    %s361 = sadd.s32 %s360, 1
    %s362 = scalar_select %p359, %s360, %s361
    %p365 = pneg %p359
    %p366 = scmp.eq.s32.totalorder %s29, 1
    %p367 = por %p365, %p366
    %p368 = scmp.ne.s32.totalorder %s360, %s363
    %p369 = scmp.eq.s32.totalorder %s29, 0
    %p370 = por %p368, %p369
    %p371 = scmp.ne.s32.totalorder %s360, %s363
    %p372 = scmp.eq.s32.totalorder %s34, 1
    %p373 = por %p371, %p372
    %p374 = scmp.ne.s32.totalorder %s363, %s364
    %p375 = scmp.eq.s32.totalorder %s34, 0
    %p376 = por %p374, %p375
    %p377 = scmp.ne.s32.totalorder %s363, %s364
    %p378 = scmp.eq.s32.totalorder %s35, 1
    %p379 = por %p377, %p378
    %p381 = scmp.ne.s32.totalorder %s364, %s380
    %p382 = scmp.eq.s32.totalorder %s35, 0
    %p383 = por %p381, %p382
    %s384 = ssub.s32 %s36, %s48
    %p385 = scmp.eq.s32.totalorder %s384, 0
    %s387 = sadd.s32 %s386, 1
    %s388 = scalar_select %p385, %s386, %s387
    %p391 = pneg %p385
    %p392 = scmp.eq.s32.totalorder %s29, 1
    %p393 = por %p391, %p392
    %p394 = scmp.ne.s32.totalorder %s386, %s389
    %p395 = scmp.eq.s32.totalorder %s29, 0
    %p396 = por %p394, %p395
    %p397 = scmp.ne.s32.totalorder %s386, %s389
    %p398 = scmp.eq.s32.totalorder %s34, 1
    %p399 = por %p397, %p398
    %p400 = scmp.ne.s32.totalorder %s389, %s390
    %p401 = scmp.eq.s32.totalorder %s34, 0
    %p402 = por %p400, %p401
    %p403 = scmp.ne.s32.totalorder %s389, %s390
    %p404 = scmp.eq.s32.totalorder %s35, 1
    %p405 = por %p403, %p404
    %p407 = scmp.ne.s32.totalorder %s390, %s406
    %p408 = scmp.eq.s32.totalorder %s35, 0
    %p409 = por %p407, %p408
    %s410 = ssub.s32 %s36, %s48
    %p411 = scmp.eq.s32.totalorder %s410, 0
    %s413 = sadd.s32 %s412, 1
    %s414 = scalar_select %p411, %s412, %s413
    %p417 = pneg %p411
    %p418 = scmp.eq.s32.totalorder %s29, 1
    %p419 = por %p417, %p418
    %p420 = scmp.ne.s32.totalorder %s412, %s415
    %p421 = scmp.eq.s32.totalorder %s29, 0
    %p422 = por %p420, %p421
    %p423 = scmp.ne.s32.totalorder %s412, %s415
    %p424 = scmp.eq.s32.totalorder %s34, 1
    %p425 = por %p423, %p424
    %p426 = scmp.ne.s32.totalorder %s415, %s416
    %p427 = scmp.eq.s32.totalorder %s34, 0
    %p428 = por %p426, %p427
    %p429 = scmp.ne.s32.totalorder %s415, %s416
    %p430 = scmp.eq.s32.totalorder %s35, 1
    %p431 = por %p429, %p430
    %p433 = scmp.ne.s32.totalorder %s416, %s432
    %p434 = scmp.eq.s32.totalorder %s35, 0
    %p435 = por %p433, %p434
    %s436 = ssub.s32 %s36, %s48
    %p437 = scmp.eq.s32.totalorder %s436, 0
    %s439 = sadd.s32 %s438, 1
    %s440 = scalar_select %p437, %s438, %s439
    %p443 = pneg %p437
    %p444 = scmp.eq.s32.totalorder %s29, 1
    %p445 = por %p443, %p444
    %p446 = scmp.ne.s32.totalorder %s438, %s441
    %p447 = scmp.eq.s32.totalorder %s29, 0
    %p448 = por %p446, %p447
    %p449 = scmp.ne.s32.totalorder %s438, %s441
    %p450 = scmp.eq.s32.totalorder %s34, 1
    %p451 = por %p449, %p450
    %p452 = scmp.ne.s32.totalorder %s441, %s442
    %p453 = scmp.eq.s32.totalorder %s34, 0
    %p454 = por %p452, %p453
    %p455 = scmp.ne.s32.totalorder %s441, %s442
    %p456 = scmp.eq.s32.totalorder %s35, 1
    %p457 = por %p455, %p456
    %p459 = scmp.ne.s32.totalorder %s442, %s458
    %p460 = scmp.eq.s32.totalorder %s35, 0
    %p461 = por %p459, %p460
    %s462 = ssub.s32 %s36, %s48
    %p463 = scmp.eq.s32.totalorder %s462, 0
    %s465 = sadd.s32 %s464, 1
    %s466 = scalar_select %p463, %s464, %s465
    %p469 = pneg %p463
    %p470 = scmp.eq.s32.totalorder %s29, 1
    %p471 = por %p469, %p470
    %p472 = scmp.ne.s32.totalorder %s464, %s467
    %p473 = scmp.eq.s32.totalorder %s29, 0
    %p474 = por %p472, %p473
    %p475 = scmp.ne.s32.totalorder %s464, %s467
    %p476 = scmp.eq.s32.totalorder %s34, 1
    %p477 = por %p475, %p476
    %p478 = scmp.ne.s32.totalorder %s467, %s468
    %p479 = scmp.eq.s32.totalorder %s34, 0
    %p480 = por %p478, %p479
    %p481 = scmp.ne.s32.totalorder %s467, %s468
    %p482 = scmp.eq.s32.totalorder %s35, 1
    %p483 = por %p481, %p482
    %p485 = scmp.ne.s32.totalorder %s468, %s484
    %p486 = scmp.eq.s32.totalorder %s35, 0
    %p487 = por %p485, %p486
    %s488 = ssub.s32 %s36, %s48
    %p489 = scmp.eq.s32.totalorder %s488, 0
    %s491 = sadd.s32 %s490, 1
    %s492 = scalar_select %p489, %s490, %s491
    %p495 = pneg %p489
    %p496 = scmp.eq.s32.totalorder %s29, 1
    %p497 = por %p495, %p496
    %p498 = scmp.ne.s32.totalorder %s490, %s493
    %p499 = scmp.eq.s32.totalorder %s29, 0
    %p500 = por %p498, %p499
    %p501 = scmp.ne.s32.totalorder %s490, %s493
    %p502 = scmp.eq.s32.totalorder %s34, 1
    %p503 = por %p501, %p502
    %p504 = scmp.ne.s32.totalorder %s493, %s494
    %p505 = scmp.eq.s32.totalorder %s34, 0
    %p506 = por %p504, %p505
    %p507 = scmp.ne.s32.totalorder %s493, %s494
    %p508 = scmp.eq.s32.totalorder %s35, 1
    %p509 = por %p507, %p508
    %p511 = scmp.ne.s32.totalorder %s494, %s510
    %p512 = scmp.eq.s32.totalorder %s35, 0
    %p513 = por %p511, %p512
    %s514 = ssub.s32 %s36, %s48
    %p515 = scmp.eq.s32.totalorder %s514, 0
    %s517 = sadd.s32 %s516, 1
    %s518 = scalar_select %p515, %s516, %s517
    %p521 = pneg %p515
    %p522 = scmp.eq.s32.totalorder %s29, 1
    %p523 = por %p521, %p522
    %p524 = scmp.ne.s32.totalorder %s516, %s519
    %p525 = scmp.eq.s32.totalorder %s29, 0
    %p526 = por %p524, %p525
    %p527 = scmp.ne.s32.totalorder %s516, %s519
    %p528 = scmp.eq.s32.totalorder %s34, 1
    %p529 = por %p527, %p528
    %p530 = scmp.ne.s32.totalorder %s519, %s520
    %p531 = scmp.eq.s32.totalorder %s34, 0
    %p532 = por %p530, %p531
    %p533 = scmp.ne.s32.totalorder %s519, %s520
    %p534 = scmp.eq.s32.totalorder %s35, 1
    %p535 = por %p533, %p534
    %p537 = scmp.ne.s32.totalorder %s520, %s536
    %p538 = scmp.eq.s32.totalorder %s35, 0
    %p539 = por %p537, %p538
    %s540 = ssub.s32 %s36, %s48
    %p541 = scmp.eq.s32.totalorder %s540, 0
    %s543 = sadd.s32 %s542, 1
    %s544 = scalar_select %p541, %s542, %s543
    %p547 = pneg %p541
    %p548 = scmp.eq.s32.totalorder %s29, 1
    %p549 = por %p547, %p548
    %p550 = scmp.ne.s32.totalorder %s542, %s545
    %p551 = scmp.eq.s32.totalorder %s29, 0
    %p552 = por %p550, %p551
    %p553 = scmp.ne.s32.totalorder %s542, %s545
    %p554 = scmp.eq.s32.totalorder %s34, 1
    %p555 = por %p553, %p554
    %p556 = scmp.ne.s32.totalorder %s545, %s546
    %p557 = scmp.eq.s32.totalorder %s34, 0
    %p558 = por %p556, %p557
    %p559 = scmp.ne.s32.totalorder %s545, %s546
    %p560 = scmp.eq.s32.totalorder %s35, 1
    %p561 = por %p559, %p560
    %p563 = scmp.ne.s32.totalorder %s546, %s562
    %p564 = scmp.eq.s32.totalorder %s35, 0
    %p565 = por %p563, %p564
    %s566 = ssub.s32 %s36, %s48
    %p567 = scmp.eq.s32.totalorder %s566, 0
    %s569 = sadd.s32 %s568, 1
    %s570 = scalar_select %p567, %s568, %s569
    %p573 = pneg %p567
    %p574 = scmp.eq.s32.totalorder %s29, 1
    %p575 = por %p573, %p574
    %p576 = scmp.ne.s32.totalorder %s568, %s571
    %p577 = scmp.eq.s32.totalorder %s29, 0
    %p578 = por %p576, %p577
    %p579 = scmp.ne.s32.totalorder %s568, %s571
    %p580 = scmp.eq.s32.totalorder %s34, 1
    %p581 = por %p579, %p580
    %p582 = scmp.ne.s32.totalorder %s571, %s572
    %p583 = scmp.eq.s32.totalorder %s34, 0
    %p584 = por %p582, %p583
    %p585 = scmp.ne.s32.totalorder %s571, %s572
    %p586 = scmp.eq.s32.totalorder %s35, 1
    %p587 = por %p585, %p586
    %p589 = scmp.ne.s32.totalorder %s572, %s588
    %p590 = scmp.eq.s32.totalorder %s35, 0
    %p591 = por %p589, %p590
    %s592 = ssub.s32 %s36, %s48
    %p593 = scmp.eq.s32.totalorder %s592, 0
    %s595 = sadd.s32 %s594, 1
    %s596 = scalar_select %p593, %s594, %s595
    %p599 = pneg %p593
    %p600 = scmp.eq.s32.totalorder %s29, 1
    %p601 = por %p599, %p600
    %p602 = scmp.ne.s32.totalorder %s594, %s597
    %p603 = scmp.eq.s32.totalorder %s29, 0
    %p604 = por %p602, %p603
    %p605 = scmp.ne.s32.totalorder %s594, %s597
    %p606 = scmp.eq.s32.totalorder %s34, 1
    %p607 = por %p605, %p606
    %p608 = scmp.ne.s32.totalorder %s597, %s598
    %p609 = scmp.eq.s32.totalorder %s34, 0
    %p610 = por %p608, %p609
    %p611 = scmp.ne.s32.totalorder %s597, %s598
    %p612 = scmp.eq.s32.totalorder %s35, 1
    %p613 = por %p611, %p612
    %p615 = scmp.ne.s32.totalorder %s598, %s614
    %p616 = scmp.eq.s32.totalorder %s35, 0
    %p617 = por %p615, %p616
    %s618 = ssub.s32 %s36, %s48
    %p619 = scmp.eq.s32.totalorder %s618, 0
    %s621 = sadd.s32 %s620, 1
    %s622 = scalar_select %p619, %s620, %s621
    %p625 = pneg %p619
    %p626 = scmp.eq.s32.totalorder %s29, 1
    %p627 = por %p625, %p626
    %p628 = scmp.ne.s32.totalorder %s620, %s623
    %p629 = scmp.eq.s32.totalorder %s29, 0
    %p630 = por %p628, %p629
    %p631 = scmp.ne.s32.totalorder %s620, %s623
    %p632 = scmp.eq.s32.totalorder %s34, 1
    %p633 = por %p631, %p632
    %p634 = scmp.ne.s32.totalorder %s623, %s624
    %p635 = scmp.eq.s32.totalorder %s34, 0
    %p636 = por %p634, %p635
    %p637 = scmp.ne.s32.totalorder %s623, %s624
    %p638 = scmp.eq.s32.totalorder %s35, 1
    %p639 = por %p637, %p638
    %p641 = scmp.ne.s32.totalorder %s624, %s640
    %p642 = scmp.eq.s32.totalorder %s35, 0
    %p643 = por %p641, %p642
    %s644 = ssub.s32 %s36, %s48
    %s645 = ssub.s32 %s37, %s44
    %s646 = sor.u32 %s644, %s645
    %p647 = scmp.eq.s32.totalorder %s646, 0
    %s649 = sadd.s32 %s648, 1
    %s650 = scalar_select %p647, %s648, %s649
    %p653 = pneg %p647
    %p654 = scmp.eq.s32.totalorder %s29, 1
    %p655 = por %p653, %p654
    %p656 = scmp.ne.s32.totalorder %s648, %s651
    %p657 = scmp.eq.s32.totalorder %s29, 0
    %p658 = por %p656, %p657
    %p659 = scmp.ne.s32.totalorder %s648, %s651
    %p660 = scmp.eq.s32.totalorder %s34, 1
    %p661 = por %p659, %p660
    %p662 = scmp.ne.s32.totalorder %s651, %s652
    %p663 = scmp.eq.s32.totalorder %s34, 0
    %p664 = por %p662, %p663
    %p665 = scmp.ne.s32.totalorder %s651, %s652
    %p666 = scmp.eq.s32.totalorder %s35, 1
    %p667 = por %p665, %p666
    %p669 = scmp.ne.s32.totalorder %s652, %s668
    %p670 = scmp.eq.s32.totalorder %s35, 0
    %p671 = por %p669, %p670
    %p672 = scmp.le.s32.totalorder 1, %s29
    %p673 = scmp.lt.s32.totalorder %s29, 3
    %p674 = pnand %p672, %p673
    %p675 = pneg %p674
    // Predicated region
    $region9: #{tpu_custom_call.1} parent=5 // pred_check
      _
    $region10: #{tpu_custom_call.1} parent=5 // pred_check_branch
      %677 = sbr.rel (%p674) target = $region12
    $region11: #{tpu_custom_call.1} parent=5 // pred_region
      %s678 = ssub.s32 %s29, 1
      // Predicated region
      $region13: #{tpu_custom_call.1} parent=11 // pred_check
        %p679 = pneg %p90
      $region14: #{tpu_custom_call.1} parent=11 // pred_check_branch
        %681 = sbr.rel (%p679) target = $region16
      $region15: #{tpu_custom_call.1} parent=11 // pred_region
        _
      $region16: #{tpu_custom_call.1} parent=11 // pred_fallthru
        _
    $region12: #{tpu_custom_call.1} parent=5 // pred_fallthru
      _
    %p682 = scmp.lt.s32.totalorder %s29, 2
    // Predicated region
    $region17: #{tpu_custom_call.1} parent=5 // pred_check
      %p683 = pneg %p682
    $region18: #{tpu_custom_call.1} parent=5 // pred_check_branch
      %685 = sbr.rel (%p683) target = $region20
    $region19: #{tpu_custom_call.1} parent=5 // pred_region
      // Predicated region
      $region21: #{tpu_custom_call.1} parent=19 // pred_check
        %p686 = pneg %p63
      $region22: #{tpu_custom_call.1} parent=19 // pred_check_branch
        %688 = sbr.rel (%p686) target = $region24
      $region23: #{tpu_custom_call.1} parent=19 // pred_region
        %s689 = smul.u32 2, %s37
        %p690 = scmp.lt.s32.totalorder %s36, 1
        %s691 = scalar_select %p690, %s36, 1
        %p692 = scmp.lt.s32.totalorder %s689, 1
        %s693 = scalar_select %p692, %s689, 1
        %s694 = smul.addr %s691, 2
        %s695 = sadd.s32 %s693, %s694
        %s696 = smul.addr %s695, 4
        %s697 = scalar_lea.vmem %s0, %s696
        %s698 = smul.u32 2, %s37
      $region24: #{tpu_custom_call.1} parent=19 // pred_fallthru
        _
      // Predicated region
      $region25: #{tpu_custom_call.1} parent=19 // pred_check
        %p699 = pneg %p110
      $region26: #{tpu_custom_call.1} parent=19 // pred_check_branch
        %701 = sbr.rel (%p699) target = $region28
      $region27: #{tpu_custom_call.1} parent=19 // pred_region
        %p702 = scmp.lt.s32.totalorder %s36, 1
        %s703 = scalar_select %p702, %s36, 1
        %s704 = smul.addr %s703, 4
        %s705 = smul.addr %s704, 4
        %s706 = scalar_lea.vmem %s2, %s705
      $region28: #{tpu_custom_call.1} parent=19 // pred_fallthru
        _
      // Predicated region
      $region29: #{tpu_custom_call.1} parent=19 // pred_check
        %p707 = pneg %p136
      $region30: #{tpu_custom_call.1} parent=19 // pred_check_branch
        %709 = sbr.rel (%p707) target = $region32
      $region31: #{tpu_custom_call.1} parent=19 // pred_region
        %p710 = scmp.lt.s32.totalorder %s36, 1
        %s711 = scalar_select %p710, %s36, 1
        %s712 = smul.addr %s711, 4
        %s713 = smul.addr %s712, 4
        %s714 = scalar_lea.vmem %s3, %s713
      $region32: #{tpu_custom_call.1} parent=19 // pred_fallthru
        _
      // Predicated region
      $region33: #{tpu_custom_call.1} parent=19 // pred_check
        %p715 = pneg %p162
      $region34: #{tpu_custom_call.1} parent=19 // pred_check_branch
        %717 = sbr.rel (%p715) target = $region36
      $region35: #{tpu_custom_call.1} parent=19 // pred_region
        %p718 = scmp.lt.s32.totalorder %s36, 1
        %s719 = scalar_select %p718, %s36, 1
        %s720 = smul.addr %s719, 4
        %s721 = smul.addr %s720, 8
        %s722 = scalar_lea.vmem %s4, %s721
      $region36: #{tpu_custom_call.1} parent=19 // pred_fallthru
        _
      // Predicated region
      $region37: #{tpu_custom_call.1} parent=19 // pred_check
        %p723 = pneg %p188
      $region38: #{tpu_custom_call.1} parent=19 // pred_check_branch
        %725 = sbr.rel (%p723) target = $region40
      $region39: #{tpu_custom_call.1} parent=19 // pred_region
        %p726 = scmp.lt.s32.totalorder %s36, 1
        %s727 = scalar_select %p726, %s36, 1
        %s728 = smul.addr %s727, 4
        %s729 = smul.addr %s728, 4
        %s730 = scalar_lea.vmem %s5, %s729
      $region40: #{tpu_custom_call.1} parent=19 // pred_fallthru
        _
      // Predicated region
      $region41: #{tpu_custom_call.1} parent=19 // pred_check
        %p731 = pneg %p214
      $region42: #{tpu_custom_call.1} parent=19 // pred_check_branch
        %733 = sbr.rel (%p731) target = $region44
      $region43: #{tpu_custom_call.1} parent=19 // pred_region
        %p734 = scmp.lt.s32.totalorder %s36, 1
        %s735 = scalar_select %p734, %s36, 1
        %s736 = smul.addr %s735, 4
        %s737 = smul.addr %s736, 8
        %s738 = scalar_lea.vmem %s6, %s737
      $region44: #{tpu_custom_call.1} parent=19 // pred_fallthru
        _
      // Predicated region
      $region45: #{tpu_custom_call.1} parent=19 // pred_check
        %p739 = pneg %p240
      $region46: #{tpu_custom_call.1} parent=19 // pred_check_branch
        %741 = sbr.rel (%p739) target = $region48
      $region47: #{tpu_custom_call.1} parent=19 // pred_region
        %p742 = scmp.lt.s32.totalorder %s36, 1
        %s743 = scalar_select %p742, %s36, 1
        %s744 = smul.addr %s743, 4
        %s745 = smul.addr %s744, 4
        %s746 = scalar_lea.vmem %s7, %s745
      $region48: #{tpu_custom_call.1} parent=19 // pred_fallthru
        _
      // Predicated region
      $region49: #{tpu_custom_call.1} parent=19 // pred_check
        %p747 = pneg %p266
      $region50: #{tpu_custom_call.1} parent=19 // pred_check_branch
        %749 = sbr.rel (%p747) target = $region52
      $region51: #{tpu_custom_call.1} parent=19 // pred_region
        %p750 = scmp.lt.s32.totalorder %s36, 1
        %s751 = scalar_select %p750, %s36, 1
        %s752 = smul.addr %s751, 4
        %s753 = smul.addr %s752, 8
        %s754 = scalar_lea.vmem %s8, %s753
      $region52: #{tpu_custom_call.1} parent=19 // pred_fallthru
        _
      // Predicated region
      $region53: #{tpu_custom_call.1} parent=19 // pred_check
        %p755 = pneg %p292
      $region54: #{tpu_custom_call.1} parent=19 // pred_check_branch
        %757 = sbr.rel (%p755) target = $region56
      $region55: #{tpu_custom_call.1} parent=19 // pred_region
        %p758 = scmp.lt.s32.totalorder %s36, 1
        %s759 = scalar_select %p758, %s36, 1
        %s760 = smul.addr %s759, 4
        %s761 = smul.addr %s760, 4
        %s762 = scalar_lea.vmem %s9, %s761
      $region56: #{tpu_custom_call.1} parent=19 // pred_fallthru
        _
      // Predicated region
      $region57: #{tpu_custom_call.1} parent=19 // pred_check
        %p763 = pneg %p318
      $region58: #{tpu_custom_call.1} parent=19 // pred_check_branch
        %765 = sbr.rel (%p763) target = $region60
      $region59: #{tpu_custom_call.1} parent=19 // pred_region
        %p766 = scmp.lt.s32.totalorder %s36, 1
        %s767 = scalar_select %p766, %s36, 1
        %s768 = smul.addr %s767, 4
        %s769 = smul.addr %s768, 8
        %s770 = scalar_lea.vmem %s10, %s769
      $region60: #{tpu_custom_call.1} parent=19 // pred_fallthru
        _
      // Predicated region
      $region61: #{tpu_custom_call.1} parent=19 // pred_check
        %p771 = pneg %p344
      $region62: #{tpu_custom_call.1} parent=19 // pred_check_branch
        %773 = sbr.rel (%p771) target = $region64
      $region63: #{tpu_custom_call.1} parent=19 // pred_region
        %p774 = scmp.lt.s32.totalorder %s36, 1
        %s775 = scalar_select %p774, %s36, 1
        %s776 = smul.addr %s775, 4
        %s777 = smul.addr %s776, 4
        %s778 = scalar_lea.vmem %s11, %s777
      $region64: #{tpu_custom_call.1} parent=19 // pred_fallthru
        _
      // Predicated region
      $region65: #{tpu_custom_call.1} parent=19 // pred_check
        %p779 = pneg %p370
      $region66: #{tpu_custom_call.1} parent=19 // pred_check_branch
        %781 = sbr.rel (%p779) target = $region68
      $region67: #{tpu_custom_call.1} parent=19 // pred_region
        %p782 = scmp.lt.s32.totalorder %s36, 1
        %s783 = scalar_select %p782, %s36, 1
        %s784 = smul.addr %s783, 4
        %s785 = smul.addr %s784, 4
        %s786 = scalar_lea.vmem %s12, %s785
      $region68: #{tpu_custom_call.1} parent=19 // pred_fallthru
        _
      // Predicated region
      $region69: #{tpu_custom_call.1} parent=19 // pred_check
        %p787 = pneg %p396
      $region70: #{tpu_custom_call.1} parent=19 // pred_check_branch
        %789 = sbr.rel (%p787) target = $region72
      $region71: #{tpu_custom_call.1} parent=19 // pred_region
        %p790 = scmp.lt.s32.totalorder %s36, 1
        %s791 = scalar_select %p790, %s36, 1
        %s792 = smul.addr %s791, 4
        %s793 = smul.addr %s792, 4
        %s794 = scalar_lea.vmem %s13, %s793
      $region72: #{tpu_custom_call.1} parent=19 // pred_fallthru
        _
      // Predicated region
      $region73: #{tpu_custom_call.1} parent=19 // pred_check
        %p795 = pneg %p422
      $region74: #{tpu_custom_call.1} parent=19 // pred_check_branch
        %797 = sbr.rel (%p795) target = $region76
      $region75: #{tpu_custom_call.1} parent=19 // pred_region
        %p798 = scmp.lt.s32.totalorder %s36, 1
        %s799 = scalar_select %p798, %s36, 1
        %s800 = smul.addr %s799, 4
        %s801 = smul.addr %s800, 8
        %s802 = scalar_lea.vmem %s14, %s801
      $region76: #{tpu_custom_call.1} parent=19 // pred_fallthru
        _
      // Predicated region
      $region77: #{tpu_custom_call.1} parent=19 // pred_check
        %p803 = pneg %p448
      $region78: #{tpu_custom_call.1} parent=19 // pred_check_branch
        %805 = sbr.rel (%p803) target = $region80
      $region79: #{tpu_custom_call.1} parent=19 // pred_region
        %p806 = scmp.lt.s32.totalorder %s36, 1
        %s807 = scalar_select %p806, %s36, 1
        %s808 = smul.addr %s807, 4
        %s809 = smul.addr %s808, 4
        %s810 = scalar_lea.vmem %s15, %s809
      $region80: #{tpu_custom_call.1} parent=19 // pred_fallthru
        _
      // Predicated region
      $region81: #{tpu_custom_call.1} parent=19 // pred_check
        %p811 = pneg %p474
      $region82: #{tpu_custom_call.1} parent=19 // pred_check_branch
        %813 = sbr.rel (%p811) target = $region84
      $region83: #{tpu_custom_call.1} parent=19 // pred_region
        %p814 = scmp.lt.s32.totalorder %s36, 1
        %s815 = scalar_select %p814, %s36, 1
        %s816 = smul.addr %s815, 4
        %s817 = smul.addr %s816, 8
        %s818 = scalar_lea.vmem %s16, %s817
      $region84: #{tpu_custom_call.1} parent=19 // pred_fallthru
        _
      // Predicated region
      $region85: #{tpu_custom_call.1} parent=19 // pred_check
        %p819 = pneg %p500
      $region86: #{tpu_custom_call.1} parent=19 // pred_check_branch
        %821 = sbr.rel (%p819) target = $region88
      $region87: #{tpu_custom_call.1} parent=19 // pred_region
        %p822 = scmp.lt.s32.totalorder %s36, 1
        %s823 = scalar_select %p822, %s36, 1
        %s824 = smul.addr %s823, 4
        %s825 = smul.addr %s824, 4
        %s826 = scalar_lea.vmem %s17, %s825
      $region88: #{tpu_custom_call.1} parent=19 // pred_fallthru
        _
      // Predicated region
      $region89: #{tpu_custom_call.1} parent=19 // pred_check
        %p827 = pneg %p526
      $region90: #{tpu_custom_call.1} parent=19 // pred_check_branch
        %829 = sbr.rel (%p827) target = $region92
      $region91: #{tpu_custom_call.1} parent=19 // pred_region
        %p830 = scmp.lt.s32.totalorder %s36, 1
        %s831 = scalar_select %p830, %s36, 1
        %s832 = smul.addr %s831, 4
        %s833 = smul.addr %s832, 8
        %s834 = scalar_lea.vmem %s18, %s833
      $region92: #{tpu_custom_call.1} parent=19 // pred_fallthru
        _
      // Predicated region
      $region93: #{tpu_custom_call.1} parent=19 // pred_check
        %p835 = pneg %p552
      $region94: #{tpu_custom_call.1} parent=19 // pred_check_branch
        %837 = sbr.rel (%p835) target = $region96
      $region95: #{tpu_custom_call.1} parent=19 // pred_region
        %p838 = scmp.lt.s32.totalorder %s36, 1
        %s839 = scalar_select %p838, %s36, 1
        %s840 = smul.addr %s839, 2
        %s841 = scalar_lea.vmem %s19, %s840
      $region96: #{tpu_custom_call.1} parent=19 // pred_fallthru
        _
      // Predicated region
      $region97: #{tpu_custom_call.1} parent=19 // pred_check
        %p842 = pneg %p578
      $region98: #{tpu_custom_call.1} parent=19 // pred_check_branch
        %844 = sbr.rel (%p842) target = $region100
      $region99: #{tpu_custom_call.1} parent=19 // pred_region
        %p845 = scmp.lt.s32.totalorder %s36, 1
        %s846 = scalar_select %p845, %s36, 1
        %s847 = smul.addr %s846, 2
        %s848 = scalar_lea.vmem %s20, %s847
      $region100: #{tpu_custom_call.1} parent=19 // pred_fallthru
        _
      // Predicated region
      $region101: #{tpu_custom_call.1} parent=19 // pred_check
        %p849 = pneg %p604
      $region102: #{tpu_custom_call.1} parent=19 // pred_check_branch
        %851 = sbr.rel (%p849) target = $region104
      $region103: #{tpu_custom_call.1} parent=19 // pred_region
        %p852 = scmp.lt.s32.totalorder %s36, 1
        %s853 = scalar_select %p852, %s36, 1
        %s854 = smul.addr %s853, 2
        %s855 = scalar_lea.vmem %s21, %s854
      $region104: #{tpu_custom_call.1} parent=19 // pred_fallthru
        _
      // Predicated region
      $region105: #{tpu_custom_call.1} parent=19 // pred_check
        %p856 = pneg %p630
      $region106: #{tpu_custom_call.1} parent=19 // pred_check_branch
        %858 = sbr.rel (%p856) target = $region108
      $region107: #{tpu_custom_call.1} parent=19 // pred_region
        %p859 = scmp.lt.s32.totalorder %s36, 1
        %s860 = scalar_select %p859, %s36, 1
        %s861 = smul.addr %s860, 4
        %s862 = scalar_lea.vmem %s22, %s861
      $region108: #{tpu_custom_call.1} parent=19 // pred_fallthru
        _
    $region20: #{tpu_custom_call.1} parent=5 // pred_fallthru
      _
    %p863 = scmp.le.s32.totalorder 1, %s29
    %p864 = scmp.lt.s32.totalorder %s29, 3
    %p865 = pnand %p863, %p864
    %p866 = pneg %p865
    // Predicated region
    $region109: #{tpu_custom_call.1} parent=5 // pred_check
      _
    $region110: #{tpu_custom_call.1} parent=5 // pred_check_branch
      %868 = sbr.rel (%p865) target = $region112
    $region111: #{tpu_custom_call.1} parent=5 // pred_region
      %s869 = ssub.s32 %s29, 1
      %s870 = smul.u32 2, %s39
      %p871 = scmp.lt.s32.totalorder %s38, 1
      %s872 = scalar_select %p871, %s38, 1
      %p873 = scmp.lt.s32.totalorder %s870, 1
      %s874 = scalar_select %p873, %s870, 1
      %s875 = smul.addr %s872, 2
      %s876 = sadd.s32 %s874, %s875
      %s877 = smul.addr %s876, 4
      %s878 = scalar_lea.vmem %s0, %s877
      %p879 = pneg %p69
      %p880 = pneg %p66
      %p881 = pneg %p90
      %p882 = pneg %p87
      %p883 = scmp.lt.s32.totalorder %s38, 1
      %s884 = scalar_select %p883, %s38, 1
      %s885 = smul.addr %s884, 4
      %s886 = smul.addr %s885, 4
      %s887 = scalar_lea.vmem %s2, %s886
      %p888 = pneg %p116
      %p889 = pneg %p113
      %p890 = scmp.lt.s32.totalorder %s38, 1
      %s891 = scalar_select %p890, %s38, 1
      %s892 = smul.addr %s891, 4
      %s893 = smul.addr %s892, 4
      %s894 = scalar_lea.vmem %s3, %s893
      %p895 = pneg %p142
      %p896 = pneg %p139
      %p897 = scmp.lt.s32.totalorder %s38, 1
      %s898 = scalar_select %p897, %s38, 1
      %s899 = smul.addr %s898, 4
      %s900 = smul.addr %s899, 8
      %s901 = scalar_lea.vmem %s4, %s900
      %p902 = pneg %p168
      %p903 = pneg %p165
      %p904 = scmp.lt.s32.totalorder %s38, 1
      %s905 = scalar_select %p904, %s38, 1
      %s906 = smul.addr %s905, 4
      %s907 = smul.addr %s906, 4
      %s908 = scalar_lea.vmem %s5, %s907
      %p909 = pneg %p194
      %p910 = pneg %p191
      %p911 = scmp.lt.s32.totalorder %s38, 1
      %s912 = scalar_select %p911, %s38, 1
      %s913 = smul.addr %s912, 4
      %s914 = smul.addr %s913, 8
      %s915 = scalar_lea.vmem %s6, %s914
      %p916 = pneg %p220
      %p917 = pneg %p217
      %p918 = scmp.lt.s32.totalorder %s38, 1
      %s919 = scalar_select %p918, %s38, 1
      %s920 = smul.addr %s919, 4
      %s921 = smul.addr %s920, 4
      %s922 = scalar_lea.vmem %s7, %s921
      %p923 = pneg %p246
      %p924 = pneg %p243
      %p925 = scmp.lt.s32.totalorder %s38, 1
      %s926 = scalar_select %p925, %s38, 1
      %s927 = smul.addr %s926, 4
      %s928 = smul.addr %s927, 8
      %s929 = scalar_lea.vmem %s8, %s928
      %p930 = pneg %p272
      %p931 = pneg %p269
      %p932 = scmp.lt.s32.totalorder %s38, 1
      %s933 = scalar_select %p932, %s38, 1
      %s934 = smul.addr %s933, 4
      %s935 = smul.addr %s934, 4
      %s936 = scalar_lea.vmem %s9, %s935
      %p937 = pneg %p298
      %p938 = pneg %p295
      %p939 = scmp.lt.s32.totalorder %s38, 1
      %s940 = scalar_select %p939, %s38, 1
      %s941 = smul.addr %s940, 4
      %s942 = smul.addr %s941, 8
      %s943 = scalar_lea.vmem %s10, %s942
      %p944 = pneg %p324
      %p945 = pneg %p321
      %p946 = scmp.lt.s32.totalorder %s38, 1
      %s947 = scalar_select %p946, %s38, 1
      %s948 = smul.addr %s947, 4
      %s949 = smul.addr %s948, 4
      %s950 = scalar_lea.vmem %s11, %s949
      %p951 = pneg %p350
      %p952 = pneg %p347
      %p953 = scmp.lt.s32.totalorder %s38, 1
      %s954 = scalar_select %p953, %s38, 1
      %s955 = smul.addr %s954, 4
      %s956 = smul.addr %s955, 4
      %s957 = scalar_lea.vmem %s12, %s956
      %p958 = pneg %p376
      %p959 = pneg %p373
      %p960 = scmp.lt.s32.totalorder %s38, 1
      %s961 = scalar_select %p960, %s38, 1
      %s962 = smul.addr %s961, 4
      %s963 = smul.addr %s962, 4
      %s964 = scalar_lea.vmem %s13, %s963
      %p965 = pneg %p402
      %p966 = pneg %p399
      %p967 = scmp.lt.s32.totalorder %s38, 1
      %s968 = scalar_select %p967, %s38, 1
      %s969 = smul.addr %s968, 4
      %s970 = smul.addr %s969, 8
      %s971 = scalar_lea.vmem %s14, %s970
      %p972 = pneg %p428
      %p973 = pneg %p425
      %p974 = scmp.lt.s32.totalorder %s38, 1
      %s975 = scalar_select %p974, %s38, 1
      %s976 = smul.addr %s975, 4
      %s977 = smul.addr %s976, 4
      %s978 = scalar_lea.vmem %s15, %s977
      %p979 = pneg %p454
      %p980 = pneg %p451
      %p981 = scmp.lt.s32.totalorder %s38, 1
      %s982 = scalar_select %p981, %s38, 1
      %s983 = smul.addr %s982, 4
      %s984 = smul.addr %s983, 8
      %s985 = scalar_lea.vmem %s16, %s984
      %p986 = pneg %p480
      %p987 = pneg %p477
      %p988 = scmp.lt.s32.totalorder %s38, 1
      %s989 = scalar_select %p988, %s38, 1
      %s990 = smul.addr %s989, 4
      %s991 = smul.addr %s990, 4
      %s992 = scalar_lea.vmem %s17, %s991
      %p993 = pneg %p506
      %p994 = pneg %p503
      %p995 = scmp.lt.s32.totalorder %s38, 1
      %s996 = scalar_select %p995, %s38, 1
      %s997 = smul.addr %s996, 4
      %s998 = smul.addr %s997, 8
      %s999 = scalar_lea.vmem %s18, %s998
      %p1000 = pneg %p532
      %p1001 = pneg %p529
      %p1002 = scmp.lt.s32.totalorder %s38, 1
      %s1003 = scalar_select %p1002, %s38, 1
      %s1004 = smul.addr %s1003, 2
      %s1005 = scalar_lea.vmem %s19, %s1004
      %p1006 = pneg %p558
      %p1007 = pneg %p555
      %p1008 = scmp.lt.s32.totalorder %s38, 1
      %s1009 = scalar_select %p1008, %s38, 1
      %s1010 = smul.addr %s1009, 2
      %s1011 = scalar_lea.vmem %s20, %s1010
      %p1012 = pneg %p584
      %p1013 = pneg %p581
      %p1014 = scmp.lt.s32.totalorder %s38, 1
      %s1015 = scalar_select %p1014, %s38, 1
      %s1016 = smul.addr %s1015, 2
      %s1017 = scalar_lea.vmem %s21, %s1016
      %p1018 = pneg %p610
      %p1019 = pneg %p607
      %p1020 = scmp.lt.s32.totalorder %s38, 1
      %s1021 = scalar_select %p1020, %s38, 1
      %s1022 = smul.addr %s1021, 4
      %s1023 = scalar_lea.vmem %s22, %s1022
      %p1024 = pneg %p636
      %p1025 = pneg %p633
      %p1026 = pneg %p664
      %p1027 = pneg %p661
      %s1028 = smul.u32 2, %s39
      %p1029 = scmp.lt.s32.totalorder %s38, 1
      %s1030 = scalar_select %p1029, %s38, 1
      %p1031 = scmp.lt.s32.totalorder %s1028, 1
      %s1032 = scalar_select %p1031, %s1028, 1
      %s1033 = smul.addr %s1030, 2
      %s1034 = sadd.s32 %s1032, %s1033
      %s1035 = smul.addr %s1034, 4
      %s1036 = scalar_lea.vmem %s23, %s1035
      %s1037 = smul.u32 2, %s39
      %p1038 = scmp.lt.s32.totalorder %s38, 1
      %s1039 = scalar_select %p1038, %s38, 1
      %p1040 = scmp.lt.s32.totalorder %s1037, 1
      %s1041 = scalar_select %p1040, %s1037, 1
      %s1042 = smul.addr %s1039, 2
      %s1043 = sadd.s32 %s1041, %s1042
      %s1044 = smul.addr %s1043, 4
      %s1045 = scalar_lea.vmem %s0, %s1044
      %s1046 = smul.u32 2, %s39
      %p1047 = scmp.lt.s32.totalorder %s38, 1
      %s1048 = scalar_select %p1047, %s38, 1
      %s1049 = smul.addr %s1048, 4
      %s1050 = smul.addr %s1049, 4
      %s1051 = scalar_lea.vmem %s2, %s1050
      %p1052 = scmp.lt.s32.totalorder %s38, 1
      %s1053 = scalar_select %p1052, %s38, 1
      %s1054 = smul.addr %s1053, 4
      %s1055 = smul.addr %s1054, 4
      %s1056 = scalar_lea.vmem %s3, %s1055
      %p1057 = scmp.lt.s32.totalorder %s38, 1
      %s1058 = scalar_select %p1057, %s38, 1
      %s1059 = smul.addr %s1058, 4
      %s1060 = smul.addr %s1059, 8
      %s1061 = scalar_lea.vmem %s4, %s1060
      %p1062 = scmp.lt.s32.totalorder %s38, 1
      %s1063 = scalar_select %p1062, %s38, 1
      %s1064 = smul.addr %s1063, 4
      %s1065 = smul.addr %s1064, 4
      %s1066 = scalar_lea.vmem %s5, %s1065
      %p1067 = scmp.lt.s32.totalorder %s38, 1
      %s1068 = scalar_select %p1067, %s38, 1
      %s1069 = smul.addr %s1068, 4
      %s1070 = smul.addr %s1069, 8
      %s1071 = scalar_lea.vmem %s6, %s1070
      %p1072 = scmp.lt.s32.totalorder %s38, 1
      %s1073 = scalar_select %p1072, %s38, 1
      %s1074 = smul.addr %s1073, 4
      %s1075 = smul.addr %s1074, 4
      %s1076 = scalar_lea.vmem %s7, %s1075
      %p1077 = scmp.lt.s32.totalorder %s38, 1
      %s1078 = scalar_select %p1077, %s38, 1
      %s1079 = smul.addr %s1078, 4
      %s1080 = smul.addr %s1079, 8
      %s1081 = scalar_lea.vmem %s8, %s1080
      %p1082 = scmp.lt.s32.totalorder %s38, 1
      %s1083 = scalar_select %p1082, %s38, 1
      %s1084 = smul.addr %s1083, 4
      %s1085 = smul.addr %s1084, 4
      %s1086 = scalar_lea.vmem %s9, %s1085
      %p1087 = scmp.lt.s32.totalorder %s38, 1
      %s1088 = scalar_select %p1087, %s38, 1
      %s1089 = smul.addr %s1088, 4
      %s1090 = smul.addr %s1089, 8
      %s1091 = scalar_lea.vmem %s10, %s1090
      %p1092 = scmp.lt.s32.totalorder %s38, 1
      %s1093 = scalar_select %p1092, %s38, 1
      %s1094 = smul.addr %s1093, 4
      %s1095 = smul.addr %s1094, 4
      %s1096 = scalar_lea.vmem %s11, %s1095
      %p1097 = scmp.lt.s32.totalorder %s38, 1
      %s1098 = scalar_select %p1097, %s38, 1
      %s1099 = smul.addr %s1098, 4
      %s1100 = smul.addr %s1099, 4
      %s1101 = scalar_lea.vmem %s12, %s1100
      %p1102 = scmp.lt.s32.totalorder %s38, 1
      %s1103 = scalar_select %p1102, %s38, 1
      %s1104 = smul.addr %s1103, 4
      %s1105 = smul.addr %s1104, 4
      %s1106 = scalar_lea.vmem %s13, %s1105
      %p1107 = scmp.lt.s32.totalorder %s38, 1
      %s1108 = scalar_select %p1107, %s38, 1
      %s1109 = smul.addr %s1108, 4
      %s1110 = smul.addr %s1109, 8
      %s1111 = scalar_lea.vmem %s14, %s1110
      %p1112 = scmp.lt.s32.totalorder %s38, 1
      %s1113 = scalar_select %p1112, %s38, 1
      %s1114 = smul.addr %s1113, 4
      %s1115 = smul.addr %s1114, 4
      %s1116 = scalar_lea.vmem %s15, %s1115
      %p1117 = scmp.lt.s32.totalorder %s38, 1
      %s1118 = scalar_select %p1117, %s38, 1
      %s1119 = smul.addr %s1118, 4
      %s1120 = smul.addr %s1119, 8
      %s1121 = scalar_lea.vmem %s16, %s1120
      %p1122 = scmp.lt.s32.totalorder %s38, 1
      %s1123 = scalar_select %p1122, %s38, 1
      %s1124 = smul.addr %s1123, 4
      %s1125 = smul.addr %s1124, 4
      %s1126 = scalar_lea.vmem %s17, %s1125
      %p1127 = scmp.lt.s32.totalorder %s38, 1
      %s1128 = scalar_select %p1127, %s38, 1
      %s1129 = smul.addr %s1128, 4
      %s1130 = smul.addr %s1129, 8
      %s1131 = scalar_lea.vmem %s18, %s1130
      %p1132 = scmp.lt.s32.totalorder %s38, 1
      %s1133 = scalar_select %p1132, %s38, 1
      %s1134 = smul.addr %s1133, 2
      %s1135 = scalar_lea.vmem %s19, %s1134
      %p1136 = scmp.lt.s32.totalorder %s38, 1
      %s1137 = scalar_select %p1136, %s38, 1
      %s1138 = smul.addr %s1137, 2
      %s1139 = scalar_lea.vmem %s20, %s1138
      %p1140 = scmp.lt.s32.totalorder %s38, 1
      %s1141 = scalar_select %p1140, %s38, 1
      %s1142 = smul.addr %s1141, 2
      %s1143 = scalar_lea.vmem %s21, %s1142
      %p1144 = scmp.lt.s32.totalorder %s38, 1
      %s1145 = scalar_select %p1144, %s38, 1
      %s1146 = smul.addr %s1145, 4
      %s1147 = scalar_lea.vmem %s22, %s1146
      %s1148 = smul.u32 2, %s39
      %p1149 = scmp.lt.s32.totalorder %s38, 1
      %s1150 = scalar_select %p1149, %s38, 1
      %p1151 = scmp.lt.s32.totalorder %s1148, 1
      %s1152 = scalar_select %p1151, %s1148, 1
      %s1153 = smul.addr %s1150, 2
      %s1154 = sadd.s32 %s1152, %s1153
      %s1155 = smul.addr %s1154, 4
      %s1156 = scalar_lea.vmem %s23, %s1155
      %s1157 = smul.u32 2, %s39
      %v1159 = vld [vmem:[%s1045] sm:$0x77]
      %v1160 = vld [vmem:[%s1] sm:$0xff]
      %v1161 = vld [vmem:[%s1 + $0x8] sm:$0xf]
      %1163 = vst [vmem:[#allocation1] ss:$2 sm:$0xff] %v1159
      %v1164 = vld.sshfl [vmem:[#allocation1] sm:$0xff pattern:$0x75316420]
      %v1165 = vld.sshfl [vmem:[#allocation1 + $0x8] sm:$0xff pattern:$0x75316420]
      %vm1166 = vcmask 23552
      %v1168 = vsel %vm1166, %v1160, 0
      %v1171 = vsel %vm1166, %v1161, 0
      %vm1173 = vcmask 1042432
      %v1174 = vsel %vm1173, %v1164, 0
      %v1176 = vsel %vm1173, %v1165, 0
      %1178 = vmatpush.msra.mxu0 0.0
      %1179 = vmatpush.msra.mxu0 0.0
      %1180 = vmatpush.msra.mxu0 0.0
      %1181 = vmatpush.msra.mxu0 0.0
      %1182 = vmatpush.msra.mxu0 0.0
      %1183 = vmatpush.msra.mxu0 0.0
      %1184 = vmatpush.msra.mxu0 0.0
      %1185 = vmatpush.msra.mxu0 0.0
      %1186 = vmatpush.msra.mxu0 0.0
      %1187 = vmatpush.msra.mxu0 0.0
      %1188 = vmatpush.msra.mxu0 0.0
      %1189 = vmatpush.msra.mxu0 0.0
      %1190 = vmatpush.msra.mxu0 0.0
      %1191 = vmatpush.msra.mxu0 0.0
      %1192 = vmatpush.msra.mxu0 0.0
      %1193 = vmatpush.msra.mxu0 %v1174
      %1194 = vmatmul.f32.gmra.mxu0 %v1168
      %v1195 = vpop.f32.mrf.mxu0
      %v1196 = vadd.f32 0.0, %v1195
      %1197 = vmatmul.f32.gmra.mxu0 %v1171
      %v1198 = vpop.f32.mrf.mxu0
      %v1199 = vadd.f32 0.0, %v1198
      %1200 = vdwg.mxu0
      %1201 = vmatpush.msra.mxu0 0.0
      %1202 = vmatpush.msra.mxu0 0.0
      %1203 = vmatpush.msra.mxu0 0.0
      %1204 = vmatpush.msra.mxu0 0.0
      %1205 = vmatpush.msra.mxu0 0.0
      %1206 = vmatpush.msra.mxu0 0.0
      %1207 = vmatpush.msra.mxu0 0.0
      %1208 = vmatpush.msra.mxu0 0.0
      %1209 = vmatpush.msra.mxu0 0.0
      %1210 = vmatpush.msra.mxu0 0.0
      %1211 = vmatpush.msra.mxu0 0.0
      %1212 = vmatpush.msra.mxu0 0.0
      %1213 = vmatpush.msra.mxu0 0.0
      %1214 = vmatpush.msra.mxu0 0.0
      %1215 = vmatpush.msra.mxu0 0.0
      %1216 = vmatpush.msra.mxu0 %v1176
      %1217 = vmatmul.f32.gmra.mxu0 %v1168
      %v1218 = vpop.f32.mrf.mxu0
      %v1219 = vadd.f32 0.0, %v1218
      %1220 = vmatmul.f32.gmra.mxu0 %v1171
      %v1221 = vpop.f32.mrf.mxu0
      %v1222 = vadd.f32 0.0, %v1221
      %1223 = vdwg.mxu0
      %v1224 = vand.u32 2147483647, %v1196
      %vm1225 = vcmp.le.f32.partialorder %v1224, 0.7853982
      %vm1226 = vcmp.lt.s32.totalorder %v1196, 0
      %v1227 = vand.u32 %v1196, 2139095040
      %v1228 = vshrl.u32 %v1227, 23
      %v1229 = vsub.s32 %v1228, 127
      %v1230 = vand.u32 2147483647, %v1196
      %v1231 = vand.u32 %v1230, 8388607
      %v1232 = vor.u32 %v1231, 8388608
      %v1233 = vsub.s32 0, %v1232
      %v1234 = vadd.s32 %v1229, 1
      %vm1235 = vcmp.gt.s32.totalorder %v1234, 0
      %v1236 = vsel %vm1235, %v1234, 0
      %v1237 = vshrl.u32 %v1236, 5
      %v1238 = vand.u32 %v1236, 31
      %v1239 = vsub.s32 32, %v1238
      %v1240 = vshrl.u32 683565275, %v1239
      %v1241 = vshll.u32 683565275, %v1238
      %v1242 = vshrl.u32 2475754826, %v1239
      %v1243 = vor.u32 %v1241, %v1242
      %v1244 = vshll.u32 2475754826, %v1238
      %v1245 = vshrl.u32 2131351028, %v1239
      %v1246 = vor.u32 %v1244, %v1245
      %v1247 = vshll.u32 2131351028, %v1238
      %v1248 = vshrl.u32 2102212464, %v1239
      %v1249 = vor.u32 %v1247, %v1248
      %v1250 = vshll.u32 2102212464, %v1238
      %v1251 = vshrl.u32 920167782, %v1239
      %v1252 = vor.u32 %v1250, %v1251
      %v1253 = vshll.u32 920167782, %v1238
      %v1254 = vshrl.u32 1326507024, %v1239
      %v1255 = vor.u32 %v1253, %v1254
      %vm1256 = vcmp.lt.s32.totalorder %v1237, 1
      %vm1257 = vcmp.lt.s32.totalorder %v1237, 2
      %vm1258 = vcmp.lt.s32.totalorder %v1237, 3
      %vm1259 = vcmp.lt.s32.totalorder %v1237, 4
      %v1260 = vsel %vm1256, %v1240, %v1243
      %v1261 = vsel %vm1259, %v1249, 2102212464
      %v1262 = vsel %vm1258, %v1246, %v1261
      %v1263 = vsel %vm1257, %v1260, %v1262
      %v1264 = vsel %vm1256, %v1243, %v1246
      %v1265 = vsel %vm1259, %v1252, 920167782
      %v1266 = vsel %vm1258, %v1249, %v1265
      %v1267 = vsel %vm1257, %v1264, %v1266
      %v1268 = vsel %vm1256, %v1246, %v1249
      %v1269 = vsel %vm1259, %v1255, 1326507024
      %v1270 = vsel %vm1258, %v1252, %v1269
      %v1271 = vsel %vm1257, %v1268, %v1270
      %v1272 = vshll.u32 %v1232, 8
      %v1273 = vand.u32 %v1272, 65535
      %v1274 = vshrl.u32 %v1272, 16
      %v1275 = vand.u32 %v1271, 65535
      %v1276 = vshrl.u32 %v1271, 16
      %v1277 = vmul.u32 %v1273, %v1275
      %v1278 = vmul.u32 %v1273, %v1276
      %v1279 = vmul.u32 %v1274, %v1275
      %v1280 = vmul.u32 %v1274, %v1276
      %v1281 = vshll.u32 %v1278, 16
      %v1282 = vshrl.u32 %v1278, 16
      %v1283 = vshll.u32 %v1279, 16
      %v1284 = vshrl.u32 %v1279, 16
      %vm1285 = vc.u32 %v1277, %v1281
      %v1286 = vsel %vm1285, 1, 0
      %v1287 = vadd.s32 %v1277, %v1281
      %v1288 = vadd.s32 %v1280, %v1286
      %vm1289 = vc.u32 %v1287, %v1283
      %v1290 = vsel %vm1289, 1, 0
      %v1291 = vadd.s32 %v1287, %v1283
      %v1292 = vadd.s32 %v1288, %v1290
      %v1293 = vadd.s32 %v1292, %v1282
      %v1294 = vadd.s32 %v1293, %v1284
      %v1295 = vand.u32 %v1272, 65535
      %v1296 = vshrl.u32 %v1272, 16
      %v1297 = vand.u32 %v1267, 65535
      %v1298 = vshrl.u32 %v1267, 16
      %v1299 = vmul.u32 %v1295, %v1297
      %v1300 = vmul.u32 %v1295, %v1298
      %v1301 = vmul.u32 %v1296, %v1297
      %v1302 = vmul.u32 %v1296, %v1298
      %v1303 = vshll.u32 %v1300, 16
      %v1304 = vshrl.u32 %v1300, 16
      %v1305 = vshll.u32 %v1301, 16
      %v1306 = vshrl.u32 %v1301, 16
      %vm1307 = vc.u32 %v1299, %v1303
      %v1308 = vsel %vm1307, 1, 0
      %v1309 = vadd.s32 %v1299, %v1303
      %v1310 = vadd.s32 %v1302, %v1308
      %vm1311 = vc.u32 %v1309, %v1305
      %v1312 = vsel %vm1311, 1, 0
      %v1313 = vadd.s32 %v1309, %v1305
      %v1314 = vadd.s32 %v1310, %v1312
      %v1315 = vadd.s32 %v1314, %v1304
      %v1316 = vadd.s32 %v1315, %v1306
      %v1317 = vmul.u32 %v1272, %v1263
      %v1318 = vadd.s32 %v1294, %v1313
      %vm1319 = vc.u32 %v1294, %v1313
      %v1320 = vadd.s32 %v1316, 1
      %v1321 = vsel %vm1319, %v1320, %v1316
      %v1322 = vadd.s32 %v1317, %v1321
      %v1323 = vadd.s32 %v1322, 536870912
      %v1324 = vshrl.u32 %v1323, 30
      %v1325 = vshll.u32 %v1324, 30
      %v1326 = vsub.s32 %v1322, %v1325
      %vm1327 = vcmp.lt.s32.totalorder %v1326, 0
      %v1328 = vsub.s32 0, %v1326
      %v1329 = vsel %vm1327, %v1328, %v1326
      %v1330 = vclz %v1329
      %v1331 = vsub.s32 %v1330, 2
      %vm1332 = vcmp.gt.s32.totalorder 0, %v1331
      %v1333 = vsel %vm1332, 0, %v1331
      %v1334 = vsub.s32 32, %v1333
      %v1335 = vshll.u32 %v1326, %v1333
      %v1336 = vshrl.u32 %v1318, %v1334
      %v1337 = vor.u32 %v1335, %v1336
      %v1338 = vsub.s32 4294967266, %v1333
      %v1339 = vadd.s32 %v1338, 127
      %v1340 = vshll.u32 %v1339, 23
      %v1341 = vor.u32 4788187, %v1340
      %v1342 = vand.u32 2147483647, %v1341
      %v1344 = vcvt.s32.f32 %v1337
      %v1345 = vmul.f32 %v1344, %v1342
      %v1346 = vxor.u32 %v1345, 2147483648
      %v1347 = vsel %vm1226, %v1346, %v1345
      %v1348 = vsub.s32 4, %v1324
      %v1349 = vsel %vm1226, %v1348, %v1324
      %v1350 = vsel %vm1225, %v1196, %v1347
      %v1351 = vsel %vm1225, 0, %v1349
      %v1352 = vmul.f32 %v1350, %v1350
      %v1353 = vmul.f32 %v1352, -0.001358992
      %v1354 = vadd.f32 %v1353, 0.041655596
      %v1355 = vmul.f32 %v1352, %v1354
      %v1356 = vadd.f32 %v1355, -0.4999988
      %v1357 = vmul.f32 %v1352, %v1356
      %v1358 = vadd.f32 1.0, %v1357
      %v1359 = vmul.f32 %v1350, %v1350
      %v1360 = vmul.f32 %v1359, -0.00019511016
      %v1361 = vadd.f32 %v1360, 0.008332121
      %v1362 = vmul.f32 %v1359, %v1361
      %v1363 = vadd.f32 %v1362, -0.16666654
      %v1364 = vmul.f32 %v1359, %v1363
      %v1365 = vadd.f32 %v1364, 1.0
      %v1366 = vmul.f32 %v1365, %v1350
      %vm1367 = vweird.f32 %v1196
      %v1368 = vadd.s32 %v1351, 3
      %v1369 = vand.u32 %v1368, 3
      %vm1370 = vcmp.lt.s32.totalorder %v1369, 2
      %vm1371 = vcmp.eq.s32.totalorder %v1369, 0
      %v1372 = vxor.u32 %v1366, 2147483648
      %v1373 = vsel %vm1371, %v1358, %v1372
      %vm1374 = vcmp.eq.s32.totalorder %v1369, 2
      %v1375 = vxor.u32 %v1358, 2147483648
      %v1376 = vsel %vm1374, %v1375, %v1366
      %v1377 = vsel %vm1370, %v1373, %v1376
      %v1378 = vsel %vm1367, nan, %v1377
      %v1379 = vand.u32 2147483647, %v1219
      %vm1380 = vcmp.le.f32.partialorder %v1379, 0.7853982
      %vm1381 = vcmp.lt.s32.totalorder %v1219, 0
      %v1382 = vand.u32 %v1219, 2139095040
      %v1383 = vshrl.u32 %v1382, 23
      %v1384 = vsub.s32 %v1383, 127
      %v1385 = vand.u32 2147483647, %v1219
      %v1386 = vand.u32 %v1385, 8388607
      %v1387 = vor.u32 %v1386, 8388608
      %v1388 = vsub.s32 0, %v1387
      %v1389 = vadd.s32 %v1384, 1
      %vm1390 = vcmp.gt.s32.totalorder %v1389, 0
      %v1391 = vsel %vm1390, %v1389, 0
      %v1392 = vshrl.u32 %v1391, 5
      %v1393 = vand.u32 %v1391, 31
      %v1394 = vsub.s32 32, %v1393
      %v1395 = vshrl.u32 683565275, %v1394
      %v1396 = vshll.u32 683565275, %v1393
      %v1397 = vshrl.u32 2475754826, %v1394
      %v1398 = vor.u32 %v1396, %v1397
      %v1399 = vshll.u32 2475754826, %v1393
      %v1400 = vshrl.u32 2131351028, %v1394
      %v1401 = vor.u32 %v1399, %v1400
      %v1402 = vshll.u32 2131351028, %v1393
      %v1403 = vshrl.u32 2102212464, %v1394
      %v1404 = vor.u32 %v1402, %v1403
      %v1405 = vshll.u32 2102212464, %v1393
      %v1406 = vshrl.u32 920167782, %v1394
      %v1407 = vor.u32 %v1405, %v1406
      %v1408 = vshll.u32 920167782, %v1393
      %v1409 = vshrl.u32 1326507024, %v1394
      %v1410 = vor.u32 %v1408, %v1409
      %vm1411 = vcmp.lt.s32.totalorder %v1392, 1
      %vm1412 = vcmp.lt.s32.totalorder %v1392, 2
      %vm1413 = vcmp.lt.s32.totalorder %v1392, 3
      %vm1414 = vcmp.lt.s32.totalorder %v1392, 4
      %v1415 = vsel %vm1411, %v1395, %v1398
      %v1416 = vsel %vm1414, %v1404, 2102212464
      %v1417 = vsel %vm1413, %v1401, %v1416
      %v1418 = vsel %vm1412, %v1415, %v1417
      %v1419 = vsel %vm1411, %v1398, %v1401
      %v1420 = vsel %vm1414, %v1407, 920167782
      %v1421 = vsel %vm1413, %v1404, %v1420
      %v1422 = vsel %vm1412, %v1419, %v1421
      %v1423 = vsel %vm1411, %v1401, %v1404
      %v1424 = vsel %vm1414, %v1410, 1326507024
      %v1425 = vsel %vm1413, %v1407, %v1424
      %v1426 = vsel %vm1412, %v1423, %v1425
      %v1427 = vshll.u32 %v1387, 8
      %v1428 = vand.u32 %v1427, 65535
      %v1429 = vshrl.u32 %v1427, 16
      %v1430 = vand.u32 %v1426, 65535
      %v1431 = vshrl.u32 %v1426, 16
      %v1432 = vmul.u32 %v1428, %v1430
      %v1433 = vmul.u32 %v1428, %v1431
      %v1434 = vmul.u32 %v1429, %v1430
      %v1435 = vmul.u32 %v1429, %v1431
      %v1436 = vshll.u32 %v1433, 16
      %v1437 = vshrl.u32 %v1433, 16
      %v1438 = vshll.u32 %v1434, 16
      %v1439 = vshrl.u32 %v1434, 16
      %vm1440 = vc.u32 %v1432, %v1436
      %v1441 = vsel %vm1440, 1, 0
      %v1442 = vadd.s32 %v1432, %v1436
      %v1443 = vadd.s32 %v1435, %v1441
      %vm1444 = vc.u32 %v1442, %v1438
      %v1445 = vsel %vm1444, 1, 0
      %v1446 = vadd.s32 %v1442, %v1438
      %v1447 = vadd.s32 %v1443, %v1445
      %v1448 = vadd.s32 %v1447, %v1437
      %v1449 = vadd.s32 %v1448, %v1439
      %v1450 = vand.u32 %v1427, 65535
      %v1451 = vshrl.u32 %v1427, 16
      %v1452 = vand.u32 %v1422, 65535
      %v1453 = vshrl.u32 %v1422, 16
      %v1454 = vmul.u32 %v1450, %v1452
      %v1455 = vmul.u32 %v1450, %v1453
      %v1456 = vmul.u32 %v1451, %v1452
      %v1457 = vmul.u32 %v1451, %v1453
      %v1458 = vshll.u32 %v1455, 16
      %v1459 = vshrl.u32 %v1455, 16
      %v1460 = vshll.u32 %v1456, 16
      %v1461 = vshrl.u32 %v1456, 16
      %vm1462 = vc.u32 %v1454, %v1458
      %v1463 = vsel %vm1462, 1, 0
      %v1464 = vadd.s32 %v1454, %v1458
      %v1465 = vadd.s32 %v1457, %v1463
      %vm1466 = vc.u32 %v1464, %v1460
      %v1467 = vsel %vm1466, 1, 0
      %v1468 = vadd.s32 %v1464, %v1460
      %v1469 = vadd.s32 %v1465, %v1467
      %v1470 = vadd.s32 %v1469, %v1459
      %v1471 = vadd.s32 %v1470, %v1461
      %v1472 = vmul.u32 %v1427, %v1418
      %v1473 = vadd.s32 %v1449, %v1468
      %vm1474 = vc.u32 %v1449, %v1468
      %v1475 = vadd.s32 %v1471, 1
      %v1476 = vsel %vm1474, %v1475, %v1471
      %v1477 = vadd.s32 %v1472, %v1476
      %v1478 = vadd.s32 %v1477, 536870912
      %v1479 = vshrl.u32 %v1478, 30
      %v1480 = vshll.u32 %v1479, 30
      %v1481 = vsub.s32 %v1477, %v1480
      %vm1482 = vcmp.lt.s32.totalorder %v1481, 0
      %v1483 = vsub.s32 0, %v1481
      %v1484 = vsel %vm1482, %v1483, %v1481
      %v1485 = vclz %v1484
      %v1486 = vsub.s32 %v1485, 2
      %vm1487 = vcmp.gt.s32.totalorder 0, %v1486
      %v1488 = vsel %vm1487, 0, %v1486
      %v1489 = vsub.s32 32, %v1488
      %v1490 = vshll.u32 %v1481, %v1488
      %v1491 = vshrl.u32 %v1473, %v1489
      %v1492 = vor.u32 %v1490, %v1491
      %v1493 = vsub.s32 4294967266, %v1488
      %v1494 = vadd.s32 %v1493, 127
      %v1495 = vshll.u32 %v1494, 23
      %v1496 = vor.u32 4788187, %v1495
      %v1497 = vand.u32 2147483647, %v1496
      %v1499 = vcvt.s32.f32 %v1492
      %v1500 = vmul.f32 %v1499, %v1497
      %v1501 = vxor.u32 %v1500, 2147483648
      %v1502 = vsel %vm1381, %v1501, %v1500
      %v1503 = vsub.s32 4, %v1479
      %v1504 = vsel %vm1381, %v1503, %v1479
      %v1505 = vsel %vm1380, %v1219, %v1502
      %v1506 = vsel %vm1380, 0, %v1504
      %v1507 = vmul.f32 %v1505, %v1505
      %v1508 = vmul.f32 %v1507, -0.001358992
      %v1509 = vadd.f32 %v1508, 0.041655596
      %v1510 = vmul.f32 %v1507, %v1509
      %v1511 = vadd.f32 %v1510, -0.4999988
      %v1512 = vmul.f32 %v1507, %v1511
      %v1513 = vadd.f32 1.0, %v1512
      %v1514 = vmul.f32 %v1505, %v1505
      %v1515 = vmul.f32 %v1514, -0.00019511016
      %v1516 = vadd.f32 %v1515, 0.008332121
      %v1517 = vmul.f32 %v1514, %v1516
      %v1518 = vadd.f32 %v1517, -0.16666654
      %v1519 = vmul.f32 %v1514, %v1518
      %v1520 = vadd.f32 %v1519, 1.0
      %v1521 = vmul.f32 %v1520, %v1505
      %vm1522 = vweird.f32 %v1219
      %v1523 = vadd.s32 %v1506, 3
      %v1524 = vand.u32 %v1523, 3
      %vm1525 = vcmp.lt.s32.totalorder %v1524, 2
      %vm1526 = vcmp.eq.s32.totalorder %v1524, 0
      %v1527 = vxor.u32 %v1521, 2147483648
      %v1528 = vsel %vm1526, %v1513, %v1527
      %vm1529 = vcmp.eq.s32.totalorder %v1524, 2
      %v1530 = vxor.u32 %v1513, 2147483648
      %v1531 = vsel %vm1529, %v1530, %v1521
      %v1532 = vsel %vm1525, %v1528, %v1531
      %v1533 = vsel %vm1522, nan, %v1532
      %v1534 = vand.u32 2147483647, %v1199
      %vm1535 = vcmp.le.f32.partialorder %v1534, 0.7853982
      %vm1536 = vcmp.lt.s32.totalorder %v1199, 0
      %v1537 = vand.u32 %v1199, 2139095040
      %v1538 = vshrl.u32 %v1537, 23
      %v1539 = vsub.s32 %v1538, 127
      %v1540 = vand.u32 2147483647, %v1199
      %v1541 = vand.u32 %v1540, 8388607
      %v1542 = vor.u32 %v1541, 8388608
      %v1543 = vsub.s32 0, %v1542
      %v1544 = vadd.s32 %v1539, 1
      %vm1545 = vcmp.gt.s32.totalorder %v1544, 0
      %v1546 = vsel %vm1545, %v1544, 0
      %v1547 = vshrl.u32 %v1546, 5
      %v1548 = vand.u32 %v1546, 31
      %v1549 = vsub.s32 32, %v1548
      %v1550 = vshrl.u32 683565275, %v1549
      %v1551 = vshll.u32 683565275, %v1548
      %v1552 = vshrl.u32 2475754826, %v1549
      %v1553 = vor.u32 %v1551, %v1552
      %v1554 = vshll.u32 2475754826, %v1548
      %v1555 = vshrl.u32 2131351028, %v1549
      %v1556 = vor.u32 %v1554, %v1555
      %v1557 = vshll.u32 2131351028, %v1548
      %v1558 = vshrl.u32 2102212464, %v1549
      %v1559 = vor.u32 %v1557, %v1558
      %v1560 = vshll.u32 2102212464, %v1548
      %v1561 = vshrl.u32 920167782, %v1549
      %v1562 = vor.u32 %v1560, %v1561
      %v1563 = vshll.u32 920167782, %v1548
      %v1564 = vshrl.u32 1326507024, %v1549
      %v1565 = vor.u32 %v1563, %v1564
      %vm1566 = vcmp.lt.s32.totalorder %v1547, 1
      %vm1567 = vcmp.lt.s32.totalorder %v1547, 2
      %vm1568 = vcmp.lt.s32.totalorder %v1547, 3
      %vm1569 = vcmp.lt.s32.totalorder %v1547, 4
      %v1570 = vsel %vm1566, %v1550, %v1553
      %v1571 = vsel %vm1569, %v1559, 2102212464
      %v1572 = vsel %vm1568, %v1556, %v1571
      %v1573 = vsel %vm1567, %v1570, %v1572
      %v1574 = vsel %vm1566, %v1553, %v1556
      %v1575 = vsel %vm1569, %v1562, 920167782
      %v1576 = vsel %vm1568, %v1559, %v1575
      %v1577 = vsel %vm1567, %v1574, %v1576
      %v1578 = vsel %vm1566, %v1556, %v1559
      %v1579 = vsel %vm1569, %v1565, 1326507024
      %v1580 = vsel %vm1568, %v1562, %v1579
      %v1581 = vsel %vm1567, %v1578, %v1580
      %v1582 = vshll.u32 %v1542, 8
      %v1583 = vand.u32 %v1582, 65535
      %v1584 = vshrl.u32 %v1582, 16
      %v1585 = vand.u32 %v1581, 65535
      %v1586 = vshrl.u32 %v1581, 16
      %v1587 = vmul.u32 %v1583, %v1585
      %v1588 = vmul.u32 %v1583, %v1586
      %v1589 = vmul.u32 %v1584, %v1585
      %v1590 = vmul.u32 %v1584, %v1586
      %v1591 = vshll.u32 %v1588, 16
      %v1592 = vshrl.u32 %v1588, 16
      %v1593 = vshll.u32 %v1589, 16
      %v1594 = vshrl.u32 %v1589, 16
      %vm1595 = vc.u32 %v1587, %v1591
      %v1596 = vsel %vm1595, 1, 0
      %v1597 = vadd.s32 %v1587, %v1591
      %v1598 = vadd.s32 %v1590, %v1596
      %vm1599 = vc.u32 %v1597, %v1593
      %v1600 = vsel %vm1599, 1, 0
      %v1601 = vadd.s32 %v1597, %v1593
      %v1602 = vadd.s32 %v1598, %v1600
      %v1603 = vadd.s32 %v1602, %v1592
      %v1604 = vadd.s32 %v1603, %v1594
      %v1605 = vand.u32 %v1582, 65535
      %v1606 = vshrl.u32 %v1582, 16
      %v1607 = vand.u32 %v1577, 65535
      %v1608 = vshrl.u32 %v1577, 16
      %v1609 = vmul.u32 %v1605, %v1607
      %v1610 = vmul.u32 %v1605, %v1608
      %v1611 = vmul.u32 %v1606, %v1607
      %v1612 = vmul.u32 %v1606, %v1608
      %v1613 = vshll.u32 %v1610, 16
      %v1614 = vshrl.u32 %v1610, 16
      %v1615 = vshll.u32 %v1611, 16
      %v1616 = vshrl.u32 %v1611, 16
      %vm1617 = vc.u32 %v1609, %v1613
      %v1618 = vsel %vm1617, 1, 0
      %v1619 = vadd.s32 %v1609, %v1613
      %v1620 = vadd.s32 %v1612, %v1618
      %vm1621 = vc.u32 %v1619, %v1615
      %v1622 = vsel %vm1621, 1, 0
      %v1623 = vadd.s32 %v1619, %v1615
      %v1624 = vadd.s32 %v1620, %v1622
      %v1625 = vadd.s32 %v1624, %v1614
      %v1626 = vadd.s32 %v1625, %v1616
      %v1627 = vmul.u32 %v1582, %v1573
      %v1628 = vadd.s32 %v1604, %v1623
      %vm1629 = vc.u32 %v1604, %v1623
      %v1630 = vadd.s32 %v1626, 1
      %v1631 = vsel %vm1629, %v1630, %v1626
      %v1632 = vadd.s32 %v1627, %v1631
      %v1633 = vadd.s32 %v1632, 536870912
      %v1634 = vshrl.u32 %v1633, 30
      %v1635 = vshll.u32 %v1634, 30
      %v1636 = vsub.s32 %v1632, %v1635
      %vm1637 = vcmp.lt.s32.totalorder %v1636, 0
      %v1638 = vsub.s32 0, %v1636
      %v1639 = vsel %vm1637, %v1638, %v1636
      %v1640 = vclz %v1639
      %v1641 = vsub.s32 %v1640, 2
      %vm1642 = vcmp.gt.s32.totalorder 0, %v1641
      %v1643 = vsel %vm1642, 0, %v1641
      %v1644 = vsub.s32 32, %v1643
      %v1645 = vshll.u32 %v1636, %v1643
      %v1646 = vshrl.u32 %v1628, %v1644
      %v1647 = vor.u32 %v1645, %v1646
      %v1648 = vsub.s32 4294967266, %v1643
      %v1649 = vadd.s32 %v1648, 127
      %v1650 = vshll.u32 %v1649, 23
      %v1651 = vor.u32 4788187, %v1650
      %v1652 = vand.u32 2147483647, %v1651
      %v1654 = vcvt.s32.f32 %v1647
      %v1655 = vmul.f32 %v1654, %v1652
      %v1656 = vxor.u32 %v1655, 2147483648
      %v1657 = vsel %vm1536, %v1656, %v1655
      %v1658 = vsub.s32 4, %v1634
      %v1659 = vsel %vm1536, %v1658, %v1634
      %v1660 = vsel %vm1535, %v1199, %v1657
      %v1661 = vsel %vm1535, 0, %v1659
      %v1662 = vmul.f32 %v1660, %v1660
      %v1663 = vmul.f32 %v1662, -0.001358992
      %v1664 = vadd.f32 %v1663, 0.041655596
      %v1665 = vmul.f32 %v1662, %v1664
      %v1666 = vadd.f32 %v1665, -0.4999988
      %v1667 = vmul.f32 %v1662, %v1666
      %v1668 = vadd.f32 1.0, %v1667
      %v1669 = vmul.f32 %v1660, %v1660
      %v1670 = vmul.f32 %v1669, -0.00019511016
      %v1671 = vadd.f32 %v1670, 0.008332121
      %v1672 = vmul.f32 %v1669, %v1671
      %v1673 = vadd.f32 %v1672, -0.16666654
      %v1674 = vmul.f32 %v1669, %v1673
      %v1675 = vadd.f32 %v1674, 1.0
      %v1676 = vmul.f32 %v1675, %v1660
      %vm1677 = vweird.f32 %v1199
      %v1678 = vadd.s32 %v1661, 3
      %v1679 = vand.u32 %v1678, 3
      %vm1680 = vcmp.lt.s32.totalorder %v1679, 2
      %vm1681 = vcmp.eq.s32.totalorder %v1679, 0
      %v1682 = vxor.u32 %v1676, 2147483648
      %v1683 = vsel %vm1681, %v1668, %v1682
      %vm1684 = vcmp.eq.s32.totalorder %v1679, 2
      %v1685 = vxor.u32 %v1668, 2147483648
      %v1686 = vsel %vm1684, %v1685, %v1676
      %v1687 = vsel %vm1680, %v1683, %v1686
      %v1688 = vsel %vm1677, nan, %v1687
      %v1689 = vand.u32 2147483647, %v1222
      %vm1690 = vcmp.le.f32.partialorder %v1689, 0.7853982
      %vm1691 = vcmp.lt.s32.totalorder %v1222, 0
      %v1692 = vand.u32 %v1222, 2139095040
      %v1693 = vshrl.u32 %v1692, 23
      %v1694 = vsub.s32 %v1693, 127
      %v1695 = vand.u32 2147483647, %v1222
      %v1696 = vand.u32 %v1695, 8388607
      %v1697 = vor.u32 %v1696, 8388608
      %v1698 = vsub.s32 0, %v1697
      %v1699 = vadd.s32 %v1694, 1
      %vm1700 = vcmp.gt.s32.totalorder %v1699, 0
      %v1701 = vsel %vm1700, %v1699, 0
      %v1702 = vshrl.u32 %v1701, 5
      %v1703 = vand.u32 %v1701, 31
      %v1704 = vsub.s32 32, %v1703
      %v1705 = vshrl.u32 683565275, %v1704
      %v1706 = vshll.u32 683565275, %v1703
      %v1707 = vshrl.u32 2475754826, %v1704
      %v1708 = vor.u32 %v1706, %v1707
      %v1709 = vshll.u32 2475754826, %v1703
      %v1710 = vshrl.u32 2131351028, %v1704
      %v1711 = vor.u32 %v1709, %v1710
      %v1712 = vshll.u32 2131351028, %v1703
      %v1713 = vshrl.u32 2102212464, %v1704
      %v1714 = vor.u32 %v1712, %v1713
      %v1715 = vshll.u32 2102212464, %v1703
      %v1716 = vshrl.u32 920167782, %v1704
      %v1717 = vor.u32 %v1715, %v1716
      %v1718 = vshll.u32 920167782, %v1703
      %v1719 = vshrl.u32 1326507024, %v1704
      %v1720 = vor.u32 %v1718, %v1719
      %vm1721 = vcmp.lt.s32.totalorder %v1702, 1
      %vm1722 = vcmp.lt.s32.totalorder %v1702, 2
      %vm1723 = vcmp.lt.s32.totalorder %v1702, 3
      %vm1724 = vcmp.lt.s32.totalorder %v1702, 4
      %v1725 = vsel %vm1721, %v1705, %v1708
      %v1726 = vsel %vm1724, %v1714, 2102212464
      %v1727 = vsel %vm1723, %v1711, %v1726
      %v1728 = vsel %vm1722, %v1725, %v1727
      %v1729 = vsel %vm1721, %v1708, %v1711
      %v1730 = vsel %vm1724, %v1717, 920167782
      %v1731 = vsel %vm1723, %v1714, %v1730
      %v1732 = vsel %vm1722, %v1729, %v1731
      %v1733 = vsel %vm1721, %v1711, %v1714
      %v1734 = vsel %vm1724, %v1720, 1326507024
      %v1735 = vsel %vm1723, %v1717, %v1734
      %v1736 = vsel %vm1722, %v1733, %v1735
      %v1737 = vshll.u32 %v1697, 8
      %v1738 = vand.u32 %v1737, 65535
      %v1739 = vshrl.u32 %v1737, 16
      %v1740 = vand.u32 %v1736, 65535
      %v1741 = vshrl.u32 %v1736, 16
      %v1742 = vmul.u32 %v1738, %v1740
      %v1743 = vmul.u32 %v1738, %v1741
      %v1744 = vmul.u32 %v1739, %v1740
      %v1745 = vmul.u32 %v1739, %v1741
      %v1746 = vshll.u32 %v1743, 16
      %v1747 = vshrl.u32 %v1743, 16
      %v1748 = vshll.u32 %v1744, 16
      %v1749 = vshrl.u32 %v1744, 16
      %vm1750 = vc.u32 %v1742, %v1746
      %v1751 = vsel %vm1750, 1, 0
      %v1752 = vadd.s32 %v1742, %v1746
      %v1753 = vadd.s32 %v1745, %v1751
      %vm1754 = vc.u32 %v1752, %v1748
      %v1755 = vsel %vm1754, 1, 0
      %v1756 = vadd.s32 %v1752, %v1748
      %v1757 = vadd.s32 %v1753, %v1755
      %v1758 = vadd.s32 %v1757, %v1747
      %v1759 = vadd.s32 %v1758, %v1749
      %v1760 = vand.u32 %v1737, 65535
      %v1761 = vshrl.u32 %v1737, 16
      %v1762 = vand.u32 %v1732, 65535
      %v1763 = vshrl.u32 %v1732, 16
      %v1764 = vmul.u32 %v1760, %v1762
      %v1765 = vmul.u32 %v1760, %v1763
      %v1766 = vmul.u32 %v1761, %v1762
      %v1767 = vmul.u32 %v1761, %v1763
      %v1768 = vshll.u32 %v1765, 16
      %v1769 = vshrl.u32 %v1765, 16
      %v1770 = vshll.u32 %v1766, 16
      %v1771 = vshrl.u32 %v1766, 16
      %vm1772 = vc.u32 %v1764, %v1768
      %v1773 = vsel %vm1772, 1, 0
      %v1774 = vadd.s32 %v1764, %v1768
      %v1775 = vadd.s32 %v1767, %v1773
      %vm1776 = vc.u32 %v1774, %v1770
      %v1777 = vsel %vm1776, 1, 0
      %v1778 = vadd.s32 %v1774, %v1770
      %v1779 = vadd.s32 %v1775, %v1777
      %v1780 = vadd.s32 %v1779, %v1769
      %v1781 = vadd.s32 %v1780, %v1771
      %v1782 = vmul.u32 %v1737, %v1728
      %v1783 = vadd.s32 %v1759, %v1778
      %vm1784 = vc.u32 %v1759, %v1778
      %v1785 = vadd.s32 %v1781, 1
      %v1786 = vsel %vm1784, %v1785, %v1781
      %v1787 = vadd.s32 %v1782, %v1786
      %v1788 = vadd.s32 %v1787, 536870912
      %v1789 = vshrl.u32 %v1788, 30
      %v1790 = vshll.u32 %v1789, 30
      %v1791 = vsub.s32 %v1787, %v1790
      %vm1792 = vcmp.lt.s32.totalorder %v1791, 0
      %v1793 = vsub.s32 0, %v1791
      %v1794 = vsel %vm1792, %v1793, %v1791
      %v1795 = vclz %v1794
      %v1796 = vsub.s32 %v1795, 2
      %vm1797 = vcmp.gt.s32.totalorder 0, %v1796
      %v1798 = vsel %vm1797, 0, %v1796
      %v1799 = vsub.s32 32, %v1798
      %v1800 = vshll.u32 %v1791, %v1798
      %v1801 = vshrl.u32 %v1783, %v1799
      %v1802 = vor.u32 %v1800, %v1801
      %v1803 = vsub.s32 4294967266, %v1798
      %v1804 = vadd.s32 %v1803, 127
      %v1805 = vshll.u32 %v1804, 23
      %v1806 = vor.u32 4788187, %v1805
      %v1807 = vand.u32 2147483647, %v1806
      %v1809 = vcvt.s32.f32 %v1802
      %v1810 = vmul.f32 %v1809, %v1807
      %v1811 = vxor.u32 %v1810, 2147483648
      %v1812 = vsel %vm1691, %v1811, %v1810
      %v1813 = vsub.s32 4, %v1789
      %v1814 = vsel %vm1691, %v1813, %v1789
      %v1815 = vsel %vm1690, %v1222, %v1812
      %v1816 = vsel %vm1690, 0, %v1814
      %v1817 = vmul.f32 %v1815, %v1815
      %v1818 = vmul.f32 %v1817, -0.001358992
      %v1819 = vadd.f32 %v1818, 0.041655596
      %v1820 = vmul.f32 %v1817, %v1819
      %v1821 = vadd.f32 %v1820, -0.4999988
      %v1822 = vmul.f32 %v1817, %v1821
      %v1823 = vadd.f32 1.0, %v1822
      %v1824 = vmul.f32 %v1815, %v1815
      %v1825 = vmul.f32 %v1824, -0.00019511016
      %v1826 = vadd.f32 %v1825, 0.008332121
      %v1827 = vmul.f32 %v1824, %v1826
      %v1828 = vadd.f32 %v1827, -0.16666654
      %v1829 = vmul.f32 %v1824, %v1828
      %v1830 = vadd.f32 %v1829, 1.0
      %v1831 = vmul.f32 %v1830, %v1815
      %vm1832 = vweird.f32 %v1222
      %v1833 = vadd.s32 %v1816, 3
      %v1834 = vand.u32 %v1833, 3
      %vm1835 = vcmp.lt.s32.totalorder %v1834, 2
      %vm1836 = vcmp.eq.s32.totalorder %v1834, 0
      %v1837 = vxor.u32 %v1831, 2147483648
      %v1838 = vsel %vm1836, %v1823, %v1837
      %vm1839 = vcmp.eq.s32.totalorder %v1834, 2
      %v1840 = vxor.u32 %v1823, 2147483648
      %v1841 = vsel %vm1839, %v1840, %v1831
      %v1842 = vsel %vm1835, %v1838, %v1841
      %v1843 = vsel %vm1832, nan, %v1842
      %v1844 = vpack.c.bf16 %v1688, %v1378
      %v1845 = vpack.c.bf16 %v1843, %v1533
      %v1846 = vand.u32 2147483647, %v1196
      %vm1847 = vcmp.le.f32.partialorder %v1846, 0.7853982
      %vm1848 = vcmp.lt.s32.totalorder %v1196, 0
      %v1849 = vand.u32 %v1196, 2139095040
      %v1850 = vshrl.u32 %v1849, 23
      %v1851 = vsub.s32 %v1850, 127
      %v1852 = vand.u32 2147483647, %v1196
      %v1853 = vand.u32 %v1852, 8388607
      %v1854 = vor.u32 %v1853, 8388608
      %v1855 = vsub.s32 0, %v1854
      %v1856 = vadd.s32 %v1851, 1
      %vm1857 = vcmp.gt.s32.totalorder %v1856, 0
      %v1858 = vsel %vm1857, %v1856, 0
      %v1859 = vshrl.u32 %v1858, 5
      %v1860 = vand.u32 %v1858, 31
      %v1861 = vsub.s32 32, %v1860
      %v1862 = vshrl.u32 683565275, %v1861
      %v1863 = vshll.u32 683565275, %v1860
      %v1864 = vshrl.u32 2475754826, %v1861
      %v1865 = vor.u32 %v1863, %v1864
      %v1866 = vshll.u32 2475754826, %v1860
      %v1867 = vshrl.u32 2131351028, %v1861
      %v1868 = vor.u32 %v1866, %v1867
      %v1869 = vshll.u32 2131351028, %v1860
      %v1870 = vshrl.u32 2102212464, %v1861
      %v1871 = vor.u32 %v1869, %v1870
      %v1872 = vshll.u32 2102212464, %v1860
      %v1873 = vshrl.u32 920167782, %v1861
      %v1874 = vor.u32 %v1872, %v1873
      %v1875 = vshll.u32 920167782, %v1860
      %v1876 = vshrl.u32 1326507024, %v1861
      %v1877 = vor.u32 %v1875, %v1876
      %vm1878 = vcmp.lt.s32.totalorder %v1859, 1
      %vm1879 = vcmp.lt.s32.totalorder %v1859, 2
      %vm1880 = vcmp.lt.s32.totalorder %v1859, 3
      %vm1881 = vcmp.lt.s32.totalorder %v1859, 4
      %v1882 = vsel %vm1878, %v1862, %v1865
      %v1883 = vsel %vm1881, %v1871, 2102212464
      %v1884 = vsel %vm1880, %v1868, %v1883
      %v1885 = vsel %vm1879, %v1882, %v1884
      %v1886 = vsel %vm1878, %v1865, %v1868
      %v1887 = vsel %vm1881, %v1874, 920167782
      %v1888 = vsel %vm1880, %v1871, %v1887
      %v1889 = vsel %vm1879, %v1886, %v1888
      %v1890 = vsel %vm1878, %v1868, %v1871
      %v1891 = vsel %vm1881, %v1877, 1326507024
      %v1892 = vsel %vm1880, %v1874, %v1891
      %v1893 = vsel %vm1879, %v1890, %v1892
      %v1894 = vshll.u32 %v1854, 8
      %v1895 = vand.u32 %v1894, 65535
      %v1896 = vshrl.u32 %v1894, 16
      %v1897 = vand.u32 %v1893, 65535
      %v1898 = vshrl.u32 %v1893, 16
      %v1899 = vmul.u32 %v1895, %v1897
      %v1900 = vmul.u32 %v1895, %v1898
      %v1901 = vmul.u32 %v1896, %v1897
      %v1902 = vmul.u32 %v1896, %v1898
      %v1903 = vshll.u32 %v1900, 16
      %v1904 = vshrl.u32 %v1900, 16
      %v1905 = vshll.u32 %v1901, 16
      %v1906 = vshrl.u32 %v1901, 16
      %vm1907 = vc.u32 %v1899, %v1903
      %v1908 = vsel %vm1907, 1, 0
      %v1909 = vadd.s32 %v1899, %v1903
      %v1910 = vadd.s32 %v1902, %v1908
      %vm1911 = vc.u32 %v1909, %v1905
      %v1912 = vsel %vm1911, 1, 0
      %v1913 = vadd.s32 %v1909, %v1905
      %v1914 = vadd.s32 %v1910, %v1912
      %v1915 = vadd.s32 %v1914, %v1904
      %v1916 = vadd.s32 %v1915, %v1906
      %v1917 = vand.u32 %v1894, 65535
      %v1918 = vshrl.u32 %v1894, 16
      %v1919 = vand.u32 %v1889, 65535
      %v1920 = vshrl.u32 %v1889, 16
      %v1921 = vmul.u32 %v1917, %v1919
      %v1922 = vmul.u32 %v1917, %v1920
      %v1923 = vmul.u32 %v1918, %v1919
      %v1924 = vmul.u32 %v1918, %v1920
      %v1925 = vshll.u32 %v1922, 16
      %v1926 = vshrl.u32 %v1922, 16
      %v1927 = vshll.u32 %v1923, 16
      %v1928 = vshrl.u32 %v1923, 16
      %vm1929 = vc.u32 %v1921, %v1925
      %v1930 = vsel %vm1929, 1, 0
      %v1931 = vadd.s32 %v1921, %v1925
      %v1932 = vadd.s32 %v1924, %v1930
      %vm1933 = vc.u32 %v1931, %v1927
      %v1934 = vsel %vm1933, 1, 0
      %v1935 = vadd.s32 %v1931, %v1927
      %v1936 = vadd.s32 %v1932, %v1934
      %v1937 = vadd.s32 %v1936, %v1926
      %v1938 = vadd.s32 %v1937, %v1928
      %v1939 = vmul.u32 %v1894, %v1885
      %v1940 = vadd.s32 %v1916, %v1935
      %vm1941 = vc.u32 %v1916, %v1935
      %v1942 = vadd.s32 %v1938, 1
      %v1943 = vsel %vm1941, %v1942, %v1938
      %v1944 = vadd.s32 %v1939, %v1943
      %v1945 = vadd.s32 %v1944, 536870912
      %v1946 = vshrl.u32 %v1945, 30
      %v1947 = vshll.u32 %v1946, 30
      %v1948 = vsub.s32 %v1944, %v1947
      %vm1949 = vcmp.lt.s32.totalorder %v1948, 0
      %v1950 = vsub.s32 0, %v1948
      %v1951 = vsel %vm1949, %v1950, %v1948
      %v1952 = vclz %v1951
      %v1953 = vsub.s32 %v1952, 2
      %vm1954 = vcmp.gt.s32.totalorder 0, %v1953
      %v1955 = vsel %vm1954, 0, %v1953
      %v1956 = vsub.s32 32, %v1955
      %v1957 = vshll.u32 %v1948, %v1955
      %v1958 = vshrl.u32 %v1940, %v1956
      %v1959 = vor.u32 %v1957, %v1958
      %v1960 = vsub.s32 4294967266, %v1955
      %v1961 = vadd.s32 %v1960, 127
      %v1962 = vshll.u32 %v1961, 23
      %v1963 = vor.u32 4788187, %v1962
      %v1964 = vand.u32 2147483647, %v1963
      %v1966 = vcvt.s32.f32 %v1959
      %v1967 = vmul.f32 %v1966, %v1964
      %v1968 = vxor.u32 %v1967, 2147483648
      %v1969 = vsel %vm1848, %v1968, %v1967
      %v1970 = vsub.s32 4, %v1946
      %v1971 = vsel %vm1848, %v1970, %v1946
      %v1972 = vsel %vm1847, %v1196, %v1969
      %v1973 = vsel %vm1847, 0, %v1971
      %v1974 = vmul.f32 %v1972, %v1972
      %v1975 = vmul.f32 %v1974, -0.001358992
      %v1976 = vadd.f32 %v1975, 0.041655596
      %v1977 = vmul.f32 %v1974, %v1976
      %v1978 = vadd.f32 %v1977, -0.4999988
      %v1979 = vmul.f32 %v1974, %v1978
      %v1980 = vadd.f32 1.0, %v1979
      %v1981 = vmul.f32 %v1972, %v1972
      %v1982 = vmul.f32 %v1981, -0.00019511016
      %v1983 = vadd.f32 %v1982, 0.008332121
      %v1984 = vmul.f32 %v1981, %v1983
      %v1985 = vadd.f32 %v1984, -0.16666654
      %v1986 = vmul.f32 %v1981, %v1985
      %v1987 = vadd.f32 %v1986, 1.0
      %v1988 = vmul.f32 %v1987, %v1972
      %vm1989 = vweird.f32 %v1196
      %v1990 = vand.u32 %v1973, 3
      %vm1991 = vcmp.lt.s32.totalorder %v1990, 2
      %vm1992 = vcmp.eq.s32.totalorder %v1990, 0
      %v1993 = vxor.u32 %v1988, 2147483648
      %v1994 = vsel %vm1992, %v1980, %v1993
      %vm1995 = vcmp.eq.s32.totalorder %v1990, 2
      %v1996 = vxor.u32 %v1980, 2147483648
      %v1997 = vsel %vm1995, %v1996, %v1988
      %v1998 = vsel %vm1991, %v1994, %v1997
      %v1999 = vsel %vm1989, nan, %v1998
      %v2000 = vand.u32 2147483647, %v1219
      %vm2001 = vcmp.le.f32.partialorder %v2000, 0.7853982
      %vm2002 = vcmp.lt.s32.totalorder %v1219, 0
      %v2003 = vand.u32 %v1219, 2139095040
      %v2004 = vshrl.u32 %v2003, 23
      %v2005 = vsub.s32 %v2004, 127
      %v2006 = vand.u32 2147483647, %v1219
      %v2007 = vand.u32 %v2006, 8388607
      %v2008 = vor.u32 %v2007, 8388608
      %v2009 = vsub.s32 0, %v2008
      %v2010 = vadd.s32 %v2005, 1
      %vm2011 = vcmp.gt.s32.totalorder %v2010, 0
      %v2012 = vsel %vm2011, %v2010, 0
      %v2013 = vshrl.u32 %v2012, 5
      %v2014 = vand.u32 %v2012, 31
      %v2015 = vsub.s32 32, %v2014
      %v2016 = vshrl.u32 683565275, %v2015
      %v2017 = vshll.u32 683565275, %v2014
      %v2018 = vshrl.u32 2475754826, %v2015
      %v2019 = vor.u32 %v2017, %v2018
      %v2020 = vshll.u32 2475754826, %v2014
      %v2021 = vshrl.u32 2131351028, %v2015
      %v2022 = vor.u32 %v2020, %v2021
      %v2023 = vshll.u32 2131351028, %v2014
      %v2024 = vshrl.u32 2102212464, %v2015
      %v2025 = vor.u32 %v2023, %v2024
      %v2026 = vshll.u32 2102212464, %v2014
      %v2027 = vshrl.u32 920167782, %v2015
      %v2028 = vor.u32 %v2026, %v2027
      %v2029 = vshll.u32 920167782, %v2014
      %v2030 = vshrl.u32 1326507024, %v2015
      %v2031 = vor.u32 %v2029, %v2030
      %vm2032 = vcmp.lt.s32.totalorder %v2013, 1
      %vm2033 = vcmp.lt.s32.totalorder %v2013, 2
      %vm2034 = vcmp.lt.s32.totalorder %v2013, 3
      %vm2035 = vcmp.lt.s32.totalorder %v2013, 4
      %v2036 = vsel %vm2032, %v2016, %v2019
      %v2037 = vsel %vm2035, %v2025, 2102212464
      %v2038 = vsel %vm2034, %v2022, %v2037
      %v2039 = vsel %vm2033, %v2036, %v2038
      %v2040 = vsel %vm2032, %v2019, %v2022
      %v2041 = vsel %vm2035, %v2028, 920167782
      %v2042 = vsel %vm2034, %v2025, %v2041
      %v2043 = vsel %vm2033, %v2040, %v2042
      %v2044 = vsel %vm2032, %v2022, %v2025
      %v2045 = vsel %vm2035, %v2031, 1326507024
      %v2046 = vsel %vm2034, %v2028, %v2045
      %v2047 = vsel %vm2033, %v2044, %v2046
      %v2048 = vshll.u32 %v2008, 8
      %v2049 = vand.u32 %v2048, 65535
      %v2050 = vshrl.u32 %v2048, 16
      %v2051 = vand.u32 %v2047, 65535
      %v2052 = vshrl.u32 %v2047, 16
      %v2053 = vmul.u32 %v2049, %v2051
      %v2054 = vmul.u32 %v2049, %v2052
      %v2055 = vmul.u32 %v2050, %v2051
      %v2056 = vmul.u32 %v2050, %v2052
      %v2057 = vshll.u32 %v2054, 16
      %v2058 = vshrl.u32 %v2054, 16
      %v2059 = vshll.u32 %v2055, 16
      %v2060 = vshrl.u32 %v2055, 16
      %vm2061 = vc.u32 %v2053, %v2057
      %v2062 = vsel %vm2061, 1, 0
      %v2063 = vadd.s32 %v2053, %v2057
      %v2064 = vadd.s32 %v2056, %v2062
      %vm2065 = vc.u32 %v2063, %v2059
      %v2066 = vsel %vm2065, 1, 0
      %v2067 = vadd.s32 %v2063, %v2059
      %v2068 = vadd.s32 %v2064, %v2066
      %v2069 = vadd.s32 %v2068, %v2058
      %v2070 = vadd.s32 %v2069, %v2060
      %v2071 = vand.u32 %v2048, 65535
      %v2072 = vshrl.u32 %v2048, 16
      %v2073 = vand.u32 %v2043, 65535
      %v2074 = vshrl.u32 %v2043, 16
      %v2075 = vmul.u32 %v2071, %v2073
      %v2076 = vmul.u32 %v2071, %v2074
      %v2077 = vmul.u32 %v2072, %v2073
      %v2078 = vmul.u32 %v2072, %v2074
      %v2079 = vshll.u32 %v2076, 16
      %v2080 = vshrl.u32 %v2076, 16
      %v2081 = vshll.u32 %v2077, 16
      %v2082 = vshrl.u32 %v2077, 16
      %vm2083 = vc.u32 %v2075, %v2079
      %v2084 = vsel %vm2083, 1, 0
      %v2085 = vadd.s32 %v2075, %v2079
      %v2086 = vadd.s32 %v2078, %v2084
      %vm2087 = vc.u32 %v2085, %v2081
      %v2088 = vsel %vm2087, 1, 0
      %v2089 = vadd.s32 %v2085, %v2081
      %v2090 = vadd.s32 %v2086, %v2088
      %v2091 = vadd.s32 %v2090, %v2080
      %v2092 = vadd.s32 %v2091, %v2082
      %v2093 = vmul.u32 %v2048, %v2039
      %v2094 = vadd.s32 %v2070, %v2089
      %vm2095 = vc.u32 %v2070, %v2089
      %v2096 = vadd.s32 %v2092, 1
      %v2097 = vsel %vm2095, %v2096, %v2092
      %v2098 = vadd.s32 %v2093, %v2097
      %v2099 = vadd.s32 %v2098, 536870912
      %v2100 = vshrl.u32 %v2099, 30
      %v2101 = vshll.u32 %v2100, 30
      %v2102 = vsub.s32 %v2098, %v2101
      %vm2103 = vcmp.lt.s32.totalorder %v2102, 0
      %v2104 = vsub.s32 0, %v2102
      %v2105 = vsel %vm2103, %v2104, %v2102
      %v2106 = vclz %v2105
      %v2107 = vsub.s32 %v2106, 2
      %vm2108 = vcmp.gt.s32.totalorder 0, %v2107
      %v2109 = vsel %vm2108, 0, %v2107
      %v2110 = vsub.s32 32, %v2109
      %v2111 = vshll.u32 %v2102, %v2109
      %v2112 = vshrl.u32 %v2094, %v2110
      %v2113 = vor.u32 %v2111, %v2112
      %v2114 = vsub.s32 4294967266, %v2109
      %v2115 = vadd.s32 %v2114, 127
      %v2116 = vshll.u32 %v2115, 23
      %v2117 = vor.u32 4788187, %v2116
      %v2118 = vand.u32 2147483647, %v2117
      %v2120 = vcvt.s32.f32 %v2113
      %v2121 = vmul.f32 %v2120, %v2118
      %v2122 = vxor.u32 %v2121, 2147483648
      %v2123 = vsel %vm2002, %v2122, %v2121
      %v2124 = vsub.s32 4, %v2100
      %v2125 = vsel %vm2002, %v2124, %v2100
      %v2126 = vsel %vm2001, %v1219, %v2123
      %v2127 = vsel %vm2001, 0, %v2125
      %v2128 = vmul.f32 %v2126, %v2126
      %v2129 = vmul.f32 %v2128, -0.001358992
      %v2130 = vadd.f32 %v2129, 0.041655596
      %v2131 = vmul.f32 %v2128, %v2130
      %v2132 = vadd.f32 %v2131, -0.4999988
      %v2133 = vmul.f32 %v2128, %v2132
      %v2134 = vadd.f32 1.0, %v2133
      %v2135 = vmul.f32 %v2126, %v2126
      %v2136 = vmul.f32 %v2135, -0.00019511016
      %v2137 = vadd.f32 %v2136, 0.008332121
      %v2138 = vmul.f32 %v2135, %v2137
      %v2139 = vadd.f32 %v2138, -0.16666654
      %v2140 = vmul.f32 %v2135, %v2139
      %v2141 = vadd.f32 %v2140, 1.0
      %v2142 = vmul.f32 %v2141, %v2126
      %vm2143 = vweird.f32 %v1219
      %v2144 = vand.u32 %v2127, 3
      %vm2145 = vcmp.lt.s32.totalorder %v2144, 2
      %vm2146 = vcmp.eq.s32.totalorder %v2144, 0
      %v2147 = vxor.u32 %v2142, 2147483648
      %v2148 = vsel %vm2146, %v2134, %v2147
      %vm2149 = vcmp.eq.s32.totalorder %v2144, 2
      %v2150 = vxor.u32 %v2134, 2147483648
      %v2151 = vsel %vm2149, %v2150, %v2142
      %v2152 = vsel %vm2145, %v2148, %v2151
      %v2153 = vsel %vm2143, nan, %v2152
      %v2154 = vand.u32 2147483647, %v1199
      %vm2155 = vcmp.le.f32.partialorder %v2154, 0.7853982
      %vm2156 = vcmp.lt.s32.totalorder %v1199, 0
      %v2157 = vand.u32 %v1199, 2139095040
      %v2158 = vshrl.u32 %v2157, 23
      %v2159 = vsub.s32 %v2158, 127
      %v2160 = vand.u32 2147483647, %v1199
      %v2161 = vand.u32 %v2160, 8388607
      %v2162 = vor.u32 %v2161, 8388608
      %v2163 = vsub.s32 0, %v2162
      %v2164 = vadd.s32 %v2159, 1
      %vm2165 = vcmp.gt.s32.totalorder %v2164, 0
      %v2166 = vsel %vm2165, %v2164, 0
      %v2167 = vshrl.u32 %v2166, 5
      %v2168 = vand.u32 %v2166, 31
      %v2169 = vsub.s32 32, %v2168
      %v2170 = vshrl.u32 683565275, %v2169
      %v2171 = vshll.u32 683565275, %v2168
      %v2172 = vshrl.u32 2475754826, %v2169
      %v2173 = vor.u32 %v2171, %v2172
      %v2174 = vshll.u32 2475754826, %v2168
      %v2175 = vshrl.u32 2131351028, %v2169
      %v2176 = vor.u32 %v2174, %v2175
      %v2177 = vshll.u32 2131351028, %v2168
      %v2178 = vshrl.u32 2102212464, %v2169
      %v2179 = vor.u32 %v2177, %v2178
      %v2180 = vshll.u32 2102212464, %v2168
      %v2181 = vshrl.u32 920167782, %v2169
      %v2182 = vor.u32 %v2180, %v2181
      %v2183 = vshll.u32 920167782, %v2168
      %v2184 = vshrl.u32 1326507024, %v2169
      %v2185 = vor.u32 %v2183, %v2184
      %vm2186 = vcmp.lt.s32.totalorder %v2167, 1
      %vm2187 = vcmp.lt.s32.totalorder %v2167, 2
      %vm2188 = vcmp.lt.s32.totalorder %v2167, 3
      %vm2189 = vcmp.lt.s32.totalorder %v2167, 4
      %v2190 = vsel %vm2186, %v2170, %v2173
      %v2191 = vsel %vm2189, %v2179, 2102212464
      %v2192 = vsel %vm2188, %v2176, %v2191
      %v2193 = vsel %vm2187, %v2190, %v2192
      %v2194 = vsel %vm2186, %v2173, %v2176
      %v2195 = vsel %vm2189, %v2182, 920167782
      %v2196 = vsel %vm2188, %v2179, %v2195
      %v2197 = vsel %vm2187, %v2194, %v2196
      %v2198 = vsel %vm2186, %v2176, %v2179
      %v2199 = vsel %vm2189, %v2185, 1326507024
      %v2200 = vsel %vm2188, %v2182, %v2199
      %v2201 = vsel %vm2187, %v2198, %v2200
      %v2202 = vshll.u32 %v2162, 8
      %v2203 = vand.u32 %v2202, 65535
      %v2204 = vshrl.u32 %v2202, 16
      %v2205 = vand.u32 %v2201, 65535
      %v2206 = vshrl.u32 %v2201, 16
      %v2207 = vmul.u32 %v2203, %v2205
      %v2208 = vmul.u32 %v2203, %v2206
      %v2209 = vmul.u32 %v2204, %v2205
      %v2210 = vmul.u32 %v2204, %v2206
      %v2211 = vshll.u32 %v2208, 16
      %v2212 = vshrl.u32 %v2208, 16
      %v2213 = vshll.u32 %v2209, 16
      %v2214 = vshrl.u32 %v2209, 16
      %vm2215 = vc.u32 %v2207, %v2211
      %v2216 = vsel %vm2215, 1, 0
      %v2217 = vadd.s32 %v2207, %v2211
      %v2218 = vadd.s32 %v2210, %v2216
      %vm2219 = vc.u32 %v2217, %v2213
      %v2220 = vsel %vm2219, 1, 0
      %v2221 = vadd.s32 %v2217, %v2213
      %v2222 = vadd.s32 %v2218, %v2220
      %v2223 = vadd.s32 %v2222, %v2212
      %v2224 = vadd.s32 %v2223, %v2214
      %v2225 = vand.u32 %v2202, 65535
      %v2226 = vshrl.u32 %v2202, 16
      %v2227 = vand.u32 %v2197, 65535
      %v2228 = vshrl.u32 %v2197, 16
      %v2229 = vmul.u32 %v2225, %v2227
      %v2230 = vmul.u32 %v2225, %v2228
      %v2231 = vmul.u32 %v2226, %v2227
      %v2232 = vmul.u32 %v2226, %v2228
      %v2233 = vshll.u32 %v2230, 16
      %v2234 = vshrl.u32 %v2230, 16
      %v2235 = vshll.u32 %v2231, 16
      %v2236 = vshrl.u32 %v2231, 16
      %vm2237 = vc.u32 %v2229, %v2233
      %v2238 = vsel %vm2237, 1, 0
      %v2239 = vadd.s32 %v2229, %v2233
      %v2240 = vadd.s32 %v2232, %v2238
      %vm2241 = vc.u32 %v2239, %v2235
      %v2242 = vsel %vm2241, 1, 0
      %v2243 = vadd.s32 %v2239, %v2235
      %v2244 = vadd.s32 %v2240, %v2242
      %v2245 = vadd.s32 %v2244, %v2234
      %v2246 = vadd.s32 %v2245, %v2236
      %v2247 = vmul.u32 %v2202, %v2193
      %v2248 = vadd.s32 %v2224, %v2243
      %vm2249 = vc.u32 %v2224, %v2243
      %v2250 = vadd.s32 %v2246, 1
      %v2251 = vsel %vm2249, %v2250, %v2246
      %v2252 = vadd.s32 %v2247, %v2251
      %v2253 = vadd.s32 %v2252, 536870912
      %v2254 = vshrl.u32 %v2253, 30
      %v2255 = vshll.u32 %v2254, 30
      %v2256 = vsub.s32 %v2252, %v2255
      %vm2257 = vcmp.lt.s32.totalorder %v2256, 0
      %v2258 = vsub.s32 0, %v2256
      %v2259 = vsel %vm2257, %v2258, %v2256
      %v2260 = vclz %v2259
      %v2261 = vsub.s32 %v2260, 2
      %vm2262 = vcmp.gt.s32.totalorder 0, %v2261
      %v2263 = vsel %vm2262, 0, %v2261
      %v2264 = vsub.s32 32, %v2263
      %v2265 = vshll.u32 %v2256, %v2263
      %v2266 = vshrl.u32 %v2248, %v2264
      %v2267 = vor.u32 %v2265, %v2266
      %v2268 = vsub.s32 4294967266, %v2263
      %v2269 = vadd.s32 %v2268, 127
      %v2270 = vshll.u32 %v2269, 23
      %v2271 = vor.u32 4788187, %v2270
      %v2272 = vand.u32 2147483647, %v2271
      %v2274 = vcvt.s32.f32 %v2267
      %v2275 = vmul.f32 %v2274, %v2272
      %v2276 = vxor.u32 %v2275, 2147483648
      %v2277 = vsel %vm2156, %v2276, %v2275
      %v2278 = vsub.s32 4, %v2254
      %v2279 = vsel %vm2156, %v2278, %v2254
      %v2280 = vsel %vm2155, %v1199, %v2277
      %v2281 = vsel %vm2155, 0, %v2279
      %v2282 = vmul.f32 %v2280, %v2280
      %v2283 = vmul.f32 %v2282, -0.001358992
      %v2284 = vadd.f32 %v2283, 0.041655596
      %v2285 = vmul.f32 %v2282, %v2284
      %v2286 = vadd.f32 %v2285, -0.4999988
      %v2287 = vmul.f32 %v2282, %v2286
      %v2288 = vadd.f32 1.0, %v2287
      %v2289 = vmul.f32 %v2280, %v2280
      %v2290 = vmul.f32 %v2289, -0.00019511016
      %v2291 = vadd.f32 %v2290, 0.008332121
      %v2292 = vmul.f32 %v2289, %v2291
      %v2293 = vadd.f32 %v2292, -0.16666654
      %v2294 = vmul.f32 %v2289, %v2293
      %v2295 = vadd.f32 %v2294, 1.0
      %v2296 = vmul.f32 %v2295, %v2280
      %vm2297 = vweird.f32 %v1199
      %v2298 = vand.u32 %v2281, 3
      %vm2299 = vcmp.lt.s32.totalorder %v2298, 2
      %vm2300 = vcmp.eq.s32.totalorder %v2298, 0
      %v2301 = vxor.u32 %v2296, 2147483648
      %v2302 = vsel %vm2300, %v2288, %v2301
      %vm2303 = vcmp.eq.s32.totalorder %v2298, 2
      %v2304 = vxor.u32 %v2288, 2147483648
      %v2305 = vsel %vm2303, %v2304, %v2296
      %v2306 = vsel %vm2299, %v2302, %v2305
      %v2307 = vsel %vm2297, nan, %v2306
      %v2308 = vand.u32 2147483647, %v1222
      %vm2309 = vcmp.le.f32.partialorder %v2308, 0.7853982
      %vm2310 = vcmp.lt.s32.totalorder %v1222, 0
      %v2311 = vand.u32 %v1222, 2139095040
      %v2312 = vshrl.u32 %v2311, 23
      %v2313 = vsub.s32 %v2312, 127
      %v2314 = vand.u32 2147483647, %v1222
      %v2315 = vand.u32 %v2314, 8388607
      %v2316 = vor.u32 %v2315, 8388608
      %v2317 = vsub.s32 0, %v2316
      %v2318 = vadd.s32 %v2313, 1
      %vm2319 = vcmp.gt.s32.totalorder %v2318, 0
      %v2320 = vsel %vm2319, %v2318, 0
      %v2321 = vshrl.u32 %v2320, 5
      %v2322 = vand.u32 %v2320, 31
      %v2323 = vsub.s32 32, %v2322
      %v2324 = vshrl.u32 683565275, %v2323
      %v2325 = vshll.u32 683565275, %v2322
      %v2326 = vshrl.u32 2475754826, %v2323
      %v2327 = vor.u32 %v2325, %v2326
      %v2328 = vshll.u32 2475754826, %v2322
      %v2329 = vshrl.u32 2131351028, %v2323
      %v2330 = vor.u32 %v2328, %v2329
      %v2331 = vshll.u32 2131351028, %v2322
      %v2332 = vshrl.u32 2102212464, %v2323
      %v2333 = vor.u32 %v2331, %v2332
      %v2334 = vshll.u32 2102212464, %v2322
      %v2335 = vshrl.u32 920167782, %v2323
      %v2336 = vor.u32 %v2334, %v2335
      %v2337 = vshll.u32 920167782, %v2322
      %v2338 = vshrl.u32 1326507024, %v2323
      %v2339 = vor.u32 %v2337, %v2338
      %vm2340 = vcmp.lt.s32.totalorder %v2321, 1
      %vm2341 = vcmp.lt.s32.totalorder %v2321, 2
      %vm2342 = vcmp.lt.s32.totalorder %v2321, 3
      %vm2343 = vcmp.lt.s32.totalorder %v2321, 4
      %v2344 = vsel %vm2340, %v2324, %v2327
      %v2345 = vsel %vm2343, %v2333, 2102212464
      %v2346 = vsel %vm2342, %v2330, %v2345
      %v2347 = vsel %vm2341, %v2344, %v2346
      %v2348 = vsel %vm2340, %v2327, %v2330
      %v2349 = vsel %vm2343, %v2336, 920167782
      %v2350 = vsel %vm2342, %v2333, %v2349
      %v2351 = vsel %vm2341, %v2348, %v2350
      %v2352 = vsel %vm2340, %v2330, %v2333
      %v2353 = vsel %vm2343, %v2339, 1326507024
      %v2354 = vsel %vm2342, %v2336, %v2353
      %v2355 = vsel %vm2341, %v2352, %v2354
      %v2356 = vshll.u32 %v2316, 8
      %v2357 = vand.u32 %v2356, 65535
      %v2358 = vshrl.u32 %v2356, 16
      %v2359 = vand.u32 %v2355, 65535
      %v2360 = vshrl.u32 %v2355, 16
      %v2361 = vmul.u32 %v2357, %v2359
      %v2362 = vmul.u32 %v2357, %v2360
      %v2363 = vmul.u32 %v2358, %v2359
      %v2364 = vmul.u32 %v2358, %v2360
      %v2365 = vshll.u32 %v2362, 16
      %v2366 = vshrl.u32 %v2362, 16
      %v2367 = vshll.u32 %v2363, 16
      %v2368 = vshrl.u32 %v2363, 16
      %vm2369 = vc.u32 %v2361, %v2365
      %v2370 = vsel %vm2369, 1, 0
      %v2371 = vadd.s32 %v2361, %v2365
      %v2372 = vadd.s32 %v2364, %v2370
      %vm2373 = vc.u32 %v2371, %v2367
      %v2374 = vsel %vm2373, 1, 0
      %v2375 = vadd.s32 %v2371, %v2367
      %v2376 = vadd.s32 %v2372, %v2374
      %v2377 = vadd.s32 %v2376, %v2366
      %v2378 = vadd.s32 %v2377, %v2368
      %v2379 = vand.u32 %v2356, 65535
      %v2380 = vshrl.u32 %v2356, 16
      %v2381 = vand.u32 %v2351, 65535
      %v2382 = vshrl.u32 %v2351, 16
      %v2383 = vmul.u32 %v2379, %v2381
      %v2384 = vmul.u32 %v2379, %v2382
      %v2385 = vmul.u32 %v2380, %v2381
      %v2386 = vmul.u32 %v2380, %v2382
      %v2387 = vshll.u32 %v2384, 16
      %v2388 = vshrl.u32 %v2384, 16
      %v2389 = vshll.u32 %v2385, 16
      %v2390 = vshrl.u32 %v2385, 16
      %vm2391 = vc.u32 %v2383, %v2387
      %v2392 = vsel %vm2391, 1, 0
      %v2393 = vadd.s32 %v2383, %v2387
      %v2394 = vadd.s32 %v2386, %v2392
      %vm2395 = vc.u32 %v2393, %v2389
      %v2396 = vsel %vm2395, 1, 0
      %v2397 = vadd.s32 %v2393, %v2389
      %v2398 = vadd.s32 %v2394, %v2396
      %v2399 = vadd.s32 %v2398, %v2388
      %v2400 = vadd.s32 %v2399, %v2390
      %v2401 = vmul.u32 %v2356, %v2347
      %v2402 = vadd.s32 %v2378, %v2397
      %vm2403 = vc.u32 %v2378, %v2397
      %v2404 = vadd.s32 %v2400, 1
      %v2405 = vsel %vm2403, %v2404, %v2400
      %v2406 = vadd.s32 %v2401, %v2405
      %v2407 = vadd.s32 %v2406, 536870912
      %v2408 = vshrl.u32 %v2407, 30
      %v2409 = vshll.u32 %v2408, 30
      %v2410 = vsub.s32 %v2406, %v2409
      %vm2411 = vcmp.lt.s32.totalorder %v2410, 0
      %v2412 = vsub.s32 0, %v2410
      %v2413 = vsel %vm2411, %v2412, %v2410
      %v2414 = vclz %v2413
      %v2415 = vsub.s32 %v2414, 2
      %vm2416 = vcmp.gt.s32.totalorder 0, %v2415
      %v2417 = vsel %vm2416, 0, %v2415
      %v2418 = vsub.s32 32, %v2417
      %v2419 = vshll.u32 %v2410, %v2417
      %v2420 = vshrl.u32 %v2402, %v2418
      %v2421 = vor.u32 %v2419, %v2420
      %v2422 = vsub.s32 4294967266, %v2417
      %v2423 = vadd.s32 %v2422, 127
      %v2424 = vshll.u32 %v2423, 23
      %v2425 = vor.u32 4788187, %v2424
      %v2426 = vand.u32 2147483647, %v2425
      %v2428 = vcvt.s32.f32 %v2421
      %v2429 = vmul.f32 %v2428, %v2426
      %v2430 = vxor.u32 %v2429, 2147483648
      %v2431 = vsel %vm2310, %v2430, %v2429
      %v2432 = vsub.s32 4, %v2408
      %v2433 = vsel %vm2310, %v2432, %v2408
      %v2434 = vsel %vm2309, %v1222, %v2431
      %v2435 = vsel %vm2309, 0, %v2433
      %v2436 = vmul.f32 %v2434, %v2434
      %v2437 = vmul.f32 %v2436, -0.001358992
      %v2438 = vadd.f32 %v2437, 0.041655596
      %v2439 = vmul.f32 %v2436, %v2438
      %v2440 = vadd.f32 %v2439, -0.4999988
      %v2441 = vmul.f32 %v2436, %v2440
      %v2442 = vadd.f32 1.0, %v2441
      %v2443 = vmul.f32 %v2434, %v2434
      %v2444 = vmul.f32 %v2443, -0.00019511016
      %v2445 = vadd.f32 %v2444, 0.008332121
      %v2446 = vmul.f32 %v2443, %v2445
      %v2447 = vadd.f32 %v2446, -0.16666654
      %v2448 = vmul.f32 %v2443, %v2447
      %v2449 = vadd.f32 %v2448, 1.0
      %v2450 = vmul.f32 %v2449, %v2434
      %vm2451 = vweird.f32 %v1222
      %v2452 = vand.u32 %v2435, 3
      %vm2453 = vcmp.lt.s32.totalorder %v2452, 2
      %vm2454 = vcmp.eq.s32.totalorder %v2452, 0
      %v2455 = vxor.u32 %v2450, 2147483648
      %v2456 = vsel %vm2454, %v2442, %v2455
      %vm2457 = vcmp.eq.s32.totalorder %v2452, 2
      %v2458 = vxor.u32 %v2442, 2147483648
      %v2459 = vsel %vm2457, %v2458, %v2450
      %v2460 = vsel %vm2453, %v2456, %v2459
      %v2461 = vsel %vm2451, nan, %v2460
      %v2462 = vpack.c.bf16 %v2307, %v1999
      %v2463 = vpack.c.bf16 %v2461, %v2153
      %v2464 = vld [vmem:[%s1051] sm:$0xf]
      %v2465 = vld [vmem:[%s1051 + $0x4] sm:$0xf]
      %v2466 = vld [vmem:[%s1051 + $0x8] sm:$0xf]
      %v2467 = vld [vmem:[%s1051 + $0xc] sm:$0xf]
      %v2468 = vld [vmem:[%s1056] sm:$0xf]
      %v2469 = vld [vmem:[%s1056 + $0x4] sm:$0xf]
      %v2470 = vld [vmem:[%s1056 + $0x8] sm:$0xf]
      %v2471 = vld [vmem:[%s1056 + $0xc] sm:$0xf]
      %v2472 = vld [vmem:[%s1061] sm:$0xff]
      %v2473 = vld [vmem:[%s1061 + $0x8] sm:$0xff]
      %v2474 = vld [vmem:[%s1061 + $0x10] sm:$0xff]
      %v2475 = vld [vmem:[%s1061 + $0x18] sm:$0xff]
      %v2480 = vunpack.c.l.b16 %v2468
      %v2481 = vunpack.c.l.b16 %v2469
      %v2482 = vunpack.c.l.b16 %v2470
      %v2483 = vunpack.c.l.b16 %v2471
      %v2484 = vpack.c.b16 %v2481, %v2480
      %v2485 = vpack.c.b16 %v2483, %v2482
      %vm2486 = vcmask 97280
      %v2488 = vsel %vm2486, %v2484, 0
      %v2491 = vsel %vm2486, %v2485, 0
      %vm2493 = vcmask 1045504
      %v2495 = vsel %vm2493, %v2462, 0
      %v2498 = vsel %vm2493, %v2463, 0
      %2500 = vmatpush.bf16.msra.mxu0 0
      %2501 = vmatpush.bf16.msra.mxu0 0
      %2502 = vmatpush.bf16.msra.mxu0 0
      %2503 = vmatpush.bf16.msra.mxu0 0
      %2504 = vmatpush.bf16.msra.mxu0 0
      %2505 = vmatpush.bf16.msra.mxu0 0
      %2506 = vmatpush.bf16.msra.mxu0 0
      %2507 = vmatpush.bf16.msra.mxu0 %v2495
      %2508 = vmatmul.bf16.gmra.mxu0 %v2488
      %v2509 = vpop.f32.mrf.mxu0
      %v2510 = vadd.f32 0.0, %v2509
      %v2511 = vpop.f32.mrf.mxu0
      %v2512 = vadd.f32 0.0, %v2511
      %2513 = vmatmul.bf16.gmra.mxu0 %v2491
      %v2514 = vpop.f32.mrf.mxu0
      %v2515 = vadd.f32 0.0, %v2514
      %v2516 = vpop.f32.mrf.mxu0
      %v2517 = vadd.f32 0.0, %v2516
      %2518 = vdwg.mxu0
      %2519 = vmatpush.bf16.msra.mxu0 0
      %2520 = vmatpush.bf16.msra.mxu0 0
      %2521 = vmatpush.bf16.msra.mxu0 0
      %2522 = vmatpush.bf16.msra.mxu0 0
      %2523 = vmatpush.bf16.msra.mxu0 0
      %2524 = vmatpush.bf16.msra.mxu0 0
      %2525 = vmatpush.bf16.msra.mxu0 0
      %2526 = vmatpush.bf16.msra.mxu0 %v2498
      %2527 = vmatmul.bf16.gmra.mxu0 %v2488
      %v2528 = vpop.f32.mrf.mxu0
      %v2529 = vadd.f32 0.0, %v2528
      %v2530 = vpop.f32.mrf.mxu0
      %v2531 = vadd.f32 0.0, %v2530
      %2532 = vmatmul.bf16.gmra.mxu0 %v2491
      %v2533 = vpop.f32.mrf.mxu0
      %v2534 = vadd.f32 0.0, %v2533
      %v2535 = vpop.f32.mrf.mxu0
      %v2536 = vadd.f32 0.0, %v2535
      %2537 = vdwg.mxu0
      %v2542 = vunpack.c.l.b16 %v2464
      %v2543 = vunpack.c.l.b16 %v2465
      %v2544 = vunpack.c.l.b16 %v2466
      %v2545 = vunpack.c.l.b16 %v2467
      %v2546 = vpack.c.b16 %v2543, %v2542
      %v2547 = vpack.c.b16 %v2545, %v2544
      %v2549 = vsel %vm2486, %v2546, 0
      %v2552 = vsel %vm2486, %v2547, 0
      %v2555 = vsel %vm2493, %v1844, 0
      %v2558 = vsel %vm2493, %v1845, 0
      %2560 = vmatpush.bf16.msra.mxu0 0
      %2561 = vmatpush.bf16.msra.mxu0 0
      %2562 = vmatpush.bf16.msra.mxu0 0
      %2563 = vmatpush.bf16.msra.mxu0 0
      %2564 = vmatpush.bf16.msra.mxu0 0
      %2565 = vmatpush.bf16.msra.mxu0 0
      %2566 = vmatpush.bf16.msra.mxu0 0
      %2567 = vmatpush.bf16.msra.mxu0 %v2555
      %2568 = vmatmul.bf16.gmra.mxu0 %v2549
      %v2569 = vpop.f32.mrf.mxu0
      %v2570 = vadd.f32 %v2510, %v2569
      %v2571 = vpop.f32.mrf.mxu0
      %v2572 = vadd.f32 %v2512, %v2571
      %2573 = vmatmul.bf16.gmra.mxu0 %v2552
      %v2574 = vpop.f32.mrf.mxu0
      %v2575 = vadd.f32 %v2515, %v2574
      %v2576 = vpop.f32.mrf.mxu0
      %v2577 = vadd.f32 %v2517, %v2576
      %2578 = vdwg.mxu0
      %2579 = vmatpush.bf16.msra.mxu0 0
      %2580 = vmatpush.bf16.msra.mxu0 0
      %2581 = vmatpush.bf16.msra.mxu0 0
      %2582 = vmatpush.bf16.msra.mxu0 0
      %2583 = vmatpush.bf16.msra.mxu0 0
      %2584 = vmatpush.bf16.msra.mxu0 0
      %2585 = vmatpush.bf16.msra.mxu0 0
      %2586 = vmatpush.bf16.msra.mxu0 %v2558
      %2587 = vmatmul.bf16.gmra.mxu0 %v2549
      %v2588 = vpop.f32.mrf.mxu0
      %v2589 = vadd.f32 %v2529, %v2588
      %v2590 = vpop.f32.mrf.mxu0
      %v2591 = vadd.f32 %v2531, %v2590
      %2592 = vmatmul.bf16.gmra.mxu0 %v2552
      %v2593 = vpop.f32.mrf.mxu0
      %v2594 = vadd.f32 %v2534, %v2593
      %v2595 = vpop.f32.mrf.mxu0
      %v2596 = vadd.f32 %v2536, %v2595
      %2597 = vdwg.mxu0
      %2599 = vset.pattern.permute.xlu0 0
      %2600 = vperm.xlu0 %2599, %v2472
      %v2601 = vpop.permute.xlu0 %2600
      %2604 = vset.pattern.permute.xlu0 0
      %2605 = vperm.xlu0 %2604, %v2473
      %v2606 = vpop.permute.xlu0 %2605
      %2609 = vset.pattern.permute.xlu0 0
      %2610 = vperm.xlu0 %2609, %v2474
      %v2611 = vpop.permute.xlu0 %2610
      %2614 = vset.pattern.permute.xlu0 0
      %2615 = vperm.xlu0 %2614, %v2475
      %v2616 = vpop.permute.xlu0 %2615
      %v2618 = vadd.f32 %v2570, %v2601
      %v2619 = vadd.f32 %v2589, %v2601
      %v2620 = vadd.f32 %v2572, %v2606
      %v2621 = vadd.f32 %v2591, %v2606
      %v2622 = vadd.f32 %v2575, %v2611
      %v2623 = vadd.f32 %v2594, %v2611
      %v2624 = vadd.f32 %v2577, %v2616
      %v2625 = vadd.f32 %v2596, %v2616
      %v2626 = vmax.f32 %v2618, 0.0
      %v2627 = vmax.f32 %v2619, 0.0
      %v2628 = vmax.f32 %v2620, 0.0
      %v2629 = vmax.f32 %v2621, 0.0
      %v2630 = vmax.f32 %v2622, 0.0
      %v2631 = vmax.f32 %v2623, 0.0
      %v2632 = vmax.f32 %v2624, 0.0
      %v2633 = vmax.f32 %v2625, 0.0
      %v2634 = vpack.c.bf16 %v2628, %v2626
      %v2635 = vpack.c.bf16 %v2629, %v2627
      %v2636 = vpack.c.bf16 %v2632, %v2630
      %v2637 = vpack.c.bf16 %v2633, %v2631
      %v2638 = vld [vmem:[%s1066] sm:$0xf]
      %v2639 = vld [vmem:[%s1066 + $0x4] sm:$0xf]
      %v2640 = vld [vmem:[%s1066 + $0x8] sm:$0xf]
      %v2641 = vld [vmem:[%s1066 + $0xc] sm:$0xf]
      %v2642 = vld [vmem:[%s1071] sm:$0xff]
      %v2643 = vld [vmem:[%s1071 + $0x8] sm:$0xff]
      %v2644 = vld [vmem:[%s1071 + $0x10] sm:$0xff]
      %v2645 = vld [vmem:[%s1071 + $0x18] sm:$0xff]
      %2647 = vset.pattern.permute.xlu0 0
      %2648 = vperm.xlu0 %2647, %v2642
      %v2649 = vpop.permute.xlu0 %2648
      %2652 = vset.pattern.permute.xlu0 0
      %2653 = vperm.xlu0 %2652, %v2643
      %v2654 = vpop.permute.xlu0 %2653
      %2657 = vset.pattern.permute.xlu0 0
      %2658 = vperm.xlu0 %2657, %v2644
      %v2659 = vpop.permute.xlu0 %2658
      %2662 = vset.pattern.permute.xlu0 0
      %2663 = vperm.xlu0 %2662, %v2645
      %v2664 = vpop.permute.xlu0 %2663
      %v2670 = vunpack.c.l.b16 %v2638
      %v2671 = vunpack.c.l.b16 %v2639
      %v2672 = vunpack.c.l.b16 %v2640
      %v2673 = vunpack.c.l.b16 %v2641
      %v2674 = vpack.c.b16 %v2671, %v2670
      %v2675 = vpack.c.b16 %v2673, %v2672
      %vm2676 = vcmask 261120
      %v2678 = vsel %vm2676, %v2674, 0
      %v2681 = vsel %vm2676, %v2675, 0
      %2683 = vmatpush.bf16.msra.mxu0 0
      %2684 = vmatpush.bf16.msra.mxu0 0
      %2685 = vmatpush.bf16.msra.mxu0 0
      %2686 = vmatpush.bf16.msra.mxu0 0
      %2687 = vmatpush.bf16.msra.mxu0 0
      %2688 = vmatpush.bf16.msra.mxu0 0
      %2689 = vmatpush.bf16.msra.mxu0 %v2636
      %2690 = vmatpush.bf16.msra.mxu0 %v2634
      %2691 = vmatmul.bf16.gmra.mxu0 %v2678
      %v2692 = vpop.f32.mrf.mxu0
      %v2693 = vadd.f32 %v2649, %v2692
      %v2694 = vpop.f32.mrf.mxu0
      %v2695 = vadd.f32 %v2654, %v2694
      %2696 = vmatmul.bf16.gmra.mxu0 %v2681
      %v2697 = vpop.f32.mrf.mxu0
      %v2698 = vadd.f32 %v2659, %v2697
      %v2699 = vpop.f32.mrf.mxu0
      %v2700 = vadd.f32 %v2664, %v2699
      %2701 = vdwg.mxu0
      %2702 = vmatpush.bf16.msra.mxu0 0
      %2703 = vmatpush.bf16.msra.mxu0 0
      %2704 = vmatpush.bf16.msra.mxu0 0
      %2705 = vmatpush.bf16.msra.mxu0 0
      %2706 = vmatpush.bf16.msra.mxu0 0
      %2707 = vmatpush.bf16.msra.mxu0 0
      %2708 = vmatpush.bf16.msra.mxu0 %v2637
      %2709 = vmatpush.bf16.msra.mxu0 %v2635
      %2710 = vmatmul.bf16.gmra.mxu0 %v2678
      %v2711 = vpop.f32.mrf.mxu0
      %v2712 = vadd.f32 %v2649, %v2711
      %v2713 = vpop.f32.mrf.mxu0
      %v2714 = vadd.f32 %v2654, %v2713
      %2715 = vmatmul.bf16.gmra.mxu0 %v2681
      %v2716 = vpop.f32.mrf.mxu0
      %v2717 = vadd.f32 %v2659, %v2716
      %v2718 = vpop.f32.mrf.mxu0
      %v2719 = vadd.f32 %v2664, %v2718
      %2720 = vdwg.mxu0
      %v2721 = vmax.f32 %v2693, 0.0
      %v2722 = vmax.f32 %v2712, 0.0
      %v2723 = vmax.f32 %v2695, 0.0
      %v2724 = vmax.f32 %v2714, 0.0
      %v2725 = vmax.f32 %v2698, 0.0
      %v2726 = vmax.f32 %v2717, 0.0
      %v2727 = vmax.f32 %v2700, 0.0
      %v2728 = vmax.f32 %v2719, 0.0
      %v2729 = vpack.c.bf16 %v2723, %v2721
      %v2730 = vpack.c.bf16 %v2724, %v2722
      %v2731 = vpack.c.bf16 %v2727, %v2725
      %v2732 = vpack.c.bf16 %v2728, %v2726
      %v2733 = vld [vmem:[%s1076] sm:$0xf]
      %v2734 = vld [vmem:[%s1076 + $0x4] sm:$0xf]
      %v2735 = vld [vmem:[%s1076 + $0x8] sm:$0xf]
      %v2736 = vld [vmem:[%s1076 + $0xc] sm:$0xf]
      %v2737 = vld [vmem:[%s1081] sm:$0xff]
      %v2738 = vld [vmem:[%s1081 + $0x8] sm:$0xff]
      %v2739 = vld [vmem:[%s1081 + $0x10] sm:$0xff]
      %v2740 = vld [vmem:[%s1081 + $0x18] sm:$0xff]
      %2742 = vset.pattern.permute.xlu0 0
      %2743 = vperm.xlu0 %2742, %v2737
      %v2744 = vpop.permute.xlu0 %2743
      %2747 = vset.pattern.permute.xlu0 0
      %2748 = vperm.xlu0 %2747, %v2738
      %v2749 = vpop.permute.xlu0 %2748
      %2752 = vset.pattern.permute.xlu0 0
      %2753 = vperm.xlu0 %2752, %v2739
      %v2754 = vpop.permute.xlu0 %2753
      %2757 = vset.pattern.permute.xlu0 0
      %2758 = vperm.xlu0 %2757, %v2740
      %v2759 = vpop.permute.xlu0 %2758
      %v2765 = vunpack.c.l.b16 %v2733
      %v2766 = vunpack.c.l.b16 %v2734
      %v2767 = vunpack.c.l.b16 %v2735
      %v2768 = vunpack.c.l.b16 %v2736
      %v2769 = vpack.c.b16 %v2766, %v2765
      %v2770 = vpack.c.b16 %v2768, %v2767
      %v2772 = vsel %vm2676, %v2769, 0
      %v2775 = vsel %vm2676, %v2770, 0
      %2777 = vmatpush.bf16.msra.mxu0 0
      %2778 = vmatpush.bf16.msra.mxu0 0
      %2779 = vmatpush.bf16.msra.mxu0 0
      %2780 = vmatpush.bf16.msra.mxu0 0
      %2781 = vmatpush.bf16.msra.mxu0 0
      %2782 = vmatpush.bf16.msra.mxu0 0
      %2783 = vmatpush.bf16.msra.mxu0 %v2731
      %2784 = vmatpush.bf16.msra.mxu0 %v2729
      %2785 = vmatmul.bf16.gmra.mxu0 %v2772
      %v2786 = vpop.f32.mrf.mxu0
      %v2787 = vadd.f32 %v2744, %v2786
      %v2788 = vpop.f32.mrf.mxu0
      %v2789 = vadd.f32 %v2749, %v2788
      %2790 = vmatmul.bf16.gmra.mxu0 %v2775
      %v2791 = vpop.f32.mrf.mxu0
      %v2792 = vadd.f32 %v2754, %v2791
      %v2793 = vpop.f32.mrf.mxu0
      %v2794 = vadd.f32 %v2759, %v2793
      %2795 = vdwg.mxu0
      %2796 = vmatpush.bf16.msra.mxu0 0
      %2797 = vmatpush.bf16.msra.mxu0 0
      %2798 = vmatpush.bf16.msra.mxu0 0
      %2799 = vmatpush.bf16.msra.mxu0 0
      %2800 = vmatpush.bf16.msra.mxu0 0
      %2801 = vmatpush.bf16.msra.mxu0 0
      %2802 = vmatpush.bf16.msra.mxu0 %v2732
      %2803 = vmatpush.bf16.msra.mxu0 %v2730
      %2804 = vmatmul.bf16.gmra.mxu0 %v2772
      %v2805 = vpop.f32.mrf.mxu0
      %v2806 = vadd.f32 %v2744, %v2805
      %v2807 = vpop.f32.mrf.mxu0
      %v2808 = vadd.f32 %v2749, %v2807
      %2809 = vmatmul.bf16.gmra.mxu0 %v2775
      %v2810 = vpop.f32.mrf.mxu0
      %v2811 = vadd.f32 %v2754, %v2810
      %v2812 = vpop.f32.mrf.mxu0
      %v2813 = vadd.f32 %v2759, %v2812
      %2814 = vdwg.mxu0
      %v2815 = vmax.f32 %v2787, 0.0
      %v2816 = vmax.f32 %v2806, 0.0
      %v2817 = vmax.f32 %v2789, 0.0
      %v2818 = vmax.f32 %v2808, 0.0
      %v2819 = vmax.f32 %v2792, 0.0
      %v2820 = vmax.f32 %v2811, 0.0
      %v2821 = vmax.f32 %v2794, 0.0
      %v2822 = vmax.f32 %v2813, 0.0
      %v2823 = vpack.c.bf16 %v2817, %v2815
      %v2824 = vpack.c.bf16 %v2818, %v2816
      %v2825 = vpack.c.bf16 %v2821, %v2819
      %v2826 = vpack.c.bf16 %v2822, %v2820
      %v2827 = vld [vmem:[%s1086] sm:$0xf]
      %v2828 = vld [vmem:[%s1086 + $0x4] sm:$0xf]
      %v2829 = vld [vmem:[%s1086 + $0x8] sm:$0xf]
      %v2830 = vld [vmem:[%s1086 + $0xc] sm:$0xf]
      %v2831 = vld [vmem:[%s1091] sm:$0xff]
      %v2832 = vld [vmem:[%s1091 + $0x8] sm:$0xff]
      %v2833 = vld [vmem:[%s1091 + $0x10] sm:$0xff]
      %v2834 = vld [vmem:[%s1091 + $0x18] sm:$0xff]
      %2836 = vset.pattern.permute.xlu0 0
      %2837 = vperm.xlu0 %2836, %v2831
      %v2838 = vpop.permute.xlu0 %2837
      %2841 = vset.pattern.permute.xlu0 0
      %2842 = vperm.xlu0 %2841, %v2832
      %v2843 = vpop.permute.xlu0 %2842
      %2846 = vset.pattern.permute.xlu0 0
      %2847 = vperm.xlu0 %2846, %v2833
      %v2848 = vpop.permute.xlu0 %2847
      %2851 = vset.pattern.permute.xlu0 0
      %2852 = vperm.xlu0 %2851, %v2834
      %v2853 = vpop.permute.xlu0 %2852
      %v2859 = vunpack.c.l.b16 %v2827
      %v2860 = vunpack.c.l.b16 %v2828
      %v2861 = vunpack.c.l.b16 %v2829
      %v2862 = vunpack.c.l.b16 %v2830
      %v2863 = vpack.c.b16 %v2860, %v2859
      %v2864 = vpack.c.b16 %v2862, %v2861
      %v2866 = vsel %vm2676, %v2863, 0
      %v2869 = vsel %vm2676, %v2864, 0
      %2871 = vmatpush.bf16.msra.mxu0 0
      %2872 = vmatpush.bf16.msra.mxu0 0
      %2873 = vmatpush.bf16.msra.mxu0 0
      %2874 = vmatpush.bf16.msra.mxu0 0
      %2875 = vmatpush.bf16.msra.mxu0 0
      %2876 = vmatpush.bf16.msra.mxu0 0
      %2877 = vmatpush.bf16.msra.mxu0 %v2825
      %2878 = vmatpush.bf16.msra.mxu0 %v2823
      %2879 = vmatmul.bf16.gmra.mxu0 %v2866
      %v2880 = vpop.f32.mrf.mxu0
      %v2881 = vadd.f32 %v2838, %v2880
      %v2882 = vpop.f32.mrf.mxu0
      %v2883 = vadd.f32 %v2843, %v2882
      %2884 = vmatmul.bf16.gmra.mxu0 %v2869
      %v2885 = vpop.f32.mrf.mxu0
      %v2886 = vadd.f32 %v2848, %v2885
      %v2887 = vpop.f32.mrf.mxu0
      %v2888 = vadd.f32 %v2853, %v2887
      %2889 = vdwg.mxu0
      %2890 = vmatpush.bf16.msra.mxu0 0
      %2891 = vmatpush.bf16.msra.mxu0 0
      %2892 = vmatpush.bf16.msra.mxu0 0
      %2893 = vmatpush.bf16.msra.mxu0 0
      %2894 = vmatpush.bf16.msra.mxu0 0
      %2895 = vmatpush.bf16.msra.mxu0 0
      %2896 = vmatpush.bf16.msra.mxu0 %v2826
      %2897 = vmatpush.bf16.msra.mxu0 %v2824
      %2898 = vmatmul.bf16.gmra.mxu0 %v2866
      %v2899 = vpop.f32.mrf.mxu0
      %v2900 = vadd.f32 %v2838, %v2899
      %v2901 = vpop.f32.mrf.mxu0
      %v2902 = vadd.f32 %v2843, %v2901
      %2903 = vmatmul.bf16.gmra.mxu0 %v2869
      %v2904 = vpop.f32.mrf.mxu0
      %v2905 = vadd.f32 %v2848, %v2904
      %v2906 = vpop.f32.mrf.mxu0
      %v2907 = vadd.f32 %v2853, %v2906
      %2908 = vdwg.mxu0
      %v2909 = vmax.f32 %v2881, 0.0
      %v2910 = vmax.f32 %v2900, 0.0
      %v2911 = vmax.f32 %v2883, 0.0
      %v2912 = vmax.f32 %v2902, 0.0
      %v2913 = vmax.f32 %v2886, 0.0
      %v2914 = vmax.f32 %v2905, 0.0
      %v2915 = vmax.f32 %v2888, 0.0
      %v2916 = vmax.f32 %v2907, 0.0
      %v2917 = vpack.c.bf16 %v2911, %v2909
      %v2918 = vpack.c.bf16 %v2912, %v2910
      %v2919 = vpack.c.bf16 %v2915, %v2913
      %v2920 = vpack.c.bf16 %v2916, %v2914
      %v2921 = vld [vmem:[%s1096] sm:$0xf]
      %v2922 = vld [vmem:[%s1096 + $0x4] sm:$0xf]
      %v2923 = vld [vmem:[%s1096 + $0x8] sm:$0xf]
      %v2924 = vld [vmem:[%s1096 + $0xc] sm:$0xf]
      %v2925 = vld [vmem:[%s1101] sm:$0xf]
      %v2926 = vld [vmem:[%s1101 + $0x4] sm:$0xf]
      %v2927 = vld [vmem:[%s1101 + $0x8] sm:$0xf]
      %v2928 = vld [vmem:[%s1101 + $0xc] sm:$0xf]
      %v2929 = vld [vmem:[%s1106] sm:$0xf]
      %v2930 = vld [vmem:[%s1106 + $0x4] sm:$0xf]
      %v2931 = vld [vmem:[%s1106 + $0x8] sm:$0xf]
      %v2932 = vld [vmem:[%s1106 + $0xc] sm:$0xf]
      %v2933 = vld [vmem:[%s1111] sm:$0xff]
      %v2934 = vld [vmem:[%s1111 + $0x8] sm:$0xff]
      %v2935 = vld [vmem:[%s1111 + $0x10] sm:$0xff]
      %v2936 = vld [vmem:[%s1111 + $0x18] sm:$0xff]
      %v2941 = vunpack.c.l.b16 %v2925
      %v2942 = vunpack.c.l.b16 %v2926
      %v2943 = vunpack.c.l.b16 %v2927
      %v2944 = vunpack.c.l.b16 %v2928
      %v2945 = vpack.c.b16 %v2942, %v2941
      %v2946 = vpack.c.b16 %v2944, %v2943
      %v2948 = vsel %vm2486, %v2945, 0
      %v2951 = vsel %vm2486, %v2946, 0
      %2953 = vmatpush.bf16.msra.mxu0 0
      %2954 = vmatpush.bf16.msra.mxu0 0
      %2955 = vmatpush.bf16.msra.mxu0 0
      %2956 = vmatpush.bf16.msra.mxu0 0
      %2957 = vmatpush.bf16.msra.mxu0 0
      %2958 = vmatpush.bf16.msra.mxu0 0
      %2959 = vmatpush.bf16.msra.mxu0 0
      %2960 = vmatpush.bf16.msra.mxu0 %v2555
      %2961 = vmatmul.bf16.gmra.mxu0 %v2948
      %v2962 = vpop.f32.mrf.mxu0
      %v2963 = vadd.f32 0.0, %v2962
      %v2964 = vpop.f32.mrf.mxu0
      %v2965 = vadd.f32 0.0, %v2964
      %2966 = vmatmul.bf16.gmra.mxu0 %v2951
      %v2967 = vpop.f32.mrf.mxu0
      %v2968 = vadd.f32 0.0, %v2967
      %v2969 = vpop.f32.mrf.mxu0
      %v2970 = vadd.f32 0.0, %v2969
      %2971 = vdwg.mxu0
      %2972 = vmatpush.bf16.msra.mxu0 0
      %2973 = vmatpush.bf16.msra.mxu0 0
      %2974 = vmatpush.bf16.msra.mxu0 0
      %2975 = vmatpush.bf16.msra.mxu0 0
      %2976 = vmatpush.bf16.msra.mxu0 0
      %2977 = vmatpush.bf16.msra.mxu0 0
      %2978 = vmatpush.bf16.msra.mxu0 0
      %2979 = vmatpush.bf16.msra.mxu0 %v2558
      %2980 = vmatmul.bf16.gmra.mxu0 %v2948
      %v2981 = vpop.f32.mrf.mxu0
      %v2982 = vadd.f32 0.0, %v2981
      %v2983 = vpop.f32.mrf.mxu0
      %v2984 = vadd.f32 0.0, %v2983
      %2985 = vmatmul.bf16.gmra.mxu0 %v2951
      %v2986 = vpop.f32.mrf.mxu0
      %v2987 = vadd.f32 0.0, %v2986
      %v2988 = vpop.f32.mrf.mxu0
      %v2989 = vadd.f32 0.0, %v2988
      %2990 = vdwg.mxu0
      %v2995 = vunpack.c.l.b16 %v2921
      %v2996 = vunpack.c.l.b16 %v2922
      %v2997 = vunpack.c.l.b16 %v2923
      %v2998 = vunpack.c.l.b16 %v2924
      %v2999 = vpack.c.b16 %v2996, %v2995
      %v3000 = vpack.c.b16 %v2998, %v2997
      %v3002 = vsel %vm2676, %v2999, 0
      %v3005 = vsel %vm2676, %v3000, 0
      %3007 = vmatpush.bf16.msra.mxu0 0
      %3008 = vmatpush.bf16.msra.mxu0 0
      %3009 = vmatpush.bf16.msra.mxu0 0
      %3010 = vmatpush.bf16.msra.mxu0 0
      %3011 = vmatpush.bf16.msra.mxu0 0
      %3012 = vmatpush.bf16.msra.mxu0 0
      %3013 = vmatpush.bf16.msra.mxu0 %v2919
      %3014 = vmatpush.bf16.msra.mxu0 %v2917
      %3015 = vmatmul.bf16.gmra.mxu0 %v3002
      %v3016 = vpop.f32.mrf.mxu0
      %v3017 = vadd.f32 %v2963, %v3016
      %v3018 = vpop.f32.mrf.mxu0
      %v3019 = vadd.f32 %v2965, %v3018
      %3020 = vmatmul.bf16.gmra.mxu0 %v3005
      %v3021 = vpop.f32.mrf.mxu0
      %v3022 = vadd.f32 %v2968, %v3021
      %v3023 = vpop.f32.mrf.mxu0
      %v3024 = vadd.f32 %v2970, %v3023
      %3025 = vdwg.mxu0
      %3026 = vmatpush.bf16.msra.mxu0 0
      %3027 = vmatpush.bf16.msra.mxu0 0
      %3028 = vmatpush.bf16.msra.mxu0 0
      %3029 = vmatpush.bf16.msra.mxu0 0
      %3030 = vmatpush.bf16.msra.mxu0 0
      %3031 = vmatpush.bf16.msra.mxu0 0
      %3032 = vmatpush.bf16.msra.mxu0 %v2920
      %3033 = vmatpush.bf16.msra.mxu0 %v2918
      %3034 = vmatmul.bf16.gmra.mxu0 %v3002
      %v3035 = vpop.f32.mrf.mxu0
      %v3036 = vadd.f32 %v2982, %v3035
      %v3037 = vpop.f32.mrf.mxu0
      %v3038 = vadd.f32 %v2984, %v3037
      %3039 = vmatmul.bf16.gmra.mxu0 %v3005
      %v3040 = vpop.f32.mrf.mxu0
      %v3041 = vadd.f32 %v2987, %v3040
      %v3042 = vpop.f32.mrf.mxu0
      %v3043 = vadd.f32 %v2989, %v3042
      %3044 = vdwg.mxu0
      %v3049 = vunpack.c.l.b16 %v2929
      %v3050 = vunpack.c.l.b16 %v2930
      %v3051 = vunpack.c.l.b16 %v2931
      %v3052 = vunpack.c.l.b16 %v2932
      %v3053 = vpack.c.b16 %v3050, %v3049
      %v3054 = vpack.c.b16 %v3052, %v3051
      %v3056 = vsel %vm2486, %v3053, 0
      %v3059 = vsel %vm2486, %v3054, 0
      %3061 = vmatpush.bf16.msra.mxu0 0
      %3062 = vmatpush.bf16.msra.mxu0 0
      %3063 = vmatpush.bf16.msra.mxu0 0
      %3064 = vmatpush.bf16.msra.mxu0 0
      %3065 = vmatpush.bf16.msra.mxu0 0
      %3066 = vmatpush.bf16.msra.mxu0 0
      %3067 = vmatpush.bf16.msra.mxu0 0
      %3068 = vmatpush.bf16.msra.mxu0 %v2495
      %3069 = vmatmul.bf16.gmra.mxu0 %v3056
      %v3070 = vpop.f32.mrf.mxu0
      %v3071 = vadd.f32 0.0, %v3070
      %v3072 = vpop.f32.mrf.mxu0
      %v3073 = vadd.f32 0.0, %v3072
      %3074 = vmatmul.bf16.gmra.mxu0 %v3059
      %v3075 = vpop.f32.mrf.mxu0
      %v3076 = vadd.f32 0.0, %v3075
      %v3077 = vpop.f32.mrf.mxu0
      %v3078 = vadd.f32 0.0, %v3077
      %3079 = vdwg.mxu0
      %3080 = vmatpush.bf16.msra.mxu0 0
      %3081 = vmatpush.bf16.msra.mxu0 0
      %3082 = vmatpush.bf16.msra.mxu0 0
      %3083 = vmatpush.bf16.msra.mxu0 0
      %3084 = vmatpush.bf16.msra.mxu0 0
      %3085 = vmatpush.bf16.msra.mxu0 0
      %3086 = vmatpush.bf16.msra.mxu0 0
      %3087 = vmatpush.bf16.msra.mxu0 %v2498
      %3088 = vmatmul.bf16.gmra.mxu0 %v3056
      %v3089 = vpop.f32.mrf.mxu0
      %v3090 = vadd.f32 0.0, %v3089
      %v3091 = vpop.f32.mrf.mxu0
      %v3092 = vadd.f32 0.0, %v3091
      %3093 = vmatmul.bf16.gmra.mxu0 %v3059
      %v3094 = vpop.f32.mrf.mxu0
      %v3095 = vadd.f32 0.0, %v3094
      %v3096 = vpop.f32.mrf.mxu0
      %v3097 = vadd.f32 0.0, %v3096
      %3098 = vdwg.mxu0
      %v3099 = vadd.f32 %v3017, %v3071
      %v3100 = vadd.f32 %v3036, %v3090
      %v3101 = vadd.f32 %v3019, %v3073
      %v3102 = vadd.f32 %v3038, %v3092
      %v3103 = vadd.f32 %v3022, %v3076
      %v3104 = vadd.f32 %v3041, %v3095
      %v3105 = vadd.f32 %v3024, %v3078
      %v3106 = vadd.f32 %v3043, %v3097
      %3108 = vset.pattern.permute.xlu0 0
      %3109 = vperm.xlu0 %3108, %v2933
      %v3110 = vpop.permute.xlu0 %3109
      %3113 = vset.pattern.permute.xlu0 0
      %3114 = vperm.xlu0 %3113, %v2934
      %v3115 = vpop.permute.xlu0 %3114
      %3118 = vset.pattern.permute.xlu0 0
      %3119 = vperm.xlu0 %3118, %v2935
      %v3120 = vpop.permute.xlu0 %3119
      %3123 = vset.pattern.permute.xlu0 0
      %3124 = vperm.xlu0 %3123, %v2936
      %v3125 = vpop.permute.xlu0 %3124
      %v3127 = vadd.f32 %v3099, %v3110
      %v3128 = vadd.f32 %v3100, %v3110
      %v3129 = vadd.f32 %v3101, %v3115
      %v3130 = vadd.f32 %v3102, %v3115
      %v3131 = vadd.f32 %v3103, %v3120
      %v3132 = vadd.f32 %v3104, %v3120
      %v3133 = vadd.f32 %v3105, %v3125
      %v3134 = vadd.f32 %v3106, %v3125
      %v3135 = vmax.f32 %v3127, 0.0
      %v3136 = vmax.f32 %v3128, 0.0
      %v3137 = vmax.f32 %v3129, 0.0
      %v3138 = vmax.f32 %v3130, 0.0
      %v3139 = vmax.f32 %v3131, 0.0
      %v3140 = vmax.f32 %v3132, 0.0
      %v3141 = vmax.f32 %v3133, 0.0
      %v3142 = vmax.f32 %v3134, 0.0
      %v3143 = vpack.c.bf16 %v3137, %v3135
      %v3144 = vpack.c.bf16 %v3138, %v3136
      %v3145 = vpack.c.bf16 %v3141, %v3139
      %v3146 = vpack.c.bf16 %v3142, %v3140
      %v3147 = vld [vmem:[%s1116] sm:$0xf]
      %v3148 = vld [vmem:[%s1116 + $0x4] sm:$0xf]
      %v3149 = vld [vmem:[%s1116 + $0x8] sm:$0xf]
      %v3150 = vld [vmem:[%s1116 + $0xc] sm:$0xf]
      %v3151 = vld [vmem:[%s1121] sm:$0xff]
      %v3152 = vld [vmem:[%s1121 + $0x8] sm:$0xff]
      %v3153 = vld [vmem:[%s1121 + $0x10] sm:$0xff]
      %v3154 = vld [vmem:[%s1121 + $0x18] sm:$0xff]
      %3156 = vset.pattern.permute.xlu0 0
      %3157 = vperm.xlu0 %3156, %v3151
      %v3158 = vpop.permute.xlu0 %3157
      %3161 = vset.pattern.permute.xlu0 0
      %3162 = vperm.xlu0 %3161, %v3152
      %v3163 = vpop.permute.xlu0 %3162
      %3166 = vset.pattern.permute.xlu0 0
      %3167 = vperm.xlu0 %3166, %v3153
      %v3168 = vpop.permute.xlu0 %3167
      %3171 = vset.pattern.permute.xlu0 0
      %3172 = vperm.xlu0 %3171, %v3154
      %v3173 = vpop.permute.xlu0 %3172
      %v3179 = vunpack.c.l.b16 %v3147
      %v3180 = vunpack.c.l.b16 %v3148
      %v3181 = vunpack.c.l.b16 %v3149
      %v3182 = vunpack.c.l.b16 %v3150
      %v3183 = vpack.c.b16 %v3180, %v3179
      %v3184 = vpack.c.b16 %v3182, %v3181
      %v3186 = vsel %vm2676, %v3183, 0
      %v3189 = vsel %vm2676, %v3184, 0
      %3191 = vmatpush.bf16.msra.mxu0 0
      %3192 = vmatpush.bf16.msra.mxu0 0
      %3193 = vmatpush.bf16.msra.mxu0 0
      %3194 = vmatpush.bf16.msra.mxu0 0
      %3195 = vmatpush.bf16.msra.mxu0 0
      %3196 = vmatpush.bf16.msra.mxu0 0
      %3197 = vmatpush.bf16.msra.mxu0 %v3145
      %3198 = vmatpush.bf16.msra.mxu0 %v3143
      %3199 = vmatmul.bf16.gmra.mxu0 %v3186
      %v3200 = vpop.f32.mrf.mxu0
      %v3201 = vadd.f32 %v3158, %v3200
      %v3202 = vpop.f32.mrf.mxu0
      %v3203 = vadd.f32 %v3163, %v3202
      %3204 = vmatmul.bf16.gmra.mxu0 %v3189
      %v3205 = vpop.f32.mrf.mxu0
      %v3206 = vadd.f32 %v3168, %v3205
      %v3207 = vpop.f32.mrf.mxu0
      %v3208 = vadd.f32 %v3173, %v3207
      %3209 = vdwg.mxu0
      %3210 = vmatpush.bf16.msra.mxu0 0
      %3211 = vmatpush.bf16.msra.mxu0 0
      %3212 = vmatpush.bf16.msra.mxu0 0
      %3213 = vmatpush.bf16.msra.mxu0 0
      %3214 = vmatpush.bf16.msra.mxu0 0
      %3215 = vmatpush.bf16.msra.mxu0 0
      %3216 = vmatpush.bf16.msra.mxu0 %v3146
      %3217 = vmatpush.bf16.msra.mxu0 %v3144
      %3218 = vmatmul.bf16.gmra.mxu0 %v3186
      %v3219 = vpop.f32.mrf.mxu0
      %v3220 = vadd.f32 %v3158, %v3219
      %v3221 = vpop.f32.mrf.mxu0
      %v3222 = vadd.f32 %v3163, %v3221
      %3223 = vmatmul.bf16.gmra.mxu0 %v3189
      %v3224 = vpop.f32.mrf.mxu0
      %v3225 = vadd.f32 %v3168, %v3224
      %v3226 = vpop.f32.mrf.mxu0
      %v3227 = vadd.f32 %v3173, %v3226
      %3228 = vdwg.mxu0
      %v3229 = vmax.f32 %v3201, 0.0
      %v3230 = vmax.f32 %v3220, 0.0
      %v3231 = vmax.f32 %v3203, 0.0
      %v3232 = vmax.f32 %v3222, 0.0
      %v3233 = vmax.f32 %v3206, 0.0
      %v3234 = vmax.f32 %v3225, 0.0
      %v3235 = vmax.f32 %v3208, 0.0
      %v3236 = vmax.f32 %v3227, 0.0
      %v3237 = vpack.c.bf16 %v3231, %v3229
      %v3238 = vpack.c.bf16 %v3232, %v3230
      %v3239 = vpack.c.bf16 %v3235, %v3233
      %v3240 = vpack.c.bf16 %v3236, %v3234
      %v3241 = vld [vmem:[%s1126] sm:$0xf]
      %v3242 = vld [vmem:[%s1126 + $0x4] sm:$0xf]
      %v3243 = vld [vmem:[%s1126 + $0x8] sm:$0xf]
      %v3244 = vld [vmem:[%s1126 + $0xc] sm:$0xf]
      %v3245 = vld [vmem:[%s1131] sm:$0xff]
      %v3246 = vld [vmem:[%s1131 + $0x8] sm:$0xff]
      %v3247 = vld [vmem:[%s1131 + $0x10] sm:$0xff]
      %v3248 = vld [vmem:[%s1131 + $0x18] sm:$0xff]
      %3250 = vset.pattern.permute.xlu0 0
      %3251 = vperm.xlu0 %3250, %v3245
      %v3252 = vpop.permute.xlu0 %3251
      %3255 = vset.pattern.permute.xlu0 0
      %3256 = vperm.xlu0 %3255, %v3246
      %v3257 = vpop.permute.xlu0 %3256
      %3260 = vset.pattern.permute.xlu0 0
      %3261 = vperm.xlu0 %3260, %v3247
      %v3262 = vpop.permute.xlu0 %3261
      %3265 = vset.pattern.permute.xlu0 0
      %3266 = vperm.xlu0 %3265, %v3248
      %v3267 = vpop.permute.xlu0 %3266
      %v3273 = vunpack.c.l.b16 %v3241
      %v3274 = vunpack.c.l.b16 %v3242
      %v3275 = vunpack.c.l.b16 %v3243
      %v3276 = vunpack.c.l.b16 %v3244
      %v3277 = vpack.c.b16 %v3274, %v3273
      %v3278 = vpack.c.b16 %v3276, %v3275
      %v3280 = vsel %vm2676, %v3277, 0
      %v3283 = vsel %vm2676, %v3278, 0
      %3285 = vmatpush.bf16.msra.mxu0 0
      %3286 = vmatpush.bf16.msra.mxu0 0
      %3287 = vmatpush.bf16.msra.mxu0 0
      %3288 = vmatpush.bf16.msra.mxu0 0
      %3289 = vmatpush.bf16.msra.mxu0 0
      %3290 = vmatpush.bf16.msra.mxu0 0
      %3291 = vmatpush.bf16.msra.mxu0 %v3239
      %3292 = vmatpush.bf16.msra.mxu0 %v3237
      %3293 = vmatmul.bf16.gmra.mxu0 %v3280
      %v3294 = vpop.f32.mrf.mxu0
      %v3295 = vadd.f32 %v3252, %v3294
      %v3296 = vpop.f32.mrf.mxu0
      %v3297 = vadd.f32 %v3257, %v3296
      %3298 = vmatmul.bf16.gmra.mxu0 %v3283
      %v3299 = vpop.f32.mrf.mxu0
      %v3300 = vadd.f32 %v3262, %v3299
      %v3301 = vpop.f32.mrf.mxu0
      %v3302 = vadd.f32 %v3267, %v3301
      %3303 = vdwg.mxu0
      %3304 = vmatpush.bf16.msra.mxu0 0
      %3305 = vmatpush.bf16.msra.mxu0 0
      %3306 = vmatpush.bf16.msra.mxu0 0
      %3307 = vmatpush.bf16.msra.mxu0 0
      %3308 = vmatpush.bf16.msra.mxu0 0
      %3309 = vmatpush.bf16.msra.mxu0 0
      %3310 = vmatpush.bf16.msra.mxu0 %v3240
      %3311 = vmatpush.bf16.msra.mxu0 %v3238
      %3312 = vmatmul.bf16.gmra.mxu0 %v3280
      %v3313 = vpop.f32.mrf.mxu0
      %v3314 = vadd.f32 %v3252, %v3313
      %v3315 = vpop.f32.mrf.mxu0
      %v3316 = vadd.f32 %v3257, %v3315
      %3317 = vmatmul.bf16.gmra.mxu0 %v3283
      %v3318 = vpop.f32.mrf.mxu0
      %v3319 = vadd.f32 %v3262, %v3318
      %v3320 = vpop.f32.mrf.mxu0
      %v3321 = vadd.f32 %v3267, %v3320
      %3322 = vdwg.mxu0
      %v3323 = vmax.f32 %v3295, 0.0
      %v3324 = vmax.f32 %v3314, 0.0
      %v3325 = vmax.f32 %v3297, 0.0
      %v3326 = vmax.f32 %v3316, 0.0
      %v3327 = vmax.f32 %v3300, 0.0
      %v3328 = vmax.f32 %v3319, 0.0
      %v3329 = vmax.f32 %v3302, 0.0
      %v3330 = vmax.f32 %v3321, 0.0
      %v3331 = vpack.c.bf16 %v3325, %v3323
      %v3332 = vpack.c.bf16 %v3326, %v3324
      %v3333 = vpack.c.bf16 %v3329, %v3327
      %v3334 = vpack.c.bf16 %v3330, %v3328
      %v3335 = vld [vmem:[%s1135] sm:$0x3]
      %v3336 = vld [vmem:[%s1139] sm:$0x3]
      %v3337 = vld [vmem:[%s1143] sm:$0x3]
      %v3338 = vld [vmem:[%s1147] sm:$0x7]
      %v3340 = vsel %vm2486, %v3336, 0
      %3342 = vmatpush.bf16.msra.mxu0 0
      %3343 = vmatpush.bf16.msra.mxu0 0
      %3344 = vmatpush.bf16.msra.mxu0 0
      %3345 = vmatpush.bf16.msra.mxu0 0
      %3346 = vmatpush.bf16.msra.mxu0 0
      %3347 = vmatpush.bf16.msra.mxu0 0
      %3348 = vmatpush.bf16.msra.mxu0 0
      %3349 = vmatpush.bf16.msra.mxu0 %v2555
      %3350 = vmatmul.bf16.gmra.mxu0 %v3340
      %v3351 = vpop.f32.mrf.mxu0
      %v3352 = vadd.f32 0.0, %v3351
      %v3353 = vpop.f32.mrf.mxu0
      %3354 = vdwg.mxu0
      %3355 = vmatpush.bf16.msra.mxu0 0
      %3356 = vmatpush.bf16.msra.mxu0 0
      %3357 = vmatpush.bf16.msra.mxu0 0
      %3358 = vmatpush.bf16.msra.mxu0 0
      %3359 = vmatpush.bf16.msra.mxu0 0
      %3360 = vmatpush.bf16.msra.mxu0 0
      %3361 = vmatpush.bf16.msra.mxu0 0
      %3362 = vmatpush.bf16.msra.mxu0 %v2558
      %3363 = vmatmul.bf16.gmra.mxu0 %v3340
      %v3364 = vpop.f32.mrf.mxu0
      %v3365 = vadd.f32 0.0, %v3364
      %v3366 = vpop.f32.mrf.mxu0
      %3367 = vdwg.mxu0
      %v3369 = vsel %vm2676, %v3335, 0
      %3371 = vmatpush.bf16.msra.mxu0 0
      %3372 = vmatpush.bf16.msra.mxu0 0
      %3373 = vmatpush.bf16.msra.mxu0 0
      %3374 = vmatpush.bf16.msra.mxu0 0
      %3375 = vmatpush.bf16.msra.mxu0 0
      %3376 = vmatpush.bf16.msra.mxu0 0
      %3377 = vmatpush.bf16.msra.mxu0 %v3333
      %3378 = vmatpush.bf16.msra.mxu0 %v3331
      %3379 = vmatmul.bf16.gmra.mxu0 %v3369
      %v3380 = vpop.f32.mrf.mxu0
      %v3381 = vadd.f32 %v3352, %v3380
      %v3382 = vpop.f32.mrf.mxu0
      %3383 = vdwg.mxu0
      %3384 = vmatpush.bf16.msra.mxu0 0
      %3385 = vmatpush.bf16.msra.mxu0 0
      %3386 = vmatpush.bf16.msra.mxu0 0
      %3387 = vmatpush.bf16.msra.mxu0 0
      %3388 = vmatpush.bf16.msra.mxu0 0
      %3389 = vmatpush.bf16.msra.mxu0 0
      %3390 = vmatpush.bf16.msra.mxu0 %v3334
      %3391 = vmatpush.bf16.msra.mxu0 %v3332
      %3392 = vmatmul.bf16.gmra.mxu0 %v3369
      %v3393 = vpop.f32.mrf.mxu0
      %v3394 = vadd.f32 %v3365, %v3393
      %v3395 = vpop.f32.mrf.mxu0
      %3396 = vdwg.mxu0
      %v3398 = vsel %vm2486, %v3337, 0
      %3400 = vmatpush.bf16.msra.mxu0 0
      %3401 = vmatpush.bf16.msra.mxu0 0
      %3402 = vmatpush.bf16.msra.mxu0 0
      %3403 = vmatpush.bf16.msra.mxu0 0
      %3404 = vmatpush.bf16.msra.mxu0 0
      %3405 = vmatpush.bf16.msra.mxu0 0
      %3406 = vmatpush.bf16.msra.mxu0 0
      %3407 = vmatpush.bf16.msra.mxu0 %v2495
      %3408 = vmatmul.bf16.gmra.mxu0 %v3398
      %v3409 = vpop.f32.mrf.mxu0
      %v3410 = vadd.f32 0.0, %v3409
      %v3411 = vpop.f32.mrf.mxu0
      %3412 = vdwg.mxu0
      %3413 = vmatpush.bf16.msra.mxu0 0
      %3414 = vmatpush.bf16.msra.mxu0 0
      %3415 = vmatpush.bf16.msra.mxu0 0
      %3416 = vmatpush.bf16.msra.mxu0 0
      %3417 = vmatpush.bf16.msra.mxu0 0
      %3418 = vmatpush.bf16.msra.mxu0 0
      %3419 = vmatpush.bf16.msra.mxu0 0
      %3420 = vmatpush.bf16.msra.mxu0 %v2498
      %3421 = vmatmul.bf16.gmra.mxu0 %v3398
      %v3422 = vpop.f32.mrf.mxu0
      %v3423 = vadd.f32 0.0, %v3422
      %v3424 = vpop.f32.mrf.mxu0
      %3425 = vdwg.mxu0
      %v3426 = vadd.f32 %v3381, %v3410
      %v3427 = vadd.f32 %v3394, %v3423
      %3429 = vset.pattern.permute.xlu0 0
      %3430 = vperm.xlu0 %3429, %v3338
      %v3431 = vpop.permute.xlu0 %3430
      %v3433 = vadd.f32 %v3426, %v3431
      %v3434 = vadd.f32 %v3427, %v3431
      %v3435 = vtanh.pop %v3433
      %v3436 = vtanh.pop %v3434
      %v3437 = vadd.f32 %v3435, 1.0
      %v3438 = vadd.f32 %v3436, 1.0
      %v3439 = vmul.f32 %v3437, 0.5
      %v3440 = vmul.f32 %v3438, 0.5
      %v3443 = vrot.slane %v3440, 4
      %vm3444 = vcmask 1043456
      %v3445 = vsel %vm3444, %v3439, %v3443
      %3447 = vst [vmem:[%s1156] sm:$0x77] %v3445
      %s3448 = smul.u32 2, %s39
      %p3449 = scmp.lt.s32.totalorder %s38, 1
      %s3450 = scalar_select %p3449, %s38, 1
      %p3451 = scmp.lt.s32.totalorder %s3448, 1
      %s3452 = scalar_select %p3451, %s3448, 1
      %s3453 = smul.addr %s3450, 2
      %s3454 = sadd.s32 %s3452, %s3453
      %s3455 = smul.addr %s3454, 4
      %s3456 = scalar_lea.vmem %s23, %s3455
      // Predicated region
      $region113: #{tpu_custom_call.1} parent=111 // pred_check
        %p3457 = pneg %p661
      $region114: #{tpu_custom_call.1} parent=111 // pred_check_branch
        %3459 = sbr.rel (%p3457) target = $region116
      $region115: #{tpu_custom_call.1} parent=111 // pred_region
        %s3460 = smul.u32 2, %s39
      $region116: #{tpu_custom_call.1} parent=111 // pred_fallthru
        _
    $region112: #{tpu_custom_call.1} parent=5 // pred_fallthru
      _
    %p3461 = scmp.le.s32.totalorder 2, %s29
    // Predicated region
    $region117: #{tpu_custom_call.1} parent=5 // pred_check
      %p3462 = pneg %p3461
    $region118: #{tpu_custom_call.1} parent=5 // pred_check_branch
      %3464 = sbr.rel (%p3462) target = $region120
    $region119: #{tpu_custom_call.1} parent=5 // pred_region
      %s3465 = ssub.s32 %s29, 2
      // Predicated region
      $region121: #{tpu_custom_call.1} parent=119 // pred_check
        %p3466 = pneg %p667
      $region122: #{tpu_custom_call.1} parent=119 // pred_check_branch
        %3468 = sbr.rel (%p3466) target = $region124
      $region123: #{tpu_custom_call.1} parent=119 // pred_region
        %s3469 = smul.u32 2, %s41
        %p3470 = scmp.lt.s32.totalorder %s40, 1
        %s3471 = scalar_select %p3470, %s40, 1
        %p3472 = scmp.lt.s32.totalorder %s3469, 1
        %s3473 = scalar_select %p3472, %s3469, 1
        %s3474 = smul.addr %s3471, 2
        %s3475 = sadd.s32 %s3473, %s3474
        %s3476 = smul.addr %s3475, 4
        %s3477 = scalar_lea.vmem %s23, %s3476
      $region124: #{tpu_custom_call.1} parent=119 // pred_fallthru
        _
    $region120: #{tpu_custom_call.1} parent=5 // pred_fallthru
      _
  $region6: #{tpu_custom_call.1} parent=0 // loop_footer
    %s33 = sadd.s32 1, %s29
  $region7: #{tpu_custom_call.1} parent=0 // loop_footer_branch
    %28 = sbr.rel target = $region3
  $region8: #{tpu_custom_call.1} parent=0 // loop_exit
    _

</llo_original>
